<compile_context>
chip_gen: v7x
topology: tpu7x:2x2x1
jax: 0.10.0
libtpu: 0.0.40
codegen_flags: <defaults>
</compile_context>

<pallas_src>
import jax
import jax.numpy as jnp
from jax import lax
from jax.experimental import pallas as pl
from jax.experimental.pallas import tpu as pltpu


# ----------------------------------------------------------------------------
# Fused Pallas kernel: 2-layer BiLSTM (live paths only) + final Linear
# ----------------------------------------------------------------------------
def bilstm_model_kernel(x_ref, wih0_ref, whh0_ref, b0_ref,
                        wih1_ref, whh1_ref, b1_ref,
                        wlin_ref, blin_ref,
                        o_ref,
                        x2_scr, xg0_scr, out0_scr, xg1_scr):
    S, E = x_ref.shape
    H = whh1_ref.shape[0]

    # ---------------- Layer 0 : fused bidirectional LSTM ----------------
    # Build x2[t] = [x[t] | x[S-1-t]] so a single matmul yields the x-gates of
    # BOTH directions, time-aligned with the fused recurrence (in-kernel
    # reversal — no host-side x[::-1]).
    x2_scr[:, 0:E] = x_ref[...]
    for t in range(S):                       # static, tiny -> unrolled copies
        x2_scr[pl.ds(t, 1), E:2 * E] = x_ref[pl.ds(S - 1 - t, 1), :]

    # Gate layout (interleaved): [i_f|i_b | f_f|f_b | g_f|g_b | o_f|o_b]
    xg0_scr[...] = (
        jnp.dot(x2_scr[...], wih0_ref[...], preferred_element_type=jnp.float32)
        + b0_ref[...]
    )

    def l0_step(t, carry):
        h, c = carry                                               # (1, 2H) each
        gates = xg0_scr[pl.ds(t, 1), :] + jnp.dot(
            h, whh0_ref[...], preferred_element_type=jnp.float32)  # (1, 8H)
        s = jax.nn.sigmoid(gates)            # one full-width sigmoid covers i,f,o
        g = jnp.tanh(gates[:, 4 * H:6 * H])  # tanh only on the g chunk
        c_new = s[:, 2 * H:4 * H] * c + s[:, 0:2 * H] * g
        h_new = s[:, 6 * H:8 * H] * jnp.tanh(c_new)
        # forward half of h_new is timestep t; backward half is timestep S-1-t
        out0_scr[pl.ds(t, 1), 0:H] = h_new[:, 0:H]
        out0_scr[pl.ds(S - 1 - t, 1), H:2 * H] = h_new[:, H:2 * H]
        return h_new, c_new

    h0 = jnp.zeros((1, 2 * H), jnp.float32)
    c0 = jnp.zeros((1, 2 * H), jnp.float32)
    h0, _ = lax.fori_loop(0, S, l0_step, (h0, c0), unroll=True)
    h0_bwd = h0[:, H:2 * H]                  # == PyTorch hidden[1]

    # ---------------- Layer 1 : forward direction only ----------------
    # Layer-1 backward is dead compute: neither its per-step output nor its
    # final state feeds hidden2 = cat(hidden[1], hidden[2]).
    xg1_scr[...] = (
        jnp.dot(out0_scr[...], wih1_ref[...], preferred_element_type=jnp.float32)
        + b1_ref[...]
    )

    def l1_step(t, carry):
        h, c = carry                                               # (1, H) each
        gates = xg1_scr[pl.ds(t, 1), :] + jnp.dot(
            h, whh1_ref[...], preferred_element_type=jnp.float32)  # (1, 4H) [i|f|g|o]
        s = jax.nn.sigmoid(gates)
        g = jnp.tanh(gates[:, 2 * H:3 * H])
        c_new = s[:, H:2 * H] * c + s[:, 0:H] * g
        h_new = s[:, 3 * H:4 * H] * jnp.tanh(c_new)
        return h_new, c_new

    h1 = jnp.zeros((1, H), jnp.float32)
    c1 = jnp.zeros((1, H), jnp.float32)
    h1, _ = lax.fori_loop(0, S, l1_step, (h1, c1), unroll=True)    # == hidden[2]

    # -------- Final linear on concat(hidden[1], hidden[2]) --------
    # Expressed as a split matmul to avoid a sub-vreg lane concat.
    o_ref[...] = (
        jnp.dot(h0_bwd, wlin_ref[0:H, :], preferred_element_type=jnp.float32)
        + jnp.dot(h1, wlin_ref[H:2 * H, :], preferred_element_type=jnp.float32)
        + blin_ref[...]
    )


# ----------------------------------------------------------------------------
# Host-side weight packing (one-time, outside the hot path)
# ----------------------------------------------------------------------------
def pack_params(params, hidden_dim):
    H = hidden_dim
    w_ih_f, w_hh_f, b_ih_f, b_hh_f = params["lstm"][(0, 0)]
    w_ih_b, w_hh_b, b_ih_b, b_hh_b = params["lstm"][(0, 1)]
    w_ih_1, w_hh_1, b_ih_1, b_hh_1 = params["lstm"][(1, 0)]

    def interleave(f_t, b_t):
        # f_t, b_t: (rows, 4H) -> (rows, 8H) with per-gate [fwd|bwd] column blocks
        r = f_t.shape[0]
        return jnp.concatenate(
            [f_t.reshape(r, 4, H), b_t.reshape(r, 4, H)], axis=2
        ).reshape(r, 8 * H)

    zE = jnp.zeros_like(w_ih_f.T)            # (E, 4H)
    zH = jnp.zeros_like(w_hh_f.T)            # (H, 4H)
    # rows 0:E feed only forward-gate columns, rows E:2E only backward-gate cols
    wih0 = jnp.concatenate(
        [interleave(w_ih_f.T, zE), interleave(zE, w_ih_b.T)], axis=0)   # (2E, 8H)
    # block-diagonal recurrent weight: h_f rows -> fwd cols, h_b rows -> bwd cols
    whh0 = jnp.concatenate(
        [interleave(w_hh_f.T, zH), interleave(zH, w_hh_b.T)], axis=0)   # (2H, 8H)
    b0 = interleave((b_ih_f + b_hh_f).reshape(1, 4 * H),
                    (b_ih_b + b_hh_b).reshape(1, 4 * H))                # (1, 8H)

    wih1 = w_ih_1.T                                                     # (2H, 4H)
    whh1 = w_hh_1.T                                                     # (H, 4H)
    b1 = (b_ih_1 + b_hh_1).reshape(1, 4 * H)                            # (1, 4H)

    wlin = params["W_lin"].T                                            # (2H, out)
    blin = params["b_lin"].reshape(1, -1)                               # (1, out)

    return dict(embedding=params["embedding"].astype(jnp.float32),
                wih0=wih0, whh0=whh0, b0=b0,
                wih1=wih1, whh1=whh1, b1=b1,
                wlin=wlin, blin=blin)


# ----------------------------------------------------------------------------
# Forward pass
# ----------------------------------------------------------------------------
def rnn_model_forward(sentence, packed):
    # Embedding gather is plain-JAX glue (data-dependent HBM gather).
    # TODO(synk): nn.Dropout / LSTM inter-layer dropout are identity at inference.
    x = packed["embedding"][sentence].astype(jnp.float32)               # (S, E)
    S, E = x.shape
    H = packed["whh1"].shape[0]
    out_dim = packed["wlin"].shape[1]

    vmem = pl.BlockSpec(memory_space=pltpu.MemorySpace.VMEM)
    return pl.pallas_call(
        bilstm_model_kernel,
        out_shape=jax.ShapeDtypeStruct((1, out_dim), jnp.float32),
        in_specs=[vmem] * 9,
        out_specs=vmem,
        scratch_shapes=[
            pltpu.VMEM((S, 2 * E), jnp.float32),   # [x[t] | x[S-1-t]]
            pltpu.VMEM((S, 8 * H), jnp.float32),   # layer-0 x-gates (both dirs)
            pltpu.VMEM((S, 2 * H), jnp.float32),   # layer-0 output / layer-1 input
            pltpu.VMEM((S, 4 * H), jnp.float32),   # layer-1 fwd x-gates
        ],
    )(x, packed["wih0"], packed["whh0"], packed["b0"],
      packed["wih1"], packed["whh1"], packed["b1"],
      packed["wlin"], packed["blin"])


# ----------------------------------------------------------------------------
# Parameter init (PyTorch-like layout)
# ----------------------------------------------------------------------------
def init_params(key, embedding_dim, hidden_dim, vocab_size, output_dim, num_layers):
    keys = jax.random.split(key, 3 + num_layers * 2 * 4)
    params = {}
    params["embedding"] = jax.random.normal(
        keys[0], (vocab_size, embedding_dim), jnp.float32)
    stdv = 1.0 / jnp.sqrt(hidden_dim)
    ki = 1
    lstm = {}
    for layer in range(num_layers):
        in_dim = embedding_dim if layer == 0 else 2 * hidden_dim
        for d in range(2):  # 0 = forward, 1 = backward
            w_ih = jax.random.uniform(keys[ki], (4 * hidden_dim, in_dim),
                                      jnp.float32, -stdv, stdv); ki += 1
            w_hh = jax.random.uniform(keys[ki], (4 * hidden_dim, hidden_dim),
                                      jnp.float32, -stdv, stdv); ki += 1
            b_ih = jax.random.uniform(keys[ki], (4 * hidden_dim,),
                                      jnp.float32, -stdv, stdv); ki += 1
            b_hh = jax.random.uniform(keys[ki], (4 * hidden_dim,),
                                      jnp.float32, -stdv, stdv); ki += 1
            lstm[(layer, d)] = (w_ih, w_hh, b_ih, b_hh)
    params["lstm"] = lstm
    lin_stdv = 1.0 / jnp.sqrt(2 * hidden_dim)
    params["W_lin"] = jax.random.uniform(keys[ki], (output_dim, 2 * hidden_dim),
                                         jnp.float32, -lin_stdv, lin_stdv)
    params["b_lin"] = jax.random.uniform(keys[ki + 1], (output_dim,),
                                         jnp.float32, -lin_stdv, lin_stdv)
    return params


# ----------------------------------------------------------------------------
if __name__ == "__main__":
    embedding_dim = 32
    hidden_dim = 32
    vocab_size = 100
    output_dim = 4
    num_layers = 2       # hidden[2] in the reference requires >= 2 layers
    seq_len = 8

    key = jax.random.PRNGKey(0)
    pkey, skey = jax.random.split(key)
    params = init_params(pkey, embedding_dim, hidden_dim, vocab_size,
                         output_dim, num_layers)
    packed = pack_params(params, hidden_dim)
    sentence = jax.random.randint(skey, (seq_len,), 0, vocab_size, dtype=jnp.int32)

    fwd = jax.jit(rnn_model_forward)
    out = fwd(sentence, packed)
    jax.block_until_ready(out)
    assert out.shape == (1, output_dim)
    print("KERNEL_OK")
</pallas_src>

<mosaic_0001>
module attributes {stable_mosaic.version = 11 : i64} {
  func.func @bilstm_model_kernel(%arg0: memref<8x32xf32, #tpu.memory_space<vmem>>, %arg1: memref<64x256xf32, #tpu.memory_space<vmem>>, %arg2: memref<64x256xf32, #tpu.memory_space<vmem>>, %arg3: memref<1x256xf32, #tpu.memory_space<vmem>>, %arg4: memref<64x128xf32, #tpu.memory_space<vmem>>, %arg5: memref<32x128xf32, #tpu.memory_space<vmem>>, %arg6: memref<1x128xf32, #tpu.memory_space<vmem>>, %arg7: memref<64x4xf32, #tpu.memory_space<vmem>>, %arg8: memref<1x4xf32, #tpu.memory_space<vmem>>, %arg9: memref<1x4xf32, #tpu.memory_space<vmem>>, %arg10: memref<8x64xf32, #tpu.memory_space<vmem>>, %arg11: memref<8x256xf32, #tpu.memory_space<vmem>>, %arg12: memref<8x64xf32, #tpu.memory_space<vmem>>, %arg13: memref<8x128xf32, #tpu.memory_space<vmem>>) attributes {dimension_semantics = [], scalar_prefetch = 0 : i64, scratch_operands = 4 : i64, tpu.core_type = #tpu.core_type<tc>} {
    %c0 = arith.constant 0 : index
    %c0_0 = arith.constant 0 : index
    %0 = vector.load %arg0[%c0, %c0_0] : memref<8x32xf32, #tpu.memory_space<vmem>>, vector<8x32xf32>
    %c0_1 = arith.constant 0 : index
    %c0_2 = arith.constant 0 : index
    %1 = vector.load %arg10[%c0_1, %c0_2] : memref<8x64xf32, #tpu.memory_space<vmem>>, vector<8x32xf32>
    tpu.vector_store %arg10[%c0_1, %c0_2], %0 {strides = array<i32>} : memref<8x64xf32, #tpu.memory_space<vmem>>, vector<8x32xf32>,
    %c7 = arith.constant 7 : index
    %c0_3 = arith.constant 0 : index
    %2 = vector.load %arg0[%c7, %c0_3] : memref<8x32xf32, #tpu.memory_space<vmem>>, vector<1x32xf32>
    %c0_4 = arith.constant 0 : index
    %c32 = arith.constant 32 : index
    %3 = vector.load %arg10[%c0_4, %c32] : memref<8x64xf32, #tpu.memory_space<vmem>>, vector<1x32xf32>
    tpu.vector_store %arg10[%c0_4, %c32], %2 {strides = array<i32>} : memref<8x64xf32, #tpu.memory_space<vmem>>, vector<1x32xf32>,
    %c6 = arith.constant 6 : index
    %c0_5 = arith.constant 0 : index
    %4 = vector.load %arg0[%c6, %c0_5] : memref<8x32xf32, #tpu.memory_space<vmem>>, vector<1x32xf32>
    %c1 = arith.constant 1 : index
    %c32_6 = arith.constant 32 : index
    %5 = vector.load %arg10[%c1, %c32_6] : memref<8x64xf32, #tpu.memory_space<vmem>>, vector<1x32xf32>
    tpu.vector_store %arg10[%c1, %c32_6], %4 {strides = array<i32>} : memref<8x64xf32, #tpu.memory_space<vmem>>, vector<1x32xf32>,
    %c5 = arith.constant 5 : index
    %c0_7 = arith.constant 0 : index
    %6 = vector.load %arg0[%c5, %c0_7] : memref<8x32xf32, #tpu.memory_space<vmem>>, vector<1x32xf32>
    %c2 = arith.constant 2 : index
    %c32_8 = arith.constant 32 : index
    %7 = vector.load %arg10[%c2, %c32_8] : memref<8x64xf32, #tpu.memory_space<vmem>>, vector<1x32xf32>
    tpu.vector_store %arg10[%c2, %c32_8], %6 {strides = array<i32>} : memref<8x64xf32, #tpu.memory_space<vmem>>, vector<1x32xf32>,
    %c4 = arith.constant 4 : index
    %c0_9 = arith.constant 0 : index
    %8 = vector.load %arg0[%c4, %c0_9] : memref<8x32xf32, #tpu.memory_space<vmem>>, vector<1x32xf32>
    %c3 = arith.constant 3 : index
    %c32_10 = arith.constant 32 : index
    %9 = vector.load %arg10[%c3, %c32_10] : memref<8x64xf32, #tpu.memory_space<vmem>>, vector<1x32xf32>
    tpu.vector_store %arg10[%c3, %c32_10], %8 {strides = array<i32>} : memref<8x64xf32, #tpu.memory_space<vmem>>, vector<1x32xf32>,
    %c3_11 = arith.constant 3 : index
    %c0_12 = arith.constant 0 : index
    %10 = vector.load %arg0[%c3_11, %c0_12] : memref<8x32xf32, #tpu.memory_space<vmem>>, vector<1x32xf32>
    %c4_13 = arith.constant 4 : index
    %c32_14 = arith.constant 32 : index
    %11 = vector.load %arg10[%c4_13, %c32_14] : memref<8x64xf32, #tpu.memory_space<vmem>>, vector<1x32xf32>
    tpu.vector_store %arg10[%c4_13, %c32_14], %10 {strides = array<i32>} : memref<8x64xf32, #tpu.memory_space<vmem>>, vector<1x32xf32>,
    %c2_15 = arith.constant 2 : index
    %c0_16 = arith.constant 0 : index
    %12 = vector.load %arg0[%c2_15, %c0_16] : memref<8x32xf32, #tpu.memory_space<vmem>>, vector<1x32xf32>
    %c5_17 = arith.constant 5 : index
    %c32_18 = arith.constant 32 : index
    %13 = vector.load %arg10[%c5_17, %c32_18] : memref<8x64xf32, #tpu.memory_space<vmem>>, vector<1x32xf32>
    tpu.vector_store %arg10[%c5_17, %c32_18], %12 {strides = array<i32>} : memref<8x64xf32, #tpu.memory_space<vmem>>, vector<1x32xf32>,
    %c1_19 = arith.constant 1 : index
    %c0_20 = arith.constant 0 : index
    %14 = vector.load %arg0[%c1_19, %c0_20] : memref<8x32xf32, #tpu.memory_space<vmem>>, vector<1x32xf32>
    %c6_21 = arith.constant 6 : index
    %c32_22 = arith.constant 32 : index
    %15 = vector.load %arg10[%c6_21, %c32_22] : memref<8x64xf32, #tpu.memory_space<vmem>>, vector<1x32xf32>
    tpu.vector_store %arg10[%c6_21, %c32_22], %14 {strides = array<i32>} : memref<8x64xf32, #tpu.memory_space<vmem>>, vector<1x32xf32>,
    %c0_23 = arith.constant 0 : index
    %c0_24 = arith.constant 0 : index
    %16 = vector.load %arg0[%c0_23, %c0_24] : memref<8x32xf32, #tpu.memory_space<vmem>>, vector<1x32xf32>
    %c7_25 = arith.constant 7 : index
    %c32_26 = arith.constant 32 : index
    %17 = vector.load %arg10[%c7_25, %c32_26] : memref<8x64xf32, #tpu.memory_space<vmem>>, vector<1x32xf32>
    tpu.vector_store %arg10[%c7_25, %c32_26], %16 {strides = array<i32>} : memref<8x64xf32, #tpu.memory_space<vmem>>, vector<1x32xf32>,
    %c0_27 = arith.constant 0 : index
    %c0_28 = arith.constant 0 : index
    %18 = vector.load %arg10[%c0_27, %c0_28] : memref<8x64xf32, #tpu.memory_space<vmem>>, vector<8x64xf32>
    %c0_29 = arith.constant 0 : index
    %c0_30 = arith.constant 0 : index
    %19 = vector.load %arg1[%c0_29, %c0_30] : memref<64x256xf32, #tpu.memory_space<vmem>>, vector<64x256xf32>
    %cst = arith.constant dense<0.000000e+00> : vector<8x256xf32>
    %20 = tpu.matmul %18, %19, %cst {dimension_numbers = #tpu.dot_dimension_numbers<[1], [0], [0], [1], [0, 0, 1, 1], [], []>} : vector<8x64xf32>, vector<64x256xf32>, vector<8x256xf32> -> vector<8x256xf32>
    %c0_31 = arith.constant 0 : index
    %c0_32 = arith.constant 0 : index
    %21 = vector.load %arg3[%c0_31, %c0_32] : memref<1x256xf32, #tpu.memory_space<vmem>>, vector<1x256xf32>
    %22 = vector.broadcast %21 : vector<1x256xf32> to vector<8x256xf32>
    %23 = arith.addf %20, %22 : vector<8x256xf32>
    %c0_33 = arith.constant 0 : index
    %c0_34 = arith.constant 0 : index
    %24 = vector.load %arg11[%c0_33, %c0_34] : memref<8x256xf32, #tpu.memory_space<vmem>>, vector<8x256xf32>
    tpu.vector_store %arg11[%c0_33, %c0_34], %23 {strides = array<i32>} : memref<8x256xf32, #tpu.memory_space<vmem>>, vector<8x256xf32>,
    %cst_35 = arith.constant 0.000000e+00 : f32
    %25 = vector.broadcast %cst_35 : f32 to vector<1x64xf32>
    %cst_36 = arith.constant 0.000000e+00 : f32
    %26 = vector.broadcast %cst_36 : f32 to vector<1x64xf32>
    %c0_i32 = arith.constant 0 : i32
    %27 = arith.index_cast %c0_i32 : i32 to index
    %c0_37 = arith.constant 0 : index
    %28 = vector.load %arg11[%27, %c0_37] : memref<8x256xf32, #tpu.memory_space<vmem>>, vector<1x256xf32>
    %c0_38 = arith.constant 0 : index
    %c0_39 = arith.constant 0 : index
    %29 = vector.load %arg2[%c0_38, %c0_39] : memref<64x256xf32, #tpu.memory_space<vmem>>, vector<64x256xf32>
    %cst_40 = arith.constant dense<0.000000e+00> : vector<1x256xf32>
    %30 = tpu.matmul %25, %29, %cst_40 {dimension_numbers = #tpu.dot_dimension_numbers<[1], [0], [0], [1], [0, 0, 1, 1], [], []>} : vector<1x64xf32>, vector<64x256xf32>, vector<1x256xf32> -> vector<1x256xf32>
    %31 = arith.addf %28, %30 : vector<1x256xf32>
    %32 = arith.negf %31 : vector<1x256xf32>
    %33 = math.exp %32 : vector<1x256xf32>
    %cst_41 = arith.constant 1.000000e+00 : f32
    %34 = vector.broadcast %cst_41 : f32 to vector<1x256xf32>
    %35 = arith.addf %34, %33 : vector<1x256xf32>
    %36 = arith.divf %34, %35 : vector<1x256xf32>
    %37 = vector.extract_strided_slice %31 {offsets = [0, 128], sizes = [1, 64], strides = [1, 1]} : vector<1x256xf32> to vector<1x64xf32>
    %38 = math.tanh %37 : vector<1x64xf32>
    %39 = vector.extract_strided_slice %36 {offsets = [0, 64], sizes = [1, 64], strides = [1, 1]} : vector<1x256xf32> to vector<1x64xf32>
    %40 = arith.mulf %39, %26 : vector<1x64xf32>
    %41 = vector.extract_strided_slice %36 {offsets = [0, 0], sizes = [1, 64], strides = [1, 1]} : vector<1x256xf32> to vector<1x64xf32>
    %42 = arith.mulf %41, %38 : vector<1x64xf32>
    %43 = arith.addf %40, %42 : vector<1x64xf32>
    %44 = vector.extract_strided_slice %36 {offsets = [0, 192], sizes = [1, 64], strides = [1, 1]} : vector<1x256xf32> to vector<1x64xf32>
    %45 = math.tanh %43 : vector<1x64xf32>
    %46 = arith.mulf %44, %45 : vector<1x64xf32>
    %47 = vector.extract_strided_slice %46 {offsets = [0, 0], sizes = [1, 32], strides = [1, 1]} : vector<1x64xf32> to vector<1x32xf32>
    %48 = arith.index_cast %c0_i32 : i32 to index
    %c0_42 = arith.constant 0 : index
    %49 = vector.load %arg12[%48, %c0_42] : memref<8x64xf32, #tpu.memory_space<vmem>>, vector<1x32xf32>
    tpu.vector_store %arg12[%48, %c0_42], %47 {strides = array<i32>} : memref<8x64xf32, #tpu.memory_space<vmem>>, vector<1x32xf32>,
    %50 = vector.extract_strided_slice %46 {offsets = [0, 32], sizes = [1, 32], strides = [1, 1]} : vector<1x64xf32> to vector<1x32xf32>
    %c7_i32 = arith.constant 7 : i32
    %51 = arith.subi %c7_i32, %c0_i32 : i32
    %52 = arith.index_cast %51 : i32 to index
    %c32_43 = arith.constant 32 : index
    %53 = vector.load %arg12[%52, %c32_43] : memref<8x64xf32, #tpu.memory_space<vmem>>, vector<1x32xf32>
    tpu.vector_store %arg12[%52, %c32_43], %50 {strides = array<i32>} : memref<8x64xf32, #tpu.memory_space<vmem>>, vector<1x32xf32>,
    %c1_i32 = arith.constant 1 : i32
    %54 = arith.index_cast %c1_i32 : i32 to index
    %c0_44 = arith.constant 0 : index
    %55 = vector.load %arg11[%54, %c0_44] : memref<8x256xf32, #tpu.memory_space<vmem>>, vector<1x256xf32>
    %c0_45 = arith.constant 0 : index
    %c0_46 = arith.constant 0 : index
    %56 = vector.load %arg2[%c0_45, %c0_46] : memref<64x256xf32, #tpu.memory_space<vmem>>, vector<64x256xf32>
    %cst_47 = arith.constant dense<0.000000e+00> : vector<1x256xf32>
    %57 = tpu.matmul %46, %56, %cst_47 {dimension_numbers = #tpu.dot_dimension_numbers<[1], [0], [0], [1], [0, 0, 1, 1], [], []>} : vector<1x64xf32>, vector<64x256xf32>, vector<1x256xf32> -> vector<1x256xf32>
    %58 = arith.addf %55, %57 : vector<1x256xf32>
    %59 = arith.negf %58 : vector<1x256xf32>
    %60 = math.exp %59 : vector<1x256xf32>
    %cst_48 = arith.constant 1.000000e+00 : f32
    %61 = vector.broadcast %cst_48 : f32 to vector<1x256xf32>
    %62 = arith.addf %61, %60 : vector<1x256xf32>
    %63 = arith.divf %61, %62 : vector<1x256xf32>
    %64 = vector.extract_strided_slice %58 {offsets = [0, 128], sizes = [1, 64], strides = [1, 1]} : vector<1x256xf32> to vector<1x64xf32>
    %65 = math.tanh %64 : vector<1x64xf32>
    %66 = vector.extract_strided_slice %63 {offsets = [0, 64], sizes = [1, 64], strides = [1, 1]} : vector<1x256xf32> to vector<1x64xf32>
    %67 = arith.mulf %66, %43 : vector<1x64xf32>
    %68 = vector.extract_strided_slice %63 {offsets = [0, 0], sizes = [1, 64], strides = [1, 1]} : vector<1x256xf32> to vector<1x64xf32>
    %69 = arith.mulf %68, %65 : vector<1x64xf32>
    %70 = arith.addf %67, %69 : vector<1x64xf32>
    %71 = vector.extract_strided_slice %63 {offsets = [0, 192], sizes = [1, 64], strides = [1, 1]} : vector<1x256xf32> to vector<1x64xf32>
    %72 = math.tanh %70 : vector<1x64xf32>
    %73 = arith.mulf %71, %72 : vector<1x64xf32>
    %74 = vector.extract_strided_slice %73 {offsets = [0, 0], sizes = [1, 32], strides = [1, 1]} : vector<1x64xf32> to vector<1x32xf32>
    %75 = arith.index_cast %c1_i32 : i32 to index
    %c0_49 = arith.constant 0 : index
    %76 = vector.load %arg12[%75, %c0_49] : memref<8x64xf32, #tpu.memory_space<vmem>>, vector<1x32xf32>
    tpu.vector_store %arg12[%75, %c0_49], %74 {strides = array<i32>} : memref<8x64xf32, #tpu.memory_space<vmem>>, vector<1x32xf32>,
    %77 = vector.extract_strided_slice %73 {offsets = [0, 32], sizes = [1, 32], strides = [1, 1]} : vector<1x64xf32> to vector<1x32xf32>
    %c7_i32_50 = arith.constant 7 : i32
    %78 = arith.subi %c7_i32_50, %c1_i32 : i32
    %79 = arith.index_cast %78 : i32 to index
    %c32_51 = arith.constant 32 : index
    %80 = vector.load %arg12[%79, %c32_51] : memref<8x64xf32, #tpu.memory_space<vmem>>, vector<1x32xf32>
    tpu.vector_store %arg12[%79, %c32_51], %77 {strides = array<i32>} : memref<8x64xf32, #tpu.memory_space<vmem>>, vector<1x32xf32>,
    %c2_i32 = arith.constant 2 : i32
    %81 = arith.index_cast %c2_i32 : i32 to index
    %c0_52 = arith.constant 0 : index
    %82 = vector.load %arg11[%81, %c0_52] : memref<8x256xf32, #tpu.memory_space<vmem>>, vector<1x256xf32>
    %c0_53 = arith.constant 0 : index
    %c0_54 = arith.constant 0 : index
    %83 = vector.load %arg2[%c0_53, %c0_54] : memref<64x256xf32, #tpu.memory_space<vmem>>, vector<64x256xf32>
    %cst_55 = arith.constant dense<0.000000e+00> : vector<1x256xf32>
    %84 = tpu.matmul %73, %83, %cst_55 {dimension_numbers = #tpu.dot_dimension_numbers<[1], [0], [0], [1], [0, 0, 1, 1], [], []>} : vector<1x64xf32>, vector<64x256xf32>, vector<1x256xf32> -> vector<1x256xf32>
    %85 = arith.addf %82, %84 : vector<1x256xf32>
    %86 = arith.negf %85 : vector<1x256xf32>
    %87 = math.exp %86 : vector<1x256xf32>
    %cst_56 = arith.constant 1.000000e+00 : f32
    %88 = vector.broadcast %cst_56 : f32 to vector<1x256xf32>
    %89 = arith.addf %88, %87 : vector<1x256xf32>
    %90 = arith.divf %88, %89 : vector<1x256xf32>
    %91 = vector.extract_strided_slice %85 {offsets = [0, 128], sizes = [1, 64], strides = [1, 1]} : vector<1x256xf32> to vector<1x64xf32>
    %92 = math.tanh %91 : vector<1x64xf32>
    %93 = vector.extract_strided_slice %90 {offsets = [0, 64], sizes = [1, 64], strides = [1, 1]} : vector<1x256xf32> to vector<1x64xf32>
    %94 = arith.mulf %93, %70 : vector<1x64xf32>
    %95 = vector.extract_strided_slice %90 {offsets = [0, 0], sizes = [1, 64], strides = [1, 1]} : vector<1x256xf32> to vector<1x64xf32>
    %96 = arith.mulf %95, %92 : vector<1x64xf32>
    %97 = arith.addf %94, %96 : vector<1x64xf32>
    %98 = vector.extract_strided_slice %90 {offsets = [0, 192], sizes = [1, 64], strides = [1, 1]} : vector<1x256xf32> to vector<1x64xf32>
    %99 = math.tanh %97 : vector<1x64xf32>
    %100 = arith.mulf %98, %99 : vector<1x64xf32>
    %101 = vector.extract_strided_slice %100 {offsets = [0, 0], sizes = [1, 32], strides = [1, 1]} : vector<1x64xf32> to vector<1x32xf32>
    %102 = arith.index_cast %c2_i32 : i32 to index
    %c0_57 = arith.constant 0 : index
    %103 = vector.load %arg12[%102, %c0_57] : memref<8x64xf32, #tpu.memory_space<vmem>>, vector<1x32xf32>
    tpu.vector_store %arg12[%102, %c0_57], %101 {strides = array<i32>} : memref<8x64xf32, #tpu.memory_space<vmem>>, vector<1x32xf32>,
    %104 = vector.extract_strided_slice %100 {offsets = [0, 32], sizes = [1, 32], strides = [1, 1]} : vector<1x64xf32> to vector<1x32xf32>
    %c7_i32_58 = arith.constant 7 : i32
    %105 = arith.subi %c7_i32_58, %c2_i32 : i32
    %106 = arith.index_cast %105 : i32 to index
    %c32_59 = arith.constant 32 : index
    %107 = vector.load %arg12[%106, %c32_59] : memref<8x64xf32, #tpu.memory_space<vmem>>, vector<1x32xf32>
    tpu.vector_store %arg12[%106, %c32_59], %104 {strides = array<i32>} : memref<8x64xf32, #tpu.memory_space<vmem>>, vector<1x32xf32>,
    %c3_i32 = arith.constant 3 : i32
    %108 = arith.index_cast %c3_i32 : i32 to index
    %c0_60 = arith.constant 0 : index
    %109 = vector.load %arg11[%108, %c0_60] : memref<8x256xf32, #tpu.memory_space<vmem>>, vector<1x256xf32>
    %c0_61 = arith.constant 0 : index
    %c0_62 = arith.constant 0 : index
    %110 = vector.load %arg2[%c0_61, %c0_62] : memref<64x256xf32, #tpu.memory_space<vmem>>, vector<64x256xf32>
    %cst_63 = arith.constant dense<0.000000e+00> : vector<1x256xf32>
    %111 = tpu.matmul %100, %110, %cst_63 {dimension_numbers = #tpu.dot_dimension_numbers<[1], [0], [0], [1], [0, 0, 1, 1], [], []>} : vector<1x64xf32>, vector<64x256xf32>, vector<1x256xf32> -> vector<1x256xf32>
    %112 = arith.addf %109, %111 : vector<1x256xf32>
    %113 = arith.negf %112 : vector<1x256xf32>
    %114 = math.exp %113 : vector<1x256xf32>
    %cst_64 = arith.constant 1.000000e+00 : f32
    %115 = vector.broadcast %cst_64 : f32 to vector<1x256xf32>
    %116 = arith.addf %115, %114 : vector<1x256xf32>
    %117 = arith.divf %115, %116 : vector<1x256xf32>
    %118 = vector.extract_strided_slice %112 {offsets = [0, 128], sizes = [1, 64], strides = [1, 1]} : vector<1x256xf32> to vector<1x64xf32>
    %119 = math.tanh %118 : vector<1x64xf32>
    %120 = vector.extract_strided_slice %117 {offsets = [0, 64], sizes = [1, 64], strides = [1, 1]} : vector<1x256xf32> to vector<1x64xf32>
    %121 = arith.mulf %120, %97 : vector<1x64xf32>
    %122 = vector.extract_strided_slice %117 {offsets = [0, 0], sizes = [1, 64], strides = [1, 1]} : vector<1x256xf32> to vector<1x64xf32>
    %123 = arith.mulf %122, %119 : vector<1x64xf32>
    %124 = arith.addf %121, %123 : vector<1x64xf32>
    %125 = vector.extract_strided_slice %117 {offsets = [0, 192], sizes = [1, 64], strides = [1, 1]} : vector<1x256xf32> to vector<1x64xf32>
    %126 = math.tanh %124 : vector<1x64xf32>
    %127 = arith.mulf %125, %126 : vector<1x64xf32>
    %128 = vector.extract_strided_slice %127 {offsets = [0, 0], sizes = [1, 32], strides = [1, 1]} : vector<1x64xf32> to vector<1x32xf32>
    %129 = arith.index_cast %c3_i32 : i32 to index
    %c0_65 = arith.constant 0 : index
    %130 = vector.load %arg12[%129, %c0_65] : memref<8x64xf32, #tpu.memory_space<vmem>>, vector<1x32xf32>
    tpu.vector_store %arg12[%129, %c0_65], %128 {strides = array<i32>} : memref<8x64xf32, #tpu.memory_space<vmem>>, vector<1x32xf32>,
    %131 = vector.extract_strided_slice %127 {offsets = [0, 32], sizes = [1, 32], strides = [1, 1]} : vector<1x64xf32> to vector<1x32xf32>
    %c7_i32_66 = arith.constant 7 : i32
    %132 = arith.subi %c7_i32_66, %c3_i32 : i32
    %133 = arith.index_cast %132 : i32 to index
    %c32_67 = arith.constant 32 : index
    %134 = vector.load %arg12[%133, %c32_67] : memref<8x64xf32, #tpu.memory_space<vmem>>, vector<1x32xf32>
    tpu.vector_store %arg12[%133, %c32_67], %131 {strides = array<i32>} : memref<8x64xf32, #tpu.memory_space<vmem>>, vector<1x32xf32>,
    %c4_i32 = arith.constant 4 : i32
    %135 = arith.index_cast %c4_i32 : i32 to index
    %c0_68 = arith.constant 0 : index
    %136 = vector.load %arg11[%135, %c0_68] : memref<8x256xf32, #tpu.memory_space<vmem>>, vector<1x256xf32>
    %c0_69 = arith.constant 0 : index
    %c0_70 = arith.constant 0 : index
    %137 = vector.load %arg2[%c0_69, %c0_70] : memref<64x256xf32, #tpu.memory_space<vmem>>, vector<64x256xf32>
    %cst_71 = arith.constant dense<0.000000e+00> : vector<1x256xf32>
    %138 = tpu.matmul %127, %137, %cst_71 {dimension_numbers = #tpu.dot_dimension_numbers<[1], [0], [0], [1], [0, 0, 1, 1], [], []>} : vector<1x64xf32>, vector<64x256xf32>, vector<1x256xf32> -> vector<1x256xf32>
    %139 = arith.addf %136, %138 : vector<1x256xf32>
    %140 = arith.negf %139 : vector<1x256xf32>
    %141 = math.exp %140 : vector<1x256xf32>
    %cst_72 = arith.constant 1.000000e+00 : f32
    %142 = vector.broadcast %cst_72 : f32 to vector<1x256xf32>
    %143 = arith.addf %142, %141 : vector<1x256xf32>
    %144 = arith.divf %142, %143 : vector<1x256xf32>
    %145 = vector.extract_strided_slice %139 {offsets = [0, 128], sizes = [1, 64], strides = [1, 1]} : vector<1x256xf32> to vector<1x64xf32>
    %146 = math.tanh %145 : vector<1x64xf32>
    %147 = vector.extract_strided_slice %144 {offsets = [0, 64], sizes = [1, 64], strides = [1, 1]} : vector<1x256xf32> to vector<1x64xf32>
    %148 = arith.mulf %147, %124 : vector<1x64xf32>
    %149 = vector.extract_strided_slice %144 {offsets = [0, 0], sizes = [1, 64], strides = [1, 1]} : vector<1x256xf32> to vector<1x64xf32>
    %150 = arith.mulf %149, %146 : vector<1x64xf32>
    %151 = arith.addf %148, %150 : vector<1x64xf32>
    %152 = vector.extract_strided_slice %144 {offsets = [0, 192], sizes = [1, 64], strides = [1, 1]} : vector<1x256xf32> to vector<1x64xf32>
    %153 = math.tanh %151 : vector<1x64xf32>
    %154 = arith.mulf %152, %153 : vector<1x64xf32>
    %155 = vector.extract_strided_slice %154 {offsets = [0, 0], sizes = [1, 32], strides = [1, 1]} : vector<1x64xf32> to vector<1x32xf32>
    %156 = arith.index_cast %c4_i32 : i32 to index
    %c0_73 = arith.constant 0 : index
    %157 = vector.load %arg12[%156, %c0_73] : memref<8x64xf32, #tpu.memory_space<vmem>>, vector<1x32xf32>
    tpu.vector_store %arg12[%156, %c0_73], %155 {strides = array<i32>} : memref<8x64xf32, #tpu.memory_space<vmem>>, vector<1x32xf32>,
    %158 = vector.extract_strided_slice %154 {offsets = [0, 32], sizes = [1, 32], strides = [1, 1]} : vector<1x64xf32> to vector<1x32xf32>
    %c7_i32_74 = arith.constant 7 : i32
    %159 = arith.subi %c7_i32_74, %c4_i32 : i32
    %160 = arith.index_cast %159 : i32 to index
    %c32_75 = arith.constant 32 : index
    %161 = vector.load %arg12[%160, %c32_75] : memref<8x64xf32, #tpu.memory_space<vmem>>, vector<1x32xf32>
    tpu.vector_store %arg12[%160, %c32_75], %158 {strides = array<i32>} : memref<8x64xf32, #tpu.memory_space<vmem>>, vector<1x32xf32>,
    %c5_i32 = arith.constant 5 : i32
    %162 = arith.index_cast %c5_i32 : i32 to index
    %c0_76 = arith.constant 0 : index
    %163 = vector.load %arg11[%162, %c0_76] : memref<8x256xf32, #tpu.memory_space<vmem>>, vector<1x256xf32>
    %c0_77 = arith.constant 0 : index
    %c0_78 = arith.constant 0 : index
    %164 = vector.load %arg2[%c0_77, %c0_78] : memref<64x256xf32, #tpu.memory_space<vmem>>, vector<64x256xf32>
    %cst_79 = arith.constant dense<0.000000e+00> : vector<1x256xf32>
    %165 = tpu.matmul %154, %164, %cst_79 {dimension_numbers = #tpu.dot_dimension_numbers<[1], [0], [0], [1], [0, 0, 1, 1], [], []>} : vector<1x64xf32>, vector<64x256xf32>, vector<1x256xf32> -> vector<1x256xf32>
    %166 = arith.addf %163, %165 : vector<1x256xf32>
    %167 = arith.negf %166 : vector<1x256xf32>
    %168 = math.exp %167 : vector<1x256xf32>
    %cst_80 = arith.constant 1.000000e+00 : f32
    %169 = vector.broadcast %cst_80 : f32 to vector<1x256xf32>
    %170 = arith.addf %169, %168 : vector<1x256xf32>
    %171 = arith.divf %169, %170 : vector<1x256xf32>
    %172 = vector.extract_strided_slice %166 {offsets = [0, 128], sizes = [1, 64], strides = [1, 1]} : vector<1x256xf32> to vector<1x64xf32>
    %173 = math.tanh %172 : vector<1x64xf32>
    %174 = vector.extract_strided_slice %171 {offsets = [0, 64], sizes = [1, 64], strides = [1, 1]} : vector<1x256xf32> to vector<1x64xf32>
    %175 = arith.mulf %174, %151 : vector<1x64xf32>
    %176 = vector.extract_strided_slice %171 {offsets = [0, 0], sizes = [1, 64], strides = [1, 1]} : vector<1x256xf32> to vector<1x64xf32>
    %177 = arith.mulf %176, %173 : vector<1x64xf32>
    %178 = arith.addf %175, %177 : vector<1x64xf32>
    %179 = vector.extract_strided_slice %171 {offsets = [0, 192], sizes = [1, 64], strides = [1, 1]} : vector<1x256xf32> to vector<1x64xf32>
    %180 = math.tanh %178 : vector<1x64xf32>
    %181 = arith.mulf %179, %180 : vector<1x64xf32>
    %182 = vector.extract_strided_slice %181 {offsets = [0, 0], sizes = [1, 32], strides = [1, 1]} : vector<1x64xf32> to vector<1x32xf32>
    %183 = arith.index_cast %c5_i32 : i32 to index
    %c0_81 = arith.constant 0 : index
    %184 = vector.load %arg12[%183, %c0_81] : memref<8x64xf32, #tpu.memory_space<vmem>>, vector<1x32xf32>
    tpu.vector_store %arg12[%183, %c0_81], %182 {strides = array<i32>} : memref<8x64xf32, #tpu.memory_space<vmem>>, vector<1x32xf32>,
    %185 = vector.extract_strided_slice %181 {offsets = [0, 32], sizes = [1, 32], strides = [1, 1]} : vector<1x64xf32> to vector<1x32xf32>
    %c7_i32_82 = arith.constant 7 : i32
    %186 = arith.subi %c7_i32_82, %c5_i32 : i32
    %187 = arith.index_cast %186 : i32 to index
    %c32_83 = arith.constant 32 : index
    %188 = vector.load %arg12[%187, %c32_83] : memref<8x64xf32, #tpu.memory_space<vmem>>, vector<1x32xf32>
    tpu.vector_store %arg12[%187, %c32_83], %185 {strides = array<i32>} : memref<8x64xf32, #tpu.memory_space<vmem>>, vector<1x32xf32>,
    %c6_i32 = arith.constant 6 : i32
    %189 = arith.index_cast %c6_i32 : i32 to index
    %c0_84 = arith.constant 0 : index
    %190 = vector.load %arg11[%189, %c0_84] : memref<8x256xf32, #tpu.memory_space<vmem>>, vector<1x256xf32>
    %c0_85 = arith.constant 0 : index
    %c0_86 = arith.constant 0 : index
    %191 = vector.load %arg2[%c0_85, %c0_86] : memref<64x256xf32, #tpu.memory_space<vmem>>, vector<64x256xf32>
    %cst_87 = arith.constant dense<0.000000e+00> : vector<1x256xf32>
    %192 = tpu.matmul %181, %191, %cst_87 {dimension_numbers = #tpu.dot_dimension_numbers<[1], [0], [0], [1], [0, 0, 1, 1], [], []>} : vector<1x64xf32>, vector<64x256xf32>, vector<1x256xf32> -> vector<1x256xf32>
    %193 = arith.addf %190, %192 : vector<1x256xf32>
    %194 = arith.negf %193 : vector<1x256xf32>
    %195 = math.exp %194 : vector<1x256xf32>
    %cst_88 = arith.constant 1.000000e+00 : f32
    %196 = vector.broadcast %cst_88 : f32 to vector<1x256xf32>
    %197 = arith.addf %196, %195 : vector<1x256xf32>
    %198 = arith.divf %196, %197 : vector<1x256xf32>
    %199 = vector.extract_strided_slice %193 {offsets = [0, 128], sizes = [1, 64], strides = [1, 1]} : vector<1x256xf32> to vector<1x64xf32>
    %200 = math.tanh %199 : vector<1x64xf32>
    %201 = vector.extract_strided_slice %198 {offsets = [0, 64], sizes = [1, 64], strides = [1, 1]} : vector<1x256xf32> to vector<1x64xf32>
    %202 = arith.mulf %201, %178 : vector<1x64xf32>
    %203 = vector.extract_strided_slice %198 {offsets = [0, 0], sizes = [1, 64], strides = [1, 1]} : vector<1x256xf32> to vector<1x64xf32>
    %204 = arith.mulf %203, %200 : vector<1x64xf32>
    %205 = arith.addf %202, %204 : vector<1x64xf32>
    %206 = vector.extract_strided_slice %198 {offsets = [0, 192], sizes = [1, 64], strides = [1, 1]} : vector<1x256xf32> to vector<1x64xf32>
    %207 = math.tanh %205 : vector<1x64xf32>
    %208 = arith.mulf %206, %207 : vector<1x64xf32>
    %209 = vector.extract_strided_slice %208 {offsets = [0, 0], sizes = [1, 32], strides = [1, 1]} : vector<1x64xf32> to vector<1x32xf32>
    %210 = arith.index_cast %c6_i32 : i32 to index
    %c0_89 = arith.constant 0 : index
    %211 = vector.load %arg12[%210, %c0_89] : memref<8x64xf32, #tpu.memory_space<vmem>>, vector<1x32xf32>
    tpu.vector_store %arg12[%210, %c0_89], %209 {strides = array<i32>} : memref<8x64xf32, #tpu.memory_space<vmem>>, vector<1x32xf32>,
    %212 = vector.extract_strided_slice %208 {offsets = [0, 32], sizes = [1, 32], strides = [1, 1]} : vector<1x64xf32> to vector<1x32xf32>
    %c7_i32_90 = arith.constant 7 : i32
    %213 = arith.subi %c7_i32_90, %c6_i32 : i32
    %214 = arith.index_cast %213 : i32 to index
    %c32_91 = arith.constant 32 : index
    %215 = vector.load %arg12[%214, %c32_91] : memref<8x64xf32, #tpu.memory_space<vmem>>, vector<1x32xf32>
    tpu.vector_store %arg12[%214, %c32_91], %212 {strides = array<i32>} : memref<8x64xf32, #tpu.memory_space<vmem>>, vector<1x32xf32>,
    %c7_i32_92 = arith.constant 7 : i32
    %216 = arith.index_cast %c7_i32_92 : i32 to index
    %c0_93 = arith.constant 0 : index
    %217 = vector.load %arg11[%216, %c0_93] : memref<8x256xf32, #tpu.memory_space<vmem>>, vector<1x256xf32>
    %c0_94 = arith.constant 0 : index
    %c0_95 = arith.constant 0 : index
    %218 = vector.load %arg2[%c0_94, %c0_95] : memref<64x256xf32, #tpu.memory_space<vmem>>, vector<64x256xf32>
    %cst_96 = arith.constant dense<0.000000e+00> : vector<1x256xf32>
    %219 = tpu.matmul %208, %218, %cst_96 {dimension_numbers = #tpu.dot_dimension_numbers<[1], [0], [0], [1], [0, 0, 1, 1], [], []>} : vector<1x64xf32>, vector<64x256xf32>, vector<1x256xf32> -> vector<1x256xf32>
    %220 = arith.addf %217, %219 : vector<1x256xf32>
    %221 = arith.negf %220 : vector<1x256xf32>
    %222 = math.exp %221 : vector<1x256xf32>
    %cst_97 = arith.constant 1.000000e+00 : f32
    %223 = vector.broadcast %cst_97 : f32 to vector<1x256xf32>
    %224 = arith.addf %223, %222 : vector<1x256xf32>
    %225 = arith.divf %223, %224 : vector<1x256xf32>
    %226 = vector.extract_strided_slice %220 {offsets = [0, 128], sizes = [1, 64], strides = [1, 1]} : vector<1x256xf32> to vector<1x64xf32>
    %227 = math.tanh %226 : vector<1x64xf32>
    %228 = vector.extract_strided_slice %225 {offsets = [0, 64], sizes = [1, 64], strides = [1, 1]} : vector<1x256xf32> to vector<1x64xf32>
    %229 = arith.mulf %228, %205 : vector<1x64xf32>
    %230 = vector.extract_strided_slice %225 {offsets = [0, 0], sizes = [1, 64], strides = [1, 1]} : vector<1x256xf32> to vector<1x64xf32>
    %231 = arith.mulf %230, %227 : vector<1x64xf32>
    %232 = arith.addf %229, %231 : vector<1x64xf32>
    %233 = vector.extract_strided_slice %225 {offsets = [0, 192], sizes = [1, 64], strides = [1, 1]} : vector<1x256xf32> to vector<1x64xf32>
    %234 = math.tanh %232 : vector<1x64xf32>
    %235 = arith.mulf %233, %234 : vector<1x64xf32>
    %236 = vector.extract_strided_slice %235 {offsets = [0, 0], sizes = [1, 32], strides = [1, 1]} : vector<1x64xf32> to vector<1x32xf32>
    %237 = arith.index_cast %c7_i32_92 : i32 to index
    %c0_98 = arith.constant 0 : index
    %238 = vector.load %arg12[%237, %c0_98] : memref<8x64xf32, #tpu.memory_space<vmem>>, vector<1x32xf32>
    tpu.vector_store %arg12[%237, %c0_98], %236 {strides = array<i32>} : memref<8x64xf32, #tpu.memory_space<vmem>>, vector<1x32xf32>,
    %239 = vector.extract_strided_slice %235 {offsets = [0, 32], sizes = [1, 32], strides = [1, 1]} : vector<1x64xf32> to vector<1x32xf32>
    %c7_i32_99 = arith.constant 7 : i32
    %240 = arith.subi %c7_i32_99, %c7_i32_92 : i32
    %241 = arith.index_cast %240 : i32 to index
    %c32_100 = arith.constant 32 : index
    %242 = vector.load %arg12[%241, %c32_100] : memref<8x64xf32, #tpu.memory_space<vmem>>, vector<1x32xf32>
    tpu.vector_store %arg12[%241, %c32_100], %239 {strides = array<i32>} : memref<8x64xf32, #tpu.memory_space<vmem>>, vector<1x32xf32>,
    %c8_i32 = arith.constant 8 : i32
    %243 = vector.extract_strided_slice %235 {offsets = [0, 32], sizes = [1, 32], strides = [1, 1]} : vector<1x64xf32> to vector<1x32xf32>
    %c0_101 = arith.constant 0 : index
    %c0_102 = arith.constant 0 : index
    %244 = vector.load %arg12[%c0_101, %c0_102] : memref<8x64xf32, #tpu.memory_space<vmem>>, vector<8x64xf32>
    %c0_103 = arith.constant 0 : index
    %c0_104 = arith.constant 0 : index
    %245 = vector.load %arg4[%c0_103, %c0_104] : memref<64x128xf32, #tpu.memory_space<vmem>>, vector<64x128xf32>
    %cst_105 = arith.constant dense<0.000000e+00> : vector<8x128xf32>
    %246 = tpu.matmul %244, %245, %cst_105 {dimension_numbers = #tpu.dot_dimension_numbers<[1], [0], [0], [1], [0, 0, 1, 1], [], []>} : vector<8x64xf32>, vector<64x128xf32>, vector<8x128xf32> -> vector<8x128xf32>
    %c0_106 = arith.constant 0 : index
    %c0_107 = arith.constant 0 : index
    %247 = vector.load %arg6[%c0_106, %c0_107] : memref<1x128xf32, #tpu.memory_space<vmem>>, vector<1x128xf32>
    %248 = vector.broadcast %247 : vector<1x128xf32> to vector<8x128xf32>
    %249 = arith.addf %246, %248 : vector<8x128xf32>
    %c0_108 = arith.constant 0 : index
    %c0_109 = arith.constant 0 : index
    %250 = vector.load %arg13[%c0_108, %c0_109] : memref<8x128xf32, #tpu.memory_space<vmem>>, vector<8x128xf32>
    tpu.vector_store %arg13[%c0_108, %c0_109], %249 {strides = array<i32>} : memref<8x128xf32, #tpu.memory_space<vmem>>, vector<8x128xf32>,
    %cst_110 = arith.constant 0.000000e+00 : f32
    %251 = vector.broadcast %cst_110 : f32 to vector<1x32xf32>
    %cst_111 = arith.constant 0.000000e+00 : f32
    %252 = vector.broadcast %cst_111 : f32 to vector<1x32xf32>
    %c0_i32_112 = arith.constant 0 : i32
    %253 = arith.index_cast %c0_i32_112 : i32 to index
    %c0_113 = arith.constant 0 : index
    %254 = vector.load %arg13[%253, %c0_113] : memref<8x128xf32, #tpu.memory_space<vmem>>, vector<1x128xf32>
    %c0_114 = arith.constant 0 : index
    %c0_115 = arith.constant 0 : index
    %255 = vector.load %arg5[%c0_114, %c0_115] : memref<32x128xf32, #tpu.memory_space<vmem>>, vector<32x128xf32>
    %cst_116 = arith.constant dense<0.000000e+00> : vector<1x128xf32>
    %256 = tpu.matmul %251, %255, %cst_116 {dimension_numbers = #tpu.dot_dimension_numbers<[1], [0], [0], [1], [0, 0, 1, 1], [], []>} : vector<1x32xf32>, vector<32x128xf32>, vector<1x128xf32> -> vector<1x128xf32>
    %257 = arith.addf %254, %256 : vector<1x128xf32>
    %258 = arith.negf %257 : vector<1x128xf32>
    %259 = math.exp %258 : vector<1x128xf32>
    %cst_117 = arith.constant 1.000000e+00 : f32
    %260 = vector.broadcast %cst_117 : f32 to vector<1x128xf32>
    %261 = arith.addf %260, %259 : vector<1x128xf32>
    %262 = arith.divf %260, %261 : vector<1x128xf32>
    %263 = vector.extract_strided_slice %257 {offsets = [0, 64], sizes = [1, 32], strides = [1, 1]} : vector<1x128xf32> to vector<1x32xf32>
    %264 = math.tanh %263 : vector<1x32xf32>
    %265 = vector.extract_strided_slice %262 {offsets = [0, 32], sizes = [1, 32], strides = [1, 1]} : vector<1x128xf32> to vector<1x32xf32>
    %266 = arith.mulf %265, %252 : vector<1x32xf32>
    %267 = vector.extract_strided_slice %262 {offsets = [0, 0], sizes = [1, 32], strides = [1, 1]} : vector<1x128xf32> to vector<1x32xf32>
    %268 = arith.mulf %267, %264 : vector<1x32xf32>
    %269 = arith.addf %266, %268 : vector<1x32xf32>
    %270 = vector.extract_strided_slice %262 {offsets = [0, 96], sizes = [1, 32], strides = [1, 1]} : vector<1x128xf32> to vector<1x32xf32>
    %271 = math.tanh %269 : vector<1x32xf32>
    %272 = arith.mulf %270, %271 : vector<1x32xf32>
    %c1_i32_118 = arith.constant 1 : i32
    %273 = arith.index_cast %c1_i32_118 : i32 to index
    %c0_119 = arith.constant 0 : index
    %274 = vector.load %arg13[%273, %c0_119] : memref<8x128xf32, #tpu.memory_space<vmem>>, vector<1x128xf32>
    %c0_120 = arith.constant 0 : index
    %c0_121 = arith.constant 0 : index
    %275 = vector.load %arg5[%c0_120, %c0_121] : memref<32x128xf32, #tpu.memory_space<vmem>>, vector<32x128xf32>
    %cst_122 = arith.constant dense<0.000000e+00> : vector<1x128xf32>
    %276 = tpu.matmul %272, %275, %cst_122 {dimension_numbers = #tpu.dot_dimension_numbers<[1], [0], [0], [1], [0, 0, 1, 1], [], []>} : vector<1x32xf32>, vector<32x128xf32>, vector<1x128xf32> -> vector<1x128xf32>
    %277 = arith.addf %274, %276 : vector<1x128xf32>
    %278 = arith.negf %277 : vector<1x128xf32>
    %279 = math.exp %278 : vector<1x128xf32>
    %cst_123 = arith.constant 1.000000e+00 : f32
    %280 = vector.broadcast %cst_123 : f32 to vector<1x128xf32>
    %281 = arith.addf %280, %279 : vector<1x128xf32>
    %282 = arith.divf %280, %281 : vector<1x128xf32>
    %283 = vector.extract_strided_slice %277 {offsets = [0, 64], sizes = [1, 32], strides = [1, 1]} : vector<1x128xf32> to vector<1x32xf32>
    %284 = math.tanh %283 : vector<1x32xf32>
    %285 = vector.extract_strided_slice %282 {offsets = [0, 32], sizes = [1, 32], strides = [1, 1]} : vector<1x128xf32> to vector<1x32xf32>
    %286 = arith.mulf %285, %269 : vector<1x32xf32>
    %287 = vector.extract_strided_slice %282 {offsets = [0, 0], sizes = [1, 32], strides = [1, 1]} : vector<1x128xf32> to vector<1x32xf32>
    %288 = arith.mulf %287, %284 : vector<1x32xf32>
    %289 = arith.addf %286, %288 : vector<1x32xf32>
    %290 = vector.extract_strided_slice %282 {offsets = [0, 96], sizes = [1, 32], strides = [1, 1]} : vector<1x128xf32> to vector<1x32xf32>
    %291 = math.tanh %289 : vector<1x32xf32>
    %292 = arith.mulf %290, %291 : vector<1x32xf32>
    %c2_i32_124 = arith.constant 2 : i32
    %293 = arith.index_cast %c2_i32_124 : i32 to index
    %c0_125 = arith.constant 0 : index
    %294 = vector.load %arg13[%293, %c0_125] : memref<8x128xf32, #tpu.memory_space<vmem>>, vector<1x128xf32>
    %c0_126 = arith.constant 0 : index
    %c0_127 = arith.constant 0 : index
    %295 = vector.load %arg5[%c0_126, %c0_127] : memref<32x128xf32, #tpu.memory_space<vmem>>, vector<32x128xf32>
    %cst_128 = arith.constant dense<0.000000e+00> : vector<1x128xf32>
    %296 = tpu.matmul %292, %295, %cst_128 {dimension_numbers = #tpu.dot_dimension_numbers<[1], [0], [0], [1], [0, 0, 1, 1], [], []>} : vector<1x32xf32>, vector<32x128xf32>, vector<1x128xf32> -> vector<1x128xf32>
    %297 = arith.addf %294, %296 : vector<1x128xf32>
    %298 = arith.negf %297 : vector<1x128xf32>
    %299 = math.exp %298 : vector<1x128xf32>
    %cst_129 = arith.constant 1.000000e+00 : f32
    %300 = vector.broadcast %cst_129 : f32 to vector<1x128xf32>
    %301 = arith.addf %300, %299 : vector<1x128xf32>
    %302 = arith.divf %300, %301 : vector<1x128xf32>
    %303 = vector.extract_strided_slice %297 {offsets = [0, 64], sizes = [1, 32], strides = [1, 1]} : vector<1x128xf32> to vector<1x32xf32>
    %304 = math.tanh %303 : vector<1x32xf32>
    %305 = vector.extract_strided_slice %302 {offsets = [0, 32], sizes = [1, 32], strides = [1, 1]} : vector<1x128xf32> to vector<1x32xf32>
    %306 = arith.mulf %305, %289 : vector<1x32xf32>
    %307 = vector.extract_strided_slice %302 {offsets = [0, 0], sizes = [1, 32], strides = [1, 1]} : vector<1x128xf32> to vector<1x32xf32>
    %308 = arith.mulf %307, %304 : vector<1x32xf32>
    %309 = arith.addf %306, %308 : vector<1x32xf32>
    %310 = vector.extract_strided_slice %302 {offsets = [0, 96], sizes = [1, 32], strides = [1, 1]} : vector<1x128xf32> to vector<1x32xf32>
    %311 = math.tanh %309 : vector<1x32xf32>
    %312 = arith.mulf %310, %311 : vector<1x32xf32>
    %c3_i32_130 = arith.constant 3 : i32
    %313 = arith.index_cast %c3_i32_130 : i32 to index
    %c0_131 = arith.constant 0 : index
    %314 = vector.load %arg13[%313, %c0_131] : memref<8x128xf32, #tpu.memory_space<vmem>>, vector<1x128xf32>
    %c0_132 = arith.constant 0 : index
    %c0_133 = arith.constant 0 : index
    %315 = vector.load %arg5[%c0_132, %c0_133] : memref<32x128xf32, #tpu.memory_space<vmem>>, vector<32x128xf32>
    %cst_134 = arith.constant dense<0.000000e+00> : vector<1x128xf32>
    %316 = tpu.matmul %312, %315, %cst_134 {dimension_numbers = #tpu.dot_dimension_numbers<[1], [0], [0], [1], [0, 0, 1, 1], [], []>} : vector<1x32xf32>, vector<32x128xf32>, vector<1x128xf32> -> vector<1x128xf32>
    %317 = arith.addf %314, %316 : vector<1x128xf32>
    %318 = arith.negf %317 : vector<1x128xf32>
    %319 = math.exp %318 : vector<1x128xf32>
    %cst_135 = arith.constant 1.000000e+00 : f32
    %320 = vector.broadcast %cst_135 : f32 to vector<1x128xf32>
    %321 = arith.addf %320, %319 : vector<1x128xf32>
    %322 = arith.divf %320, %321 : vector<1x128xf32>
    %323 = vector.extract_strided_slice %317 {offsets = [0, 64], sizes = [1, 32], strides = [1, 1]} : vector<1x128xf32> to vector<1x32xf32>
    %324 = math.tanh %323 : vector<1x32xf32>
    %325 = vector.extract_strided_slice %322 {offsets = [0, 32], sizes = [1, 32], strides = [1, 1]} : vector<1x128xf32> to vector<1x32xf32>
    %326 = arith.mulf %325, %309 : vector<1x32xf32>
    %327 = vector.extract_strided_slice %322 {offsets = [0, 0], sizes = [1, 32], strides = [1, 1]} : vector<1x128xf32> to vector<1x32xf32>
    %328 = arith.mulf %327, %324 : vector<1x32xf32>
    %329 = arith.addf %326, %328 : vector<1x32xf32>
    %330 = vector.extract_strided_slice %322 {offsets = [0, 96], sizes = [1, 32], strides = [1, 1]} : vector<1x128xf32> to vector<1x32xf32>
    %331 = math.tanh %329 : vector<1x32xf32>
    %332 = arith.mulf %330, %331 : vector<1x32xf32>
    %c4_i32_136 = arith.constant 4 : i32
    %333 = arith.index_cast %c4_i32_136 : i32 to index
    %c0_137 = arith.constant 0 : index
    %334 = vector.load %arg13[%333, %c0_137] : memref<8x128xf32, #tpu.memory_space<vmem>>, vector<1x128xf32>
    %c0_138 = arith.constant 0 : index
    %c0_139 = arith.constant 0 : index
    %335 = vector.load %arg5[%c0_138, %c0_139] : memref<32x128xf32, #tpu.memory_space<vmem>>, vector<32x128xf32>
    %cst_140 = arith.constant dense<0.000000e+00> : vector<1x128xf32>
    %336 = tpu.matmul %332, %335, %cst_140 {dimension_numbers = #tpu.dot_dimension_numbers<[1], [0], [0], [1], [0, 0, 1, 1], [], []>} : vector<1x32xf32>, vector<32x128xf32>, vector<1x128xf32> -> vector<1x128xf32>
    %337 = arith.addf %334, %336 : vector<1x128xf32>
    %338 = arith.negf %337 : vector<1x128xf32>
    %339 = math.exp %338 : vector<1x128xf32>
    %cst_141 = arith.constant 1.000000e+00 : f32
    %340 = vector.broadcast %cst_141 : f32 to vector<1x128xf32>
    %341 = arith.addf %340, %339 : vector<1x128xf32>
    %342 = arith.divf %340, %341 : vector<1x128xf32>
    %343 = vector.extract_strided_slice %337 {offsets = [0, 64], sizes = [1, 32], strides = [1, 1]} : vector<1x128xf32> to vector<1x32xf32>
    %344 = math.tanh %343 : vector<1x32xf32>
    %345 = vector.extract_strided_slice %342 {offsets = [0, 32], sizes = [1, 32], strides = [1, 1]} : vector<1x128xf32> to vector<1x32xf32>
    %346 = arith.mulf %345, %329 : vector<1x32xf32>
    %347 = vector.extract_strided_slice %342 {offsets = [0, 0], sizes = [1, 32], strides = [1, 1]} : vector<1x128xf32> to vector<1x32xf32>
    %348 = arith.mulf %347, %344 : vector<1x32xf32>
    %349 = arith.addf %346, %348 : vector<1x32xf32>
    %350 = vector.extract_strided_slice %342 {offsets = [0, 96], sizes = [1, 32], strides = [1, 1]} : vector<1x128xf32> to vector<1x32xf32>
    %351 = math.tanh %349 : vector<1x32xf32>
    %352 = arith.mulf %350, %351 : vector<1x32xf32>
    %c5_i32_142 = arith.constant 5 : i32
    %353 = arith.index_cast %c5_i32_142 : i32 to index
    %c0_143 = arith.constant 0 : index
    %354 = vector.load %arg13[%353, %c0_143] : memref<8x128xf32, #tpu.memory_space<vmem>>, vector<1x128xf32>
    %c0_144 = arith.constant 0 : index
    %c0_145 = arith.constant 0 : index
    %355 = vector.load %arg5[%c0_144, %c0_145] : memref<32x128xf32, #tpu.memory_space<vmem>>, vector<32x128xf32>
    %cst_146 = arith.constant dense<0.000000e+00> : vector<1x128xf32>
    %356 = tpu.matmul %352, %355, %cst_146 {dimension_numbers = #tpu.dot_dimension_numbers<[1], [0], [0], [1], [0, 0, 1, 1], [], []>} : vector<1x32xf32>, vector<32x128xf32>, vector<1x128xf32> -> vector<1x128xf32>
    %357 = arith.addf %354, %356 : vector<1x128xf32>
    %358 = arith.negf %357 : vector<1x128xf32>
    %359 = math.exp %358 : vector<1x128xf32>
    %cst_147 = arith.constant 1.000000e+00 : f32
    %360 = vector.broadcast %cst_147 : f32 to vector<1x128xf32>
    %361 = arith.addf %360, %359 : vector<1x128xf32>
    %362 = arith.divf %360, %361 : vector<1x128xf32>
    %363 = vector.extract_strided_slice %357 {offsets = [0, 64], sizes = [1, 32], strides = [1, 1]} : vector<1x128xf32> to vector<1x32xf32>
    %364 = math.tanh %363 : vector<1x32xf32>
    %365 = vector.extract_strided_slice %362 {offsets = [0, 32], sizes = [1, 32], strides = [1, 1]} : vector<1x128xf32> to vector<1x32xf32>
    %366 = arith.mulf %365, %349 : vector<1x32xf32>
    %367 = vector.extract_strided_slice %362 {offsets = [0, 0], sizes = [1, 32], strides = [1, 1]} : vector<1x128xf32> to vector<1x32xf32>
    %368 = arith.mulf %367, %364 : vector<1x32xf32>
    %369 = arith.addf %366, %368 : vector<1x32xf32>
    %370 = vector.extract_strided_slice %362 {offsets = [0, 96], sizes = [1, 32], strides = [1, 1]} : vector<1x128xf32> to vector<1x32xf32>
    %371 = math.tanh %369 : vector<1x32xf32>
    %372 = arith.mulf %370, %371 : vector<1x32xf32>
    %c6_i32_148 = arith.constant 6 : i32
    %373 = arith.index_cast %c6_i32_148 : i32 to index
    %c0_149 = arith.constant 0 : index
    %374 = vector.load %arg13[%373, %c0_149] : memref<8x128xf32, #tpu.memory_space<vmem>>, vector<1x128xf32>
    %c0_150 = arith.constant 0 : index
    %c0_151 = arith.constant 0 : index
    %375 = vector.load %arg5[%c0_150, %c0_151] : memref<32x128xf32, #tpu.memory_space<vmem>>, vector<32x128xf32>
    %cst_152 = arith.constant dense<0.000000e+00> : vector<1x128xf32>
    %376 = tpu.matmul %372, %375, %cst_152 {dimension_numbers = #tpu.dot_dimension_numbers<[1], [0], [0], [1], [0, 0, 1, 1], [], []>} : vector<1x32xf32>, vector<32x128xf32>, vector<1x128xf32> -> vector<1x128xf32>
    %377 = arith.addf %374, %376 : vector<1x128xf32>
    %378 = arith.negf %377 : vector<1x128xf32>
    %379 = math.exp %378 : vector<1x128xf32>
    %cst_153 = arith.constant 1.000000e+00 : f32
    %380 = vector.broadcast %cst_153 : f32 to vector<1x128xf32>
    %381 = arith.addf %380, %379 : vector<1x128xf32>
    %382 = arith.divf %380, %381 : vector<1x128xf32>
    %383 = vector.extract_strided_slice %377 {offsets = [0, 64], sizes = [1, 32], strides = [1, 1]} : vector<1x128xf32> to vector<1x32xf32>
    %384 = math.tanh %383 : vector<1x32xf32>
    %385 = vector.extract_strided_slice %382 {offsets = [0, 32], sizes = [1, 32], strides = [1, 1]} : vector<1x128xf32> to vector<1x32xf32>
    %386 = arith.mulf %385, %369 : vector<1x32xf32>
    %387 = vector.extract_strided_slice %382 {offsets = [0, 0], sizes = [1, 32], strides = [1, 1]} : vector<1x128xf32> to vector<1x32xf32>
    %388 = arith.mulf %387, %384 : vector<1x32xf32>
    %389 = arith.addf %386, %388 : vector<1x32xf32>
    %390 = vector.extract_strided_slice %382 {offsets = [0, 96], sizes = [1, 32], strides = [1, 1]} : vector<1x128xf32> to vector<1x32xf32>
    %391 = math.tanh %389 : vector<1x32xf32>
    %392 = arith.mulf %390, %391 : vector<1x32xf32>
    %c7_i32_154 = arith.constant 7 : i32
    %393 = arith.index_cast %c7_i32_154 : i32 to index
    %c0_155 = arith.constant 0 : index
    %394 = vector.load %arg13[%393, %c0_155] : memref<8x128xf32, #tpu.memory_space<vmem>>, vector<1x128xf32>
    %c0_156 = arith.constant 0 : index
    %c0_157 = arith.constant 0 : index
    %395 = vector.load %arg5[%c0_156, %c0_157] : memref<32x128xf32, #tpu.memory_space<vmem>>, vector<32x128xf32>
    %cst_158 = arith.constant dense<0.000000e+00> : vector<1x128xf32>
    %396 = tpu.matmul %392, %395, %cst_158 {dimension_numbers = #tpu.dot_dimension_numbers<[1], [0], [0], [1], [0, 0, 1, 1], [], []>} : vector<1x32xf32>, vector<32x128xf32>, vector<1x128xf32> -> vector<1x128xf32>
    %397 = arith.addf %394, %396 : vector<1x128xf32>
    %398 = arith.negf %397 : vector<1x128xf32>
    %399 = math.exp %398 : vector<1x128xf32>
    %cst_159 = arith.constant 1.000000e+00 : f32
    %400 = vector.broadcast %cst_159 : f32 to vector<1x128xf32>
    %401 = arith.addf %400, %399 : vector<1x128xf32>
    %402 = arith.divf %400, %401 : vector<1x128xf32>
    %403 = vector.extract_strided_slice %397 {offsets = [0, 64], sizes = [1, 32], strides = [1, 1]} : vector<1x128xf32> to vector<1x32xf32>
    %404 = math.tanh %403 : vector<1x32xf32>
    %405 = vector.extract_strided_slice %402 {offsets = [0, 32], sizes = [1, 32], strides = [1, 1]} : vector<1x128xf32> to vector<1x32xf32>
    %406 = arith.mulf %405, %389 : vector<1x32xf32>
    %407 = vector.extract_strided_slice %402 {offsets = [0, 0], sizes = [1, 32], strides = [1, 1]} : vector<1x128xf32> to vector<1x32xf32>
    %408 = arith.mulf %407, %404 : vector<1x32xf32>
    %409 = arith.addf %406, %408 : vector<1x32xf32>
    %410 = vector.extract_strided_slice %402 {offsets = [0, 96], sizes = [1, 32], strides = [1, 1]} : vector<1x128xf32> to vector<1x32xf32>
    %411 = math.tanh %409 : vector<1x32xf32>
    %412 = arith.mulf %410, %411 : vector<1x32xf32>
    %c8_i32_160 = arith.constant 8 : i32
    %c0_161 = arith.constant 0 : index
    %c0_162 = arith.constant 0 : index
    %413 = vector.load %arg7[%c0_161, %c0_162] : memref<64x4xf32, #tpu.memory_space<vmem>>, vector<32x4xf32>
    %cst_163 = arith.constant dense<0.000000e+00> : vector<1x4xf32>
    %414 = tpu.matmul %243, %413, %cst_163 {dimension_numbers = #tpu.dot_dimension_numbers<[1], [0], [0], [1], [0, 0, 1, 1], [], []>} : vector<1x32xf32>, vector<32x4xf32>, vector<1x4xf32> -> vector<1x4xf32>
    %c32_164 = arith.constant 32 : index
    %c0_165 = arith.constant 0 : index
    %415 = vector.load %arg7[%c32_164, %c0_165] : memref<64x4xf32, #tpu.memory_space<vmem>>, vector<32x4xf32>
    %cst_166 = arith.constant dense<0.000000e+00> : vector<1x4xf32>
    %416 = tpu.matmul %412, %415, %cst_166 {dimension_numbers = #tpu.dot_dimension_numbers<[1], [0], [0], [1], [0, 0, 1, 1], [], []>} : vector<1x32xf32>, vector<32x4xf32>, vector<1x4xf32> -> vector<1x4xf32>
    %417 = arith.addf %414, %416 : vector<1x4xf32>
    %c0_167 = arith.constant 0 : index
    %c0_168 = arith.constant 0 : index
    %418 = vector.load %arg8[%c0_167, %c0_168] : memref<1x4xf32, #tpu.memory_space<vmem>>, vector<1x4xf32>
    %419 = arith.addf %417, %418 : vector<1x4xf32>
    %c0_169 = arith.constant 0 : index
    %c0_170 = arith.constant 0 : index
    %420 = vector.load %arg9[%c0_169, %c0_170] : memref<1x4xf32, #tpu.memory_space<vmem>>, vector<1x4xf32>
    tpu.vector_store %arg9[%c0_169, %c0_170], %419 {strides = array<i32>} : memref<1x4xf32, #tpu.memory_space<vmem>>, vector<1x4xf32>,
    return
  }
}

</mosaic_0001>

<llo_original>
// kernel: rnn_model_forward.1
$region0: #{rnn_model_forward.1}
  #allocation0 [shape = 'u32[]', space=smem, size = 0x4, offset = 0x4, fixed_abs, tag = 'smem constant byte address 0x4 - core index']
  #allocation1 [shape = 'u32[144,128]{1,0:T(1,128)}', space=vmem, size = 0x12000, scoped, tag = 'internal scratch']
  #allocation2 [shape = 'f32[8,64]{1,0:T(8,128)}', space=vmem, size = 0x1000, scoped, tag = 'scratch operand']
  #allocation3 [shape = 'f32[8,256]{1,0:T(8,128)}', space=vmem, size = 0x2000, scoped, tag = 'scratch operand']
  #allocation4 [shape = 'f32[8,64]{1,0:T(8,128)}', space=vmem, size = 0x1000, scoped, tag = 'scratch operand']
  #allocation5 [shape = 'f32[8,128]{1,0:T(8,128)}', space=vmem, size = 0x1000, scoped, tag = 'scratch operand']
  %s0 = inlined_call_operand.vmem [shape: f32[8,32], index: 0, kind: input, shape index: {}]
  %s1 = inlined_call_operand.vmem [shape: f32[64,256], index: 1, kind: input, shape index: {}]
  %s2 = inlined_call_operand.vmem [shape: f32[64,256], index: 2, kind: input, shape index: {}]
  %s3 = inlined_call_operand.vmem [shape: f32[1,256], index: 3, kind: input, shape index: {}]
  %s4 = inlined_call_operand.hbm [shape: f32[64,128], index: 4, kind: input, shape index: {}]
  %s5 = inlined_call_operand.vmem [shape: f32[32,128], index: 5, kind: input, shape index: {}]
  %s6 = inlined_call_operand.vmem [shape: f32[1,128], index: 6, kind: input, shape index: {}]
  %s7 = inlined_call_operand.vmem [shape: f32[64,4], index: 7, kind: input, shape index: {}]
  %s8 = inlined_call_operand.hbm [shape: f32[1,4], index: 8, kind: input, shape index: {}]
  %s9 = inlined_call_operand.hbm [shape: f32[1,4], index: 9, kind: output, shape index: {}]
  %s10 = sld [smem:[#allocation0]]
  $region54: #{rnn_model_forward.1} parent=0
    _
  %s12 = ssub.s32 1, %s10
  %s13 = scalar_select 0, %s12, %s10
  $region1: #{rnn_model_forward.1} parent=0
    #allocation6 [shape = 'u8[32768]{0}', space=vmem, size = 0x8000, scoped, tag = 'input window, operand 4, single buffered']
    #allocation7 [shape = 's32[1]{0}', space=sflag, size = 0x4, scoped, tag = 'scoped memory for rnn_model_forward.1']
    #allocation8 [shape = 's32[1]{0}', space=sflag, size = 0x4, scoped, tag = 'scoped memory for rnn_model_forward.1']
    #allocation9 [shape = 'u8[512]{0}', space=vmem, size = 0x400, scoped, tag = 'input window, operand 8, single buffered']
    #allocation10 [shape = 's32[1]{0}', space=sflag, size = 0x4, scoped, tag = 'scoped memory for rnn_model_forward.1']
    #allocation11 [shape = 'u8[512]{0}', space=vmem, size = 0x400, scoped, tag = 'output window, operand 0, single buffered']
    %14 = vsyncpa [#allocation7], 0
    %15 = vsyncpa [#allocation10], 0
    %16 = vsyncpa [#allocation8], 0
    // Predicated region
    $region2: #{rnn_model_forward.1} parent=1 // pred_check
      _
    $region3: #{rnn_model_forward.1} parent=1 // pred_check_branch
      %18 = sbr.rel (0) target = $region5
    $region4: #{rnn_model_forward.1} parent=1 // pred_region
      _
    $region5: #{rnn_model_forward.1} parent=1 // pred_fallthru
      _
    // Predicated region
    $region6: #{rnn_model_forward.1} parent=1 // pred_check
      _
    $region7: #{rnn_model_forward.1} parent=1 // pred_check_branch
      %20 = sbr.rel (0) target = $region9
    $region8: #{rnn_model_forward.1} parent=1 // pred_region
      _
    $region9: #{rnn_model_forward.1} parent=1 // pred_fallthru
      _
    // Predicated region
    $region10: #{rnn_model_forward.1} parent=1 // pred_check
      _
    $region11: #{rnn_model_forward.1} parent=1 // pred_check_branch
      %22 = sbr.rel (0) target = $region13
    $region12: #{rnn_model_forward.1} parent=1 // pred_region
      _
    $region13: #{rnn_model_forward.1} parent=1 // pred_fallthru
      _
    // Predicated region
    $region14: #{rnn_model_forward.1} parent=1 // pred_check
      _
    $region15: #{rnn_model_forward.1} parent=1 // pred_check_branch
      %24 = sbr.rel (0) target = $region17
    $region16: #{rnn_model_forward.1} parent=1 // pred_region
      _
    $region17: #{rnn_model_forward.1} parent=1 // pred_fallthru
      _
    // Predicated region
    $region18: #{rnn_model_forward.1} parent=1 // pred_check
      _
    $region19: #{rnn_model_forward.1} parent=1 // pred_check_branch
      %26 = sbr.rel (0) target = $region21
    $region20: #{rnn_model_forward.1} parent=1 // pred_region
      %s28 = ssub.s32 1024, 1024
      %29 = vsyncadd [#allocation7], %s28
      %s30 = sshll.u32 [#allocation6], 4
      %s31 = int_to_ptr.vmem [resolvable:$true] %s30
      %36 = dma.hbm_to_vmem [thread:$0]  %s4, 1024, %s31, [#allocation7], 128, 128, 8
    $region21: #{rnn_model_forward.1} parent=1 // pred_fallthru
      _
    // Predicated region
    $region22: #{rnn_model_forward.1} parent=1 // pred_check
      _
    $region23: #{rnn_model_forward.1} parent=1 // pred_check_branch
      %38 = sbr.rel (0) target = $region25
    $region24: #{rnn_model_forward.1} parent=1 // pred_region
      _
    $region25: #{rnn_model_forward.1} parent=1 // pred_fallthru
      _
    // Predicated region
    $region26: #{rnn_model_forward.1} parent=1 // pred_check
      _
    $region27: #{rnn_model_forward.1} parent=1 // pred_check_branch
      %40 = sbr.rel (0) target = $region29
    $region28: #{rnn_model_forward.1} parent=1 // pred_region
      _
    $region29: #{rnn_model_forward.1} parent=1 // pred_fallthru
      _
    // Predicated region
    $region30: #{rnn_model_forward.1} parent=1 // pred_check
      _
    $region31: #{rnn_model_forward.1} parent=1 // pred_check_branch
      %42 = sbr.rel (0) target = $region33
    $region32: #{rnn_model_forward.1} parent=1 // pred_region
      _
    $region33: #{rnn_model_forward.1} parent=1 // pred_fallthru
      _
    // Predicated region
    $region34: #{rnn_model_forward.1} parent=1 // pred_check
      _
    $region35: #{rnn_model_forward.1} parent=1 // pred_check_branch
      %44 = sbr.rel (0) target = $region37
    $region36: #{rnn_model_forward.1} parent=1 // pred_region
      %s46 = ssub.s32 16, 16
      %47 = vsyncadd [#allocation10], %s46
      %s49 = sshll.u32 [#allocation9], 4
      %s50 = int_to_ptr.vmem [resolvable:$true] %s49
      %52 = dma.hbm_to_vmem [thread:$0]  %s8, 16, %s50, [#allocation10]
    $region37: #{rnn_model_forward.1} parent=1 // pred_fallthru
      _
    // Predicated region
    $region38: #{rnn_model_forward.1} parent=1 // pred_check
      _
    $region39: #{rnn_model_forward.1} parent=1 // pred_check_branch
      %54 = sbr.rel (0) target = $region41
    $region40: #{rnn_model_forward.1} parent=1 // pred_region
      %55 = dma.done [#allocation7], 1024
    $region41: #{rnn_model_forward.1} parent=1 // pred_fallthru
      _
    // Predicated region
    $region42: #{rnn_model_forward.1} parent=1 // pred_check
      _
    $region43: #{rnn_model_forward.1} parent=1 // pred_check_branch
      %57 = sbr.rel (0) target = $region45
    $region44: #{rnn_model_forward.1} parent=1 // pred_region
      %58 = dma.done [#allocation10], 16
    $region45: #{rnn_model_forward.1} parent=1 // pred_fallthru
      _
    %v59 = vld [vmem:[%s0] sm:$0xff]
    %vm60 = vcmask 261120
    %61 = vst.msk [vmem:[#allocation2] sm:$0xff] %vm60, %v59
    %v62 = vld [vmem:[%s0 + $0x7] sm:$0x1]
    %64 = vrot.lane.b32.xlu0 %v62, 32
    %v65 = vpop.permute.xlu0 %64
    %vm67 = vcmask 516352
    %68 = vst.msk [vmem:[#allocation2] sm:$0x1] %vm67, %v65
    %v69 = vld [vmem:[%s0 + $0x6] sm:$0x1]
    %71 = vrot.lane.b32.xlu0 %v69, 32
    %v72 = vpop.permute.xlu0 %71
    %74 = vst.msk [vmem:[#allocation2 + $0x1] sm:$0x1] %vm67, %v72
    %v75 = vld [vmem:[%s0 + $0x5] sm:$0x1]
    %77 = vrot.lane.b32.xlu0 %v75, 32
    %v78 = vpop.permute.xlu0 %77
    %80 = vst.msk [vmem:[#allocation2 + $0x2] sm:$0x1] %vm67, %v78
    %v81 = vld [vmem:[%s0 + $0x4] sm:$0x1]
    %83 = vrot.lane.b32.xlu0 %v81, 32
    %v84 = vpop.permute.xlu0 %83
    %86 = vst.msk [vmem:[#allocation2 + $0x3] sm:$0x1] %vm67, %v84
    %v87 = vld [vmem:[%s0 + $0x3] sm:$0x1]
    %89 = vrot.lane.b32.xlu0 %v87, 32
    %v90 = vpop.permute.xlu0 %89
    %92 = vst.msk [vmem:[#allocation2 + $0x4] sm:$0x1] %vm67, %v90
    %v93 = vld [vmem:[%s0 + $0x2] sm:$0x1]
    %95 = vrot.lane.b32.xlu0 %v93, 32
    %v96 = vpop.permute.xlu0 %95
    %98 = vst.msk [vmem:[#allocation2 + $0x5] sm:$0x1] %vm67, %v96
    %v99 = vld [vmem:[%s0 + $0x1] sm:$0x1]
    %101 = vrot.lane.b32.xlu0 %v99, 32
    %v102 = vpop.permute.xlu0 %101
    %104 = vst.msk [vmem:[#allocation2 + $0x6] sm:$0x1] %vm67, %v102
    %v105 = vld [vmem:[%s0] sm:$0x1]
    %107 = vrot.lane.b32.xlu0 %v105, 32
    %v108 = vpop.permute.xlu0 %107
    %110 = vst.msk [vmem:[#allocation2 + $0x7] sm:$0x1] %vm67, %v108
    %v111 = vld [vmem:[#allocation2] sm:$0xff]
    %v112 = vld [vmem:[%s1] sm:$0xff]
    %v113 = vld [vmem:[%s1 + $0x8] sm:$0xff]
    %v114 = vld [vmem:[%s1 + $0x10] sm:$0xff]
    %v115 = vld [vmem:[%s1 + $0x18] sm:$0xff]
    %v116 = vld [vmem:[%s1 + $0x20] sm:$0xff]
    %v117 = vld [vmem:[%s1 + $0x28] sm:$0xff]
    %v118 = vld [vmem:[%s1 + $0x30] sm:$0xff]
    %v119 = vld [vmem:[%s1 + $0x38] sm:$0xff]
    %v120 = vld [vmem:[%s1 + $0x40] sm:$0xff]
    %v121 = vld [vmem:[%s1 + $0x48] sm:$0xff]
    %v122 = vld [vmem:[%s1 + $0x50] sm:$0xff]
    %v123 = vld [vmem:[%s1 + $0x58] sm:$0xff]
    %v124 = vld [vmem:[%s1 + $0x60] sm:$0xff]
    %v125 = vld [vmem:[%s1 + $0x68] sm:$0xff]
    %v126 = vld [vmem:[%s1 + $0x70] sm:$0xff]
    %v127 = vld [vmem:[%s1 + $0x78] sm:$0xff]
    %v128 = vld [vmem:[%s3] sm:$0x3]
    %v130 = vlaneseq
    %v131 = vshrl.u32 %v130, 7
    %v132 = vsub.s32 0, %v131
    %v133 = vrot.slane %v128, %v132
    %v134 = vlaneseq
    %v135 = vshrl.u32 %v134, 7
    %v136 = vsub.s32 1, %v135
    %v137 = vrot.slane %v128, %v136
    %vm140 = vcmask 523264
    %v142 = vsel %vm140, %v111, 0
    %144 = vmatprep.subr.mxu0 %v113
    %145 = vmatpush1.msra.mxu0 %v112
    %146 = vmatprep.subr.mxu0 %v115
    %147 = vmatpush1.msra.mxu0 %v114
    %148 = vmatprep.subr.mxu0 %v117
    %149 = vmatpush1.msra.mxu0 %v116
    %150 = vmatprep.subr.mxu0 %v119
    %151 = vmatpush1.msra.mxu0 %v118
    %152 = vmatprep.subr.mxu0 %v121
    %153 = vmatpush1.msra.mxu0 %v120
    %154 = vmatprep.subr.mxu0 %v123
    %155 = vmatpush1.msra.mxu0 %v122
    %156 = vmatprep.subr.mxu0 %v125
    %157 = vmatpush1.msra.mxu0 %v124
    %158 = vmatprep.subr.mxu0 %v127
    %159 = vmatpush1.msra.mxu0 %v126
    %160 = vmatprep.subr.mxu0 0.0
    %161 = vmatpush1.msra.mxu0 0.0
    %162 = vmatprep.subr.mxu0 0.0
    %163 = vmatpush1.msra.mxu0 0.0
    %164 = vmatprep.subr.mxu0 0.0
    %165 = vmatpush1.msra.mxu0 0.0
    %166 = vmatprep.subr.mxu0 0.0
    %167 = vmatpush1.msra.mxu0 0.0
    %168 = vmatprep.subr.mxu0 0.0
    %169 = vmatpush1.msra.mxu0 0.0
    %170 = vmatprep.subr.mxu0 0.0
    %171 = vmatpush1.msra.mxu0 0.0
    %172 = vmatprep.subr.mxu0 0.0
    %173 = vmatpush1.msra.mxu0 0.0
    %174 = vmatprep.subr.mxu0 0.0
    %175 = vmatpush1.msra.mxu0 0.0
    %176 = vmatprep.subr.mxu0 0.0
    %177 = vmatpush1.msra.mxu0 0.0
    %178 = vmatprep.subr.mxu0 0.0
    %179 = vmatpush1.msra.mxu0 0.0
    %180 = vmatprep.subr.mxu0 0.0
    %181 = vmatpush1.msra.mxu0 0.0
    %182 = vmatprep.subr.mxu0 0.0
    %183 = vmatpush1.msra.mxu0 0.0
    %184 = vmatprep.subr.mxu0 0.0
    %185 = vmatpush1.msra.mxu0 0.0
    %186 = vmatprep.subr.mxu0 0.0
    %187 = vmatpush1.msra.mxu0 0.0
    %188 = vmatprep.subr.mxu0 0.0
    %189 = vmatpush1.msra.mxu0 0.0
    %190 = vmatprep.subr.mxu0 0.0
    %191 = vmatpush1.msra.mxu0 0.0
    %192 = vmatprep.subr.mxu0 0.0
    %193 = vmatpush1.msra.mxu0 0.0
    %194 = vmatprep.subr.mxu0 0.0
    %195 = vmatpush1.msra.mxu0 0.0
    %196 = vmatprep.subr.mxu0 0.0
    %197 = vmatpush1.msra.mxu0 0.0
    %198 = vmatprep.subr.mxu0 0.0
    %199 = vmatpush1.msra.mxu0 0.0
    %200 = vmatprep.subr.mxu0 0.0
    %201 = vmatpush1.msra.mxu0 0.0
    %202 = vmatprep.subr.mxu0 0.0
    %203 = vmatpush1.msra.mxu0 0.0
    %204 = vmatprep.subr.mxu0 0.0
    %205 = vmatpush1.msra.mxu0 0.0
    %206 = vmatprep.subr.mxu0 0.0
    %207 = vmatpush1.msra.mxu0 0.0
    %208 = vmatprep.mubr.f32.mxu0 0.0
    %209 = vmatmul.mubr.f32.gmra.mrb[0].mxu0 %v142
    %v210 = vpop.f32.mrb[0].mxu0
    %v211 = vadd.f32 %v133, %v210
    %v212 = vpop.f32.mrb[0].mxu0
    %v213 = vadd.f32 %v137, %v212
    %214 = vdwg.mxu0
    %215 = vst [vmem:[#allocation3] sm:$0xff] %v211
    %216 = vst [vmem:[#allocation3 + $0x8] sm:$0xff] %v213
    %v217 = vld [vmem:[#allocation3] ss:$8 sm:$0x3]
    %v218 = vld [vmem:[%s2] sm:$0xff]
    %v219 = vld [vmem:[%s2 + $0x8] sm:$0xff]
    %v220 = vld [vmem:[%s2 + $0x10] sm:$0xff]
    %v221 = vld [vmem:[%s2 + $0x18] sm:$0xff]
    %v222 = vld [vmem:[%s2 + $0x20] sm:$0xff]
    %v223 = vld [vmem:[%s2 + $0x28] sm:$0xff]
    %v224 = vld [vmem:[%s2 + $0x30] sm:$0xff]
    %v225 = vld [vmem:[%s2 + $0x38] sm:$0xff]
    %v226 = vld [vmem:[%s2 + $0x40] sm:$0xff]
    %v227 = vld [vmem:[%s2 + $0x48] sm:$0xff]
    %v228 = vld [vmem:[%s2 + $0x50] sm:$0xff]
    %v229 = vld [vmem:[%s2 + $0x58] sm:$0xff]
    %v230 = vld [vmem:[%s2 + $0x60] sm:$0xff]
    %v231 = vld [vmem:[%s2 + $0x68] sm:$0xff]
    %v232 = vld [vmem:[%s2 + $0x70] sm:$0xff]
    %v233 = vld [vmem:[%s2 + $0x78] sm:$0xff]
    %v235 = vsel %vm140, 0.0, 0
    %237 = vmatprep.subr.mxu0 %v219
    %238 = vmatpush1.msra.mxu0 %v218
    %239 = vmatprep.subr.mxu0 %v221
    %240 = vmatpush1.msra.mxu0 %v220
    %241 = vmatprep.subr.mxu0 %v223
    %242 = vmatpush1.msra.mxu0 %v222
    %243 = vmatprep.subr.mxu0 %v225
    %244 = vmatpush1.msra.mxu0 %v224
    %245 = vmatprep.subr.mxu0 %v227
    %246 = vmatpush1.msra.mxu0 %v226
    %247 = vmatprep.subr.mxu0 %v229
    %248 = vmatpush1.msra.mxu0 %v228
    %249 = vmatprep.subr.mxu0 %v231
    %250 = vmatpush1.msra.mxu0 %v230
    %251 = vmatprep.subr.mxu0 %v233
    %252 = vmatpush1.msra.mxu0 %v232
    %253 = vmatprep.subr.mxu0 0.0
    %254 = vmatpush1.msra.mxu0 0.0
    %255 = vmatprep.subr.mxu0 0.0
    %256 = vmatpush1.msra.mxu0 0.0
    %257 = vmatprep.subr.mxu0 0.0
    %258 = vmatpush1.msra.mxu0 0.0
    %259 = vmatprep.subr.mxu0 0.0
    %260 = vmatpush1.msra.mxu0 0.0
    %261 = vmatprep.subr.mxu0 0.0
    %262 = vmatpush1.msra.mxu0 0.0
    %263 = vmatprep.subr.mxu0 0.0
    %264 = vmatpush1.msra.mxu0 0.0
    %265 = vmatprep.subr.mxu0 0.0
    %266 = vmatpush1.msra.mxu0 0.0
    %267 = vmatprep.subr.mxu0 0.0
    %268 = vmatpush1.msra.mxu0 0.0
    %269 = vmatprep.subr.mxu0 0.0
    %270 = vmatpush1.msra.mxu0 0.0
    %271 = vmatprep.subr.mxu0 0.0
    %272 = vmatpush1.msra.mxu0 0.0
    %273 = vmatprep.subr.mxu0 0.0
    %274 = vmatpush1.msra.mxu0 0.0
    %275 = vmatprep.subr.mxu0 0.0
    %276 = vmatpush1.msra.mxu0 0.0
    %277 = vmatprep.subr.mxu0 0.0
    %278 = vmatpush1.msra.mxu0 0.0
    %279 = vmatprep.subr.mxu0 0.0
    %280 = vmatpush1.msra.mxu0 0.0
    %281 = vmatprep.subr.mxu0 0.0
    %282 = vmatpush1.msra.mxu0 0.0
    %283 = vmatprep.subr.mxu0 0.0
    %284 = vmatpush1.msra.mxu0 0.0
    %285 = vmatprep.subr.mxu0 0.0
    %286 = vmatpush1.msra.mxu0 0.0
    %287 = vmatprep.subr.mxu0 0.0
    %288 = vmatpush1.msra.mxu0 0.0
    %289 = vmatprep.subr.mxu0 0.0
    %290 = vmatpush1.msra.mxu0 0.0
    %291 = vmatprep.subr.mxu0 0.0
    %292 = vmatpush1.msra.mxu0 0.0
    %293 = vmatprep.subr.mxu0 0.0
    %294 = vmatpush1.msra.mxu0 0.0
    %295 = vmatprep.subr.mxu0 0.0
    %296 = vmatpush1.msra.mxu0 0.0
    %297 = vmatprep.subr.mxu0 0.0
    %298 = vmatpush1.msra.mxu0 0.0
    %299 = vmatprep.subr.mxu0 0.0
    %300 = vmatpush1.msra.mxu0 0.0
    %301 = vmatprep.mubr.f32.mxu0 0.0
    %302 = vmatmul.mubr.f32.gmra.mrb[0].mxu0 %v235
    %v303 = vpop.f32.mrb[0].mxu0
    %v304 = vadd.f32 0.0, %v303
    %v305 = vpop.f32.mrb[0].mxu0
    %v306 = vadd.f32 0.0, %v305
    %307 = vdwg.mxu0
    %v310 = vcombine.low %v304, %v306
    %v312 = vunpack.c.l.s4 1966171168
    %v313 = vunpack.c.0.s8 %v312
    %v314 = vlaneseq
    %v315 = vshrl.u32 %v314, 7
    %v316 = vsub.s32 %v313, %v315
    %v317 = vrot.slane %v310, %v316
    %v319 = vunpack.c.l.s4 1966171168
    %v320 = vunpack.c.0.s8 %v319
    %v321 = vlaneseq
    %v322 = vshrl.u32 %v321, 7
    %v323 = vsub.s32 %v320, %v322
    %v324 = vrot.slane %v317, %v323
    %v326 = vadd.f32 %v217, %v324
    %v327 = vxor.u32 %v326, 2147483648
    %v328 = vmul.f32 %v327, 1.442695
    %v329 = vpow.pop %v328
    %v330 = vadd.f32 %v329, 1.0
    %v331 = vrcp.pop %v330
    %v332 = vmul.f32 1.0, %v331
    %v334 = vrot.slane %v326, 1
    %v336 = vtanh.pop %v334
    %v337 = vmul.f32 %v332, 0.0
    %v338 = vmul.f32 %v332, %v336
    %340 = vrot.lane.b32.xlu0 %v338, 64
    %v341 = vpop.permute.xlu0 %340
    %v343 = vadd.f32 %v337, %v341
    %v344 = vtanh.pop %v343
    %346 = vrot.lane.b32.xlu0 %v332, 64
    %v347 = vpop.permute.xlu0 %346
    %v348 = vrot.slane %v347, 1
    %351 = vrot.lane.b32.xlu0 %v344, 64
    %v352 = vpop.permute.xlu0 %351
    %v354 = vmul.f32 %v348, %v352
    %vm355 = vcmask 253952
    %356 = vst.msk [vmem:[#allocation4] sm:$0x1] %vm355, %v354
    %357 = vst.msk [vmem:[#allocation4 + $0x7] sm:$0x1] %vm67, %v354
    %s358 = scalar_lea.vmem [#allocation3], 1
    %v359 = vld [vmem:[%s358] ss:$8 sm:$0x3]
    %v360 = vld [vmem:[%s2] sm:$0xff]
    %v361 = vld [vmem:[%s2 + $0x8] sm:$0xff]
    %v362 = vld [vmem:[%s2 + $0x10] sm:$0xff]
    %v363 = vld [vmem:[%s2 + $0x18] sm:$0xff]
    %v364 = vld [vmem:[%s2 + $0x20] sm:$0xff]
    %v365 = vld [vmem:[%s2 + $0x28] sm:$0xff]
    %v366 = vld [vmem:[%s2 + $0x30] sm:$0xff]
    %v367 = vld [vmem:[%s2 + $0x38] sm:$0xff]
    %v368 = vld [vmem:[%s2 + $0x40] sm:$0xff]
    %v369 = vld [vmem:[%s2 + $0x48] sm:$0xff]
    %v370 = vld [vmem:[%s2 + $0x50] sm:$0xff]
    %v371 = vld [vmem:[%s2 + $0x58] sm:$0xff]
    %v372 = vld [vmem:[%s2 + $0x60] sm:$0xff]
    %v373 = vld [vmem:[%s2 + $0x68] sm:$0xff]
    %v374 = vld [vmem:[%s2 + $0x70] sm:$0xff]
    %v375 = vld [vmem:[%s2 + $0x78] sm:$0xff]
    %v377 = vsel %vm140, %v354, 0
    %379 = vmatprep.subr.mxu0 %v361
    %380 = vmatpush1.msra.mxu0 %v360
    %381 = vmatprep.subr.mxu0 %v363
    %382 = vmatpush1.msra.mxu0 %v362
    %383 = vmatprep.subr.mxu0 %v365
    %384 = vmatpush1.msra.mxu0 %v364
    %385 = vmatprep.subr.mxu0 %v367
    %386 = vmatpush1.msra.mxu0 %v366
    %387 = vmatprep.subr.mxu0 %v369
    %388 = vmatpush1.msra.mxu0 %v368
    %389 = vmatprep.subr.mxu0 %v371
    %390 = vmatpush1.msra.mxu0 %v370
    %391 = vmatprep.subr.mxu0 %v373
    %392 = vmatpush1.msra.mxu0 %v372
    %393 = vmatprep.subr.mxu0 %v375
    %394 = vmatpush1.msra.mxu0 %v374
    %395 = vmatprep.subr.mxu0 0.0
    %396 = vmatpush1.msra.mxu0 0.0
    %397 = vmatprep.subr.mxu0 0.0
    %398 = vmatpush1.msra.mxu0 0.0
    %399 = vmatprep.subr.mxu0 0.0
    %400 = vmatpush1.msra.mxu0 0.0
    %401 = vmatprep.subr.mxu0 0.0
    %402 = vmatpush1.msra.mxu0 0.0
    %403 = vmatprep.subr.mxu0 0.0
    %404 = vmatpush1.msra.mxu0 0.0
    %405 = vmatprep.subr.mxu0 0.0
    %406 = vmatpush1.msra.mxu0 0.0
    %407 = vmatprep.subr.mxu0 0.0
    %408 = vmatpush1.msra.mxu0 0.0
    %409 = vmatprep.subr.mxu0 0.0
    %410 = vmatpush1.msra.mxu0 0.0
    %411 = vmatprep.subr.mxu0 0.0
    %412 = vmatpush1.msra.mxu0 0.0
    %413 = vmatprep.subr.mxu0 0.0
    %414 = vmatpush1.msra.mxu0 0.0
    %415 = vmatprep.subr.mxu0 0.0
    %416 = vmatpush1.msra.mxu0 0.0
    %417 = vmatprep.subr.mxu0 0.0
    %418 = vmatpush1.msra.mxu0 0.0
    %419 = vmatprep.subr.mxu0 0.0
    %420 = vmatpush1.msra.mxu0 0.0
    %421 = vmatprep.subr.mxu0 0.0
    %422 = vmatpush1.msra.mxu0 0.0
    %423 = vmatprep.subr.mxu0 0.0
    %424 = vmatpush1.msra.mxu0 0.0
    %425 = vmatprep.subr.mxu0 0.0
    %426 = vmatpush1.msra.mxu0 0.0
    %427 = vmatprep.subr.mxu0 0.0
    %428 = vmatpush1.msra.mxu0 0.0
    %429 = vmatprep.subr.mxu0 0.0
    %430 = vmatpush1.msra.mxu0 0.0
    %431 = vmatprep.subr.mxu0 0.0
    %432 = vmatpush1.msra.mxu0 0.0
    %433 = vmatprep.subr.mxu0 0.0
    %434 = vmatpush1.msra.mxu0 0.0
    %435 = vmatprep.subr.mxu0 0.0
    %436 = vmatpush1.msra.mxu0 0.0
    %437 = vmatprep.subr.mxu0 0.0
    %438 = vmatpush1.msra.mxu0 0.0
    %439 = vmatprep.subr.mxu0 0.0
    %440 = vmatpush1.msra.mxu0 0.0
    %441 = vmatprep.subr.mxu0 0.0
    %442 = vmatpush1.msra.mxu0 0.0
    %443 = vmatprep.mubr.f32.mxu0 0.0
    %444 = vmatmul.mubr.f32.gmra.mrb[0].mxu0 %v377
    %v445 = vpop.f32.mrb[0].mxu0
    %v446 = vadd.f32 0.0, %v445
    %v447 = vpop.f32.mrb[0].mxu0
    %v448 = vadd.f32 0.0, %v447
    %449 = vdwg.mxu0
    %v452 = vcombine.low %v446, %v448
    %v454 = vunpack.c.l.s4 1966171168
    %v455 = vunpack.c.0.s8 %v454
    %v456 = vlaneseq
    %v457 = vshrl.u32 %v456, 7
    %v458 = vsub.s32 %v455, %v457
    %v459 = vrot.slane %v452, %v458
    %v461 = vunpack.c.l.s4 1966171168
    %v462 = vunpack.c.0.s8 %v461
    %v463 = vlaneseq
    %v464 = vshrl.u32 %v463, 7
    %v465 = vsub.s32 %v462, %v464
    %v466 = vrot.slane %v459, %v465
    %v468 = vadd.f32 %v359, %v466
    %v469 = vxor.u32 %v468, 2147483648
    %v470 = vmul.f32 %v469, 1.442695
    %v471 = vpow.pop %v470
    %v472 = vadd.f32 %v471, 1.0
    %v473 = vrcp.pop %v472
    %v474 = vmul.f32 1.0, %v473
    %v476 = vrot.slane %v468, 1
    %v478 = vtanh.pop %v476
    %v479 = vmul.f32 %v474, %v343
    %v480 = vmul.f32 %v474, %v478
    %482 = vrot.lane.b32.xlu0 %v480, 64
    %v483 = vpop.permute.xlu0 %482
    %v485 = vadd.f32 %v479, %v483
    %v486 = vtanh.pop %v485
    %488 = vrot.lane.b32.xlu0 %v474, 64
    %v489 = vpop.permute.xlu0 %488
    %v490 = vrot.slane %v489, 1
    %493 = vrot.lane.b32.xlu0 %v486, 64
    %v494 = vpop.permute.xlu0 %493
    %v496 = vmul.f32 %v490, %v494
    %497 = vst.msk [vmem:[#allocation4 + $0x1] sm:$0x1] %vm355, %v496
    %498 = vst.msk [vmem:[#allocation4 + $0x6] sm:$0x1] %vm67, %v496
    %s499 = scalar_lea.vmem [#allocation3], 2
    %v500 = vld [vmem:[%s499] ss:$8 sm:$0x3]
    %v501 = vld [vmem:[%s2] sm:$0xff]
    %v502 = vld [vmem:[%s2 + $0x8] sm:$0xff]
    %v503 = vld [vmem:[%s2 + $0x10] sm:$0xff]
    %v504 = vld [vmem:[%s2 + $0x18] sm:$0xff]
    %v505 = vld [vmem:[%s2 + $0x20] sm:$0xff]
    %v506 = vld [vmem:[%s2 + $0x28] sm:$0xff]
    %v507 = vld [vmem:[%s2 + $0x30] sm:$0xff]
    %v508 = vld [vmem:[%s2 + $0x38] sm:$0xff]
    %v509 = vld [vmem:[%s2 + $0x40] sm:$0xff]
    %v510 = vld [vmem:[%s2 + $0x48] sm:$0xff]
    %v511 = vld [vmem:[%s2 + $0x50] sm:$0xff]
    %v512 = vld [vmem:[%s2 + $0x58] sm:$0xff]
    %v513 = vld [vmem:[%s2 + $0x60] sm:$0xff]
    %v514 = vld [vmem:[%s2 + $0x68] sm:$0xff]
    %v515 = vld [vmem:[%s2 + $0x70] sm:$0xff]
    %v516 = vld [vmem:[%s2 + $0x78] sm:$0xff]
    %v518 = vsel %vm140, %v496, 0
    %520 = vmatprep.subr.mxu0 %v502
    %521 = vmatpush1.msra.mxu0 %v501
    %522 = vmatprep.subr.mxu0 %v504
    %523 = vmatpush1.msra.mxu0 %v503
    %524 = vmatprep.subr.mxu0 %v506
    %525 = vmatpush1.msra.mxu0 %v505
    %526 = vmatprep.subr.mxu0 %v508
    %527 = vmatpush1.msra.mxu0 %v507
    %528 = vmatprep.subr.mxu0 %v510
    %529 = vmatpush1.msra.mxu0 %v509
    %530 = vmatprep.subr.mxu0 %v512
    %531 = vmatpush1.msra.mxu0 %v511
    %532 = vmatprep.subr.mxu0 %v514
    %533 = vmatpush1.msra.mxu0 %v513
    %534 = vmatprep.subr.mxu0 %v516
    %535 = vmatpush1.msra.mxu0 %v515
    %536 = vmatprep.subr.mxu0 0.0
    %537 = vmatpush1.msra.mxu0 0.0
    %538 = vmatprep.subr.mxu0 0.0
    %539 = vmatpush1.msra.mxu0 0.0
    %540 = vmatprep.subr.mxu0 0.0
    %541 = vmatpush1.msra.mxu0 0.0
    %542 = vmatprep.subr.mxu0 0.0
    %543 = vmatpush1.msra.mxu0 0.0
    %544 = vmatprep.subr.mxu0 0.0
    %545 = vmatpush1.msra.mxu0 0.0
    %546 = vmatprep.subr.mxu0 0.0
    %547 = vmatpush1.msra.mxu0 0.0
    %548 = vmatprep.subr.mxu0 0.0
    %549 = vmatpush1.msra.mxu0 0.0
    %550 = vmatprep.subr.mxu0 0.0
    %551 = vmatpush1.msra.mxu0 0.0
    %552 = vmatprep.subr.mxu0 0.0
    %553 = vmatpush1.msra.mxu0 0.0
    %554 = vmatprep.subr.mxu0 0.0
    %555 = vmatpush1.msra.mxu0 0.0
    %556 = vmatprep.subr.mxu0 0.0
    %557 = vmatpush1.msra.mxu0 0.0
    %558 = vmatprep.subr.mxu0 0.0
    %559 = vmatpush1.msra.mxu0 0.0
    %560 = vmatprep.subr.mxu0 0.0
    %561 = vmatpush1.msra.mxu0 0.0
    %562 = vmatprep.subr.mxu0 0.0
    %563 = vmatpush1.msra.mxu0 0.0
    %564 = vmatprep.subr.mxu0 0.0
    %565 = vmatpush1.msra.mxu0 0.0
    %566 = vmatprep.subr.mxu0 0.0
    %567 = vmatpush1.msra.mxu0 0.0
    %568 = vmatprep.subr.mxu0 0.0
    %569 = vmatpush1.msra.mxu0 0.0
    %570 = vmatprep.subr.mxu0 0.0
    %571 = vmatpush1.msra.mxu0 0.0
    %572 = vmatprep.subr.mxu0 0.0
    %573 = vmatpush1.msra.mxu0 0.0
    %574 = vmatprep.subr.mxu0 0.0
    %575 = vmatpush1.msra.mxu0 0.0
    %576 = vmatprep.subr.mxu0 0.0
    %577 = vmatpush1.msra.mxu0 0.0
    %578 = vmatprep.subr.mxu0 0.0
    %579 = vmatpush1.msra.mxu0 0.0
    %580 = vmatprep.subr.mxu0 0.0
    %581 = vmatpush1.msra.mxu0 0.0
    %582 = vmatprep.subr.mxu0 0.0
    %583 = vmatpush1.msra.mxu0 0.0
    %584 = vmatprep.mubr.f32.mxu0 0.0
    %585 = vmatmul.mubr.f32.gmra.mrb[0].mxu0 %v518
    %v586 = vpop.f32.mrb[0].mxu0
    %v587 = vadd.f32 0.0, %v586
    %v588 = vpop.f32.mrb[0].mxu0
    %v589 = vadd.f32 0.0, %v588
    %590 = vdwg.mxu0
    %v593 = vcombine.low %v587, %v589
    %v595 = vunpack.c.l.s4 1966171168
    %v596 = vunpack.c.0.s8 %v595
    %v597 = vlaneseq
    %v598 = vshrl.u32 %v597, 7
    %v599 = vsub.s32 %v596, %v598
    %v600 = vrot.slane %v593, %v599
    %v602 = vunpack.c.l.s4 1966171168
    %v603 = vunpack.c.0.s8 %v602
    %v604 = vlaneseq
    %v605 = vshrl.u32 %v604, 7
    %v606 = vsub.s32 %v603, %v605
    %v607 = vrot.slane %v600, %v606
    %v609 = vadd.f32 %v500, %v607
    %v610 = vxor.u32 %v609, 2147483648
    %v611 = vmul.f32 %v610, 1.442695
    %v612 = vpow.pop %v611
    %v613 = vadd.f32 %v612, 1.0
    %v614 = vrcp.pop %v613
    %v615 = vmul.f32 1.0, %v614
    %v617 = vrot.slane %v609, 1
    %v619 = vtanh.pop %v617
    %v620 = vmul.f32 %v615, %v485
    %v621 = vmul.f32 %v615, %v619
    %623 = vrot.lane.b32.xlu0 %v621, 64
    %v624 = vpop.permute.xlu0 %623
    %v626 = vadd.f32 %v620, %v624
    %v627 = vtanh.pop %v626
    %629 = vrot.lane.b32.xlu0 %v615, 64
    %v630 = vpop.permute.xlu0 %629
    %v631 = vrot.slane %v630, 1
    %634 = vrot.lane.b32.xlu0 %v627, 64
    %v635 = vpop.permute.xlu0 %634
    %v637 = vmul.f32 %v631, %v635
    %638 = vst.msk [vmem:[#allocation4 + $0x2] sm:$0x1] %vm355, %v637
    %639 = vst.msk [vmem:[#allocation4 + $0x5] sm:$0x1] %vm67, %v637
    %s640 = scalar_lea.vmem [#allocation3], 3
    %v641 = vld [vmem:[%s640] ss:$8 sm:$0x3]
    %v642 = vld [vmem:[%s2] sm:$0xff]
    %v643 = vld [vmem:[%s2 + $0x8] sm:$0xff]
    %v644 = vld [vmem:[%s2 + $0x10] sm:$0xff]
    %v645 = vld [vmem:[%s2 + $0x18] sm:$0xff]
    %v646 = vld [vmem:[%s2 + $0x20] sm:$0xff]
    %v647 = vld [vmem:[%s2 + $0x28] sm:$0xff]
    %v648 = vld [vmem:[%s2 + $0x30] sm:$0xff]
    %v649 = vld [vmem:[%s2 + $0x38] sm:$0xff]
    %v650 = vld [vmem:[%s2 + $0x40] sm:$0xff]
    %v651 = vld [vmem:[%s2 + $0x48] sm:$0xff]
    %v652 = vld [vmem:[%s2 + $0x50] sm:$0xff]
    %v653 = vld [vmem:[%s2 + $0x58] sm:$0xff]
    %v654 = vld [vmem:[%s2 + $0x60] sm:$0xff]
    %v655 = vld [vmem:[%s2 + $0x68] sm:$0xff]
    %v656 = vld [vmem:[%s2 + $0x70] sm:$0xff]
    %v657 = vld [vmem:[%s2 + $0x78] sm:$0xff]
    %v659 = vsel %vm140, %v637, 0
    %661 = vmatprep.subr.mxu0 %v643
    %662 = vmatpush1.msra.mxu0 %v642
    %663 = vmatprep.subr.mxu0 %v645
    %664 = vmatpush1.msra.mxu0 %v644
    %665 = vmatprep.subr.mxu0 %v647
    %666 = vmatpush1.msra.mxu0 %v646
    %667 = vmatprep.subr.mxu0 %v649
    %668 = vmatpush1.msra.mxu0 %v648
    %669 = vmatprep.subr.mxu0 %v651
    %670 = vmatpush1.msra.mxu0 %v650
    %671 = vmatprep.subr.mxu0 %v653
    %672 = vmatpush1.msra.mxu0 %v652
    %673 = vmatprep.subr.mxu0 %v655
    %674 = vmatpush1.msra.mxu0 %v654
    %675 = vmatprep.subr.mxu0 %v657
    %676 = vmatpush1.msra.mxu0 %v656
    %677 = vmatprep.subr.mxu0 0.0
    %678 = vmatpush1.msra.mxu0 0.0
    %679 = vmatprep.subr.mxu0 0.0
    %680 = vmatpush1.msra.mxu0 0.0
    %681 = vmatprep.subr.mxu0 0.0
    %682 = vmatpush1.msra.mxu0 0.0
    %683 = vmatprep.subr.mxu0 0.0
    %684 = vmatpush1.msra.mxu0 0.0
    %685 = vmatprep.subr.mxu0 0.0
    %686 = vmatpush1.msra.mxu0 0.0
    %687 = vmatprep.subr.mxu0 0.0
    %688 = vmatpush1.msra.mxu0 0.0
    %689 = vmatprep.subr.mxu0 0.0
    %690 = vmatpush1.msra.mxu0 0.0
    %691 = vmatprep.subr.mxu0 0.0
    %692 = vmatpush1.msra.mxu0 0.0
    %693 = vmatprep.subr.mxu0 0.0
    %694 = vmatpush1.msra.mxu0 0.0
    %695 = vmatprep.subr.mxu0 0.0
    %696 = vmatpush1.msra.mxu0 0.0
    %697 = vmatprep.subr.mxu0 0.0
    %698 = vmatpush1.msra.mxu0 0.0
    %699 = vmatprep.subr.mxu0 0.0
    %700 = vmatpush1.msra.mxu0 0.0
    %701 = vmatprep.subr.mxu0 0.0
    %702 = vmatpush1.msra.mxu0 0.0
    %703 = vmatprep.subr.mxu0 0.0
    %704 = vmatpush1.msra.mxu0 0.0
    %705 = vmatprep.subr.mxu0 0.0
    %706 = vmatpush1.msra.mxu0 0.0
    %707 = vmatprep.subr.mxu0 0.0
    %708 = vmatpush1.msra.mxu0 0.0
    %709 = vmatprep.subr.mxu0 0.0
    %710 = vmatpush1.msra.mxu0 0.0
    %711 = vmatprep.subr.mxu0 0.0
    %712 = vmatpush1.msra.mxu0 0.0
    %713 = vmatprep.subr.mxu0 0.0
    %714 = vmatpush1.msra.mxu0 0.0
    %715 = vmatprep.subr.mxu0 0.0
    %716 = vmatpush1.msra.mxu0 0.0
    %717 = vmatprep.subr.mxu0 0.0
    %718 = vmatpush1.msra.mxu0 0.0
    %719 = vmatprep.subr.mxu0 0.0
    %720 = vmatpush1.msra.mxu0 0.0
    %721 = vmatprep.subr.mxu0 0.0
    %722 = vmatpush1.msra.mxu0 0.0
    %723 = vmatprep.subr.mxu0 0.0
    %724 = vmatpush1.msra.mxu0 0.0
    %725 = vmatprep.mubr.f32.mxu0 0.0
    %726 = vmatmul.mubr.f32.gmra.mrb[0].mxu0 %v659
    %v727 = vpop.f32.mrb[0].mxu0
    %v728 = vadd.f32 0.0, %v727
    %v729 = vpop.f32.mrb[0].mxu0
    %v730 = vadd.f32 0.0, %v729
    %731 = vdwg.mxu0
    %v734 = vcombine.low %v728, %v730
    %v736 = vunpack.c.l.s4 1966171168
    %v737 = vunpack.c.0.s8 %v736
    %v738 = vlaneseq
    %v739 = vshrl.u32 %v738, 7
    %v740 = vsub.s32 %v737, %v739
    %v741 = vrot.slane %v734, %v740
    %v743 = vunpack.c.l.s4 1966171168
    %v744 = vunpack.c.0.s8 %v743
    %v745 = vlaneseq
    %v746 = vshrl.u32 %v745, 7
    %v747 = vsub.s32 %v744, %v746
    %v748 = vrot.slane %v741, %v747
    %v750 = vadd.f32 %v641, %v748
    %v751 = vxor.u32 %v750, 2147483648
    %v752 = vmul.f32 %v751, 1.442695
    %v753 = vpow.pop %v752
    %v754 = vadd.f32 %v753, 1.0
    %v755 = vrcp.pop %v754
    %v756 = vmul.f32 1.0, %v755
    %v758 = vrot.slane %v750, 1
    %v760 = vtanh.pop %v758
    %v761 = vmul.f32 %v756, %v626
    %v762 = vmul.f32 %v756, %v760
    %764 = vrot.lane.b32.xlu0 %v762, 64
    %v765 = vpop.permute.xlu0 %764
    %v767 = vadd.f32 %v761, %v765
    %v768 = vtanh.pop %v767
    %770 = vrot.lane.b32.xlu0 %v756, 64
    %v771 = vpop.permute.xlu0 %770
    %v772 = vrot.slane %v771, 1
    %775 = vrot.lane.b32.xlu0 %v768, 64
    %v776 = vpop.permute.xlu0 %775
    %v778 = vmul.f32 %v772, %v776
    %779 = vst.msk [vmem:[#allocation4 + $0x3] sm:$0x1] %vm355, %v778
    %780 = vst.msk [vmem:[#allocation4 + $0x4] sm:$0x1] %vm67, %v778
    %s781 = scalar_lea.vmem [#allocation3], 4
    %v782 = vld [vmem:[%s781] ss:$8 sm:$0x3]
    %v783 = vld [vmem:[%s2] sm:$0xff]
    %v784 = vld [vmem:[%s2 + $0x8] sm:$0xff]
    %v785 = vld [vmem:[%s2 + $0x10] sm:$0xff]
    %v786 = vld [vmem:[%s2 + $0x18] sm:$0xff]
    %v787 = vld [vmem:[%s2 + $0x20] sm:$0xff]
    %v788 = vld [vmem:[%s2 + $0x28] sm:$0xff]
    %v789 = vld [vmem:[%s2 + $0x30] sm:$0xff]
    %v790 = vld [vmem:[%s2 + $0x38] sm:$0xff]
    %v791 = vld [vmem:[%s2 + $0x40] sm:$0xff]
    %v792 = vld [vmem:[%s2 + $0x48] sm:$0xff]
    %v793 = vld [vmem:[%s2 + $0x50] sm:$0xff]
    %v794 = vld [vmem:[%s2 + $0x58] sm:$0xff]
    %v795 = vld [vmem:[%s2 + $0x60] sm:$0xff]
    %v796 = vld [vmem:[%s2 + $0x68] sm:$0xff]
    %v797 = vld [vmem:[%s2 + $0x70] sm:$0xff]
    %v798 = vld [vmem:[%s2 + $0x78] sm:$0xff]
    %v800 = vsel %vm140, %v778, 0
    %802 = vmatprep.subr.mxu0 %v784
    %803 = vmatpush1.msra.mxu0 %v783
    %804 = vmatprep.subr.mxu0 %v786
    %805 = vmatpush1.msra.mxu0 %v785
    %806 = vmatprep.subr.mxu0 %v788
    %807 = vmatpush1.msra.mxu0 %v787
    %808 = vmatprep.subr.mxu0 %v790
    %809 = vmatpush1.msra.mxu0 %v789
    %810 = vmatprep.subr.mxu0 %v792
    %811 = vmatpush1.msra.mxu0 %v791
    %812 = vmatprep.subr.mxu0 %v794
    %813 = vmatpush1.msra.mxu0 %v793
    %814 = vmatprep.subr.mxu0 %v796
    %815 = vmatpush1.msra.mxu0 %v795
    %816 = vmatprep.subr.mxu0 %v798
    %817 = vmatpush1.msra.mxu0 %v797
    %818 = vmatprep.subr.mxu0 0.0
    %819 = vmatpush1.msra.mxu0 0.0
    %820 = vmatprep.subr.mxu0 0.0
    %821 = vmatpush1.msra.mxu0 0.0
    %822 = vmatprep.subr.mxu0 0.0
    %823 = vmatpush1.msra.mxu0 0.0
    %824 = vmatprep.subr.mxu0 0.0
    %825 = vmatpush1.msra.mxu0 0.0
    %826 = vmatprep.subr.mxu0 0.0
    %827 = vmatpush1.msra.mxu0 0.0
    %828 = vmatprep.subr.mxu0 0.0
    %829 = vmatpush1.msra.mxu0 0.0
    %830 = vmatprep.subr.mxu0 0.0
    %831 = vmatpush1.msra.mxu0 0.0
    %832 = vmatprep.subr.mxu0 0.0
    %833 = vmatpush1.msra.mxu0 0.0
    %834 = vmatprep.subr.mxu0 0.0
    %835 = vmatpush1.msra.mxu0 0.0
    %836 = vmatprep.subr.mxu0 0.0
    %837 = vmatpush1.msra.mxu0 0.0
    %838 = vmatprep.subr.mxu0 0.0
    %839 = vmatpush1.msra.mxu0 0.0
    %840 = vmatprep.subr.mxu0 0.0
    %841 = vmatpush1.msra.mxu0 0.0
    %842 = vmatprep.subr.mxu0 0.0
    %843 = vmatpush1.msra.mxu0 0.0
    %844 = vmatprep.subr.mxu0 0.0
    %845 = vmatpush1.msra.mxu0 0.0
    %846 = vmatprep.subr.mxu0 0.0
    %847 = vmatpush1.msra.mxu0 0.0
    %848 = vmatprep.subr.mxu0 0.0
    %849 = vmatpush1.msra.mxu0 0.0
    %850 = vmatprep.subr.mxu0 0.0
    %851 = vmatpush1.msra.mxu0 0.0
    %852 = vmatprep.subr.mxu0 0.0
    %853 = vmatpush1.msra.mxu0 0.0
    %854 = vmatprep.subr.mxu0 0.0
    %855 = vmatpush1.msra.mxu0 0.0
    %856 = vmatprep.subr.mxu0 0.0
    %857 = vmatpush1.msra.mxu0 0.0
    %858 = vmatprep.subr.mxu0 0.0
    %859 = vmatpush1.msra.mxu0 0.0
    %860 = vmatprep.subr.mxu0 0.0
    %861 = vmatpush1.msra.mxu0 0.0
    %862 = vmatprep.subr.mxu0 0.0
    %863 = vmatpush1.msra.mxu0 0.0
    %864 = vmatprep.subr.mxu0 0.0
    %865 = vmatpush1.msra.mxu0 0.0
    %866 = vmatprep.mubr.f32.mxu0 0.0
    %867 = vmatmul.mubr.f32.gmra.mrb[0].mxu0 %v800
    %v868 = vpop.f32.mrb[0].mxu0
    %v869 = vadd.f32 0.0, %v868
    %v870 = vpop.f32.mrb[0].mxu0
    %v871 = vadd.f32 0.0, %v870
    %872 = vdwg.mxu0
    %v875 = vcombine.low %v869, %v871
    %v877 = vunpack.c.l.s4 1966171168
    %v878 = vunpack.c.0.s8 %v877
    %v879 = vlaneseq
    %v880 = vshrl.u32 %v879, 7
    %v881 = vsub.s32 %v878, %v880
    %v882 = vrot.slane %v875, %v881
    %v884 = vunpack.c.l.s4 1966171168
    %v885 = vunpack.c.0.s8 %v884
    %v886 = vlaneseq
    %v887 = vshrl.u32 %v886, 7
    %v888 = vsub.s32 %v885, %v887
    %v889 = vrot.slane %v882, %v888
    %v891 = vadd.f32 %v782, %v889
    %v892 = vxor.u32 %v891, 2147483648
    %v893 = vmul.f32 %v892, 1.442695
    %v894 = vpow.pop %v893
    %v895 = vadd.f32 %v894, 1.0
    %v896 = vrcp.pop %v895
    %v897 = vmul.f32 1.0, %v896
    %v899 = vrot.slane %v891, 1
    %v901 = vtanh.pop %v899
    %v902 = vmul.f32 %v897, %v767
    %v903 = vmul.f32 %v897, %v901
    %905 = vrot.lane.b32.xlu0 %v903, 64
    %v906 = vpop.permute.xlu0 %905
    %v908 = vadd.f32 %v902, %v906
    %v909 = vtanh.pop %v908
    %911 = vrot.lane.b32.xlu0 %v897, 64
    %v912 = vpop.permute.xlu0 %911
    %v913 = vrot.slane %v912, 1
    %916 = vrot.lane.b32.xlu0 %v909, 64
    %v917 = vpop.permute.xlu0 %916
    %v919 = vmul.f32 %v913, %v917
    %920 = vst.msk [vmem:[#allocation4 + $0x4] sm:$0x1] %vm355, %v919
    %921 = vst.msk [vmem:[#allocation4 + $0x3] sm:$0x1] %vm67, %v919
    %s922 = scalar_lea.vmem [#allocation3], 5
    %v923 = vld [vmem:[%s922] ss:$8 sm:$0x3]
    %v924 = vld [vmem:[%s2] sm:$0xff]
    %v925 = vld [vmem:[%s2 + $0x8] sm:$0xff]
    %v926 = vld [vmem:[%s2 + $0x10] sm:$0xff]
    %v927 = vld [vmem:[%s2 + $0x18] sm:$0xff]
    %v928 = vld [vmem:[%s2 + $0x20] sm:$0xff]
    %v929 = vld [vmem:[%s2 + $0x28] sm:$0xff]
    %v930 = vld [vmem:[%s2 + $0x30] sm:$0xff]
    %v931 = vld [vmem:[%s2 + $0x38] sm:$0xff]
    %v932 = vld [vmem:[%s2 + $0x40] sm:$0xff]
    %v933 = vld [vmem:[%s2 + $0x48] sm:$0xff]
    %v934 = vld [vmem:[%s2 + $0x50] sm:$0xff]
    %v935 = vld [vmem:[%s2 + $0x58] sm:$0xff]
    %v936 = vld [vmem:[%s2 + $0x60] sm:$0xff]
    %v937 = vld [vmem:[%s2 + $0x68] sm:$0xff]
    %v938 = vld [vmem:[%s2 + $0x70] sm:$0xff]
    %v939 = vld [vmem:[%s2 + $0x78] sm:$0xff]
    %v941 = vsel %vm140, %v919, 0
    %943 = vmatprep.subr.mxu0 %v925
    %944 = vmatpush1.msra.mxu0 %v924
    %945 = vmatprep.subr.mxu0 %v927
    %946 = vmatpush1.msra.mxu0 %v926
    %947 = vmatprep.subr.mxu0 %v929
    %948 = vmatpush1.msra.mxu0 %v928
    %949 = vmatprep.subr.mxu0 %v931
    %950 = vmatpush1.msra.mxu0 %v930
    %951 = vmatprep.subr.mxu0 %v933
    %952 = vmatpush1.msra.mxu0 %v932
    %953 = vmatprep.subr.mxu0 %v935
    %954 = vmatpush1.msra.mxu0 %v934
    %955 = vmatprep.subr.mxu0 %v937
    %956 = vmatpush1.msra.mxu0 %v936
    %957 = vmatprep.subr.mxu0 %v939
    %958 = vmatpush1.msra.mxu0 %v938
    %959 = vmatprep.subr.mxu0 0.0
    %960 = vmatpush1.msra.mxu0 0.0
    %961 = vmatprep.subr.mxu0 0.0
    %962 = vmatpush1.msra.mxu0 0.0
    %963 = vmatprep.subr.mxu0 0.0
    %964 = vmatpush1.msra.mxu0 0.0
    %965 = vmatprep.subr.mxu0 0.0
    %966 = vmatpush1.msra.mxu0 0.0
    %967 = vmatprep.subr.mxu0 0.0
    %968 = vmatpush1.msra.mxu0 0.0
    %969 = vmatprep.subr.mxu0 0.0
    %970 = vmatpush1.msra.mxu0 0.0
    %971 = vmatprep.subr.mxu0 0.0
    %972 = vmatpush1.msra.mxu0 0.0
    %973 = vmatprep.subr.mxu0 0.0
    %974 = vmatpush1.msra.mxu0 0.0
    %975 = vmatprep.subr.mxu0 0.0
    %976 = vmatpush1.msra.mxu0 0.0
    %977 = vmatprep.subr.mxu0 0.0
    %978 = vmatpush1.msra.mxu0 0.0
    %979 = vmatprep.subr.mxu0 0.0
    %980 = vmatpush1.msra.mxu0 0.0
    %981 = vmatprep.subr.mxu0 0.0
    %982 = vmatpush1.msra.mxu0 0.0
    %983 = vmatprep.subr.mxu0 0.0
    %984 = vmatpush1.msra.mxu0 0.0
    %985 = vmatprep.subr.mxu0 0.0
    %986 = vmatpush1.msra.mxu0 0.0
    %987 = vmatprep.subr.mxu0 0.0
    %988 = vmatpush1.msra.mxu0 0.0
    %989 = vmatprep.subr.mxu0 0.0
    %990 = vmatpush1.msra.mxu0 0.0
    %991 = vmatprep.subr.mxu0 0.0
    %992 = vmatpush1.msra.mxu0 0.0
    %993 = vmatprep.subr.mxu0 0.0
    %994 = vmatpush1.msra.mxu0 0.0
    %995 = vmatprep.subr.mxu0 0.0
    %996 = vmatpush1.msra.mxu0 0.0
    %997 = vmatprep.subr.mxu0 0.0
    %998 = vmatpush1.msra.mxu0 0.0
    %999 = vmatprep.subr.mxu0 0.0
    %1000 = vmatpush1.msra.mxu0 0.0
    %1001 = vmatprep.subr.mxu0 0.0
    %1002 = vmatpush1.msra.mxu0 0.0
    %1003 = vmatprep.subr.mxu0 0.0
    %1004 = vmatpush1.msra.mxu0 0.0
    %1005 = vmatprep.subr.mxu0 0.0
    %1006 = vmatpush1.msra.mxu0 0.0
    %1007 = vmatprep.mubr.f32.mxu0 0.0
    %1008 = vmatmul.mubr.f32.gmra.mrb[0].mxu0 %v941
    %v1009 = vpop.f32.mrb[0].mxu0
    %v1010 = vadd.f32 0.0, %v1009
    %v1011 = vpop.f32.mrb[0].mxu0
    %v1012 = vadd.f32 0.0, %v1011
    %1013 = vdwg.mxu0
    %v1016 = vcombine.low %v1010, %v1012
    %v1018 = vunpack.c.l.s4 1966171168
    %v1019 = vunpack.c.0.s8 %v1018
    %v1020 = vlaneseq
    %v1021 = vshrl.u32 %v1020, 7
    %v1022 = vsub.s32 %v1019, %v1021
    %v1023 = vrot.slane %v1016, %v1022
    %v1025 = vunpack.c.l.s4 1966171168
    %v1026 = vunpack.c.0.s8 %v1025
    %v1027 = vlaneseq
    %v1028 = vshrl.u32 %v1027, 7
    %v1029 = vsub.s32 %v1026, %v1028
    %v1030 = vrot.slane %v1023, %v1029
    %v1032 = vadd.f32 %v923, %v1030
    %v1033 = vxor.u32 %v1032, 2147483648
    %v1034 = vmul.f32 %v1033, 1.442695
    %v1035 = vpow.pop %v1034
    %v1036 = vadd.f32 %v1035, 1.0
    %v1037 = vrcp.pop %v1036
    %v1038 = vmul.f32 1.0, %v1037
    %v1040 = vrot.slane %v1032, 1
    %v1042 = vtanh.pop %v1040
    %v1043 = vmul.f32 %v1038, %v908
    %v1044 = vmul.f32 %v1038, %v1042
    %1046 = vrot.lane.b32.xlu0 %v1044, 64
    %v1047 = vpop.permute.xlu0 %1046
    %v1049 = vadd.f32 %v1043, %v1047
    %v1050 = vtanh.pop %v1049
    %1052 = vrot.lane.b32.xlu0 %v1038, 64
    %v1053 = vpop.permute.xlu0 %1052
    %v1054 = vrot.slane %v1053, 1
    %1057 = vrot.lane.b32.xlu0 %v1050, 64
    %v1058 = vpop.permute.xlu0 %1057
    %v1060 = vmul.f32 %v1054, %v1058
    %1061 = vst.msk [vmem:[#allocation4 + $0x5] sm:$0x1] %vm355, %v1060
    %1062 = vst.msk [vmem:[#allocation4 + $0x2] sm:$0x1] %vm67, %v1060
    %s1063 = scalar_lea.vmem [#allocation3], 6
    %v1064 = vld [vmem:[%s1063] ss:$8 sm:$0x3]
    %v1065 = vld [vmem:[%s2] sm:$0xff]
    %v1066 = vld [vmem:[%s2 + $0x8] sm:$0xff]
    %v1067 = vld [vmem:[%s2 + $0x10] sm:$0xff]
    %v1068 = vld [vmem:[%s2 + $0x18] sm:$0xff]
    %v1069 = vld [vmem:[%s2 + $0x20] sm:$0xff]
    %v1070 = vld [vmem:[%s2 + $0x28] sm:$0xff]
    %v1071 = vld [vmem:[%s2 + $0x30] sm:$0xff]
    %v1072 = vld [vmem:[%s2 + $0x38] sm:$0xff]
    %v1073 = vld [vmem:[%s2 + $0x40] sm:$0xff]
    %v1074 = vld [vmem:[%s2 + $0x48] sm:$0xff]
    %v1075 = vld [vmem:[%s2 + $0x50] sm:$0xff]
    %v1076 = vld [vmem:[%s2 + $0x58] sm:$0xff]
    %v1077 = vld [vmem:[%s2 + $0x60] sm:$0xff]
    %v1078 = vld [vmem:[%s2 + $0x68] sm:$0xff]
    %v1079 = vld [vmem:[%s2 + $0x70] sm:$0xff]
    %v1080 = vld [vmem:[%s2 + $0x78] sm:$0xff]
    %v1082 = vsel %vm140, %v1060, 0
    %1084 = vmatprep.subr.mxu0 %v1066
    %1085 = vmatpush1.msra.mxu0 %v1065
    %1086 = vmatprep.subr.mxu0 %v1068
    %1087 = vmatpush1.msra.mxu0 %v1067
    %1088 = vmatprep.subr.mxu0 %v1070
    %1089 = vmatpush1.msra.mxu0 %v1069
    %1090 = vmatprep.subr.mxu0 %v1072
    %1091 = vmatpush1.msra.mxu0 %v1071
    %1092 = vmatprep.subr.mxu0 %v1074
    %1093 = vmatpush1.msra.mxu0 %v1073
    %1094 = vmatprep.subr.mxu0 %v1076
    %1095 = vmatpush1.msra.mxu0 %v1075
    %1096 = vmatprep.subr.mxu0 %v1078
    %1097 = vmatpush1.msra.mxu0 %v1077
    %1098 = vmatprep.subr.mxu0 %v1080
    %1099 = vmatpush1.msra.mxu0 %v1079
    %1100 = vmatprep.subr.mxu0 0.0
    %1101 = vmatpush1.msra.mxu0 0.0
    %1102 = vmatprep.subr.mxu0 0.0
    %1103 = vmatpush1.msra.mxu0 0.0
    %1104 = vmatprep.subr.mxu0 0.0
    %1105 = vmatpush1.msra.mxu0 0.0
    %1106 = vmatprep.subr.mxu0 0.0
    %1107 = vmatpush1.msra.mxu0 0.0
    %1108 = vmatprep.subr.mxu0 0.0
    %1109 = vmatpush1.msra.mxu0 0.0
    %1110 = vmatprep.subr.mxu0 0.0
    %1111 = vmatpush1.msra.mxu0 0.0
    %1112 = vmatprep.subr.mxu0 0.0
    %1113 = vmatpush1.msra.mxu0 0.0
    %1114 = vmatprep.subr.mxu0 0.0
    %1115 = vmatpush1.msra.mxu0 0.0
    %1116 = vmatprep.subr.mxu0 0.0
    %1117 = vmatpush1.msra.mxu0 0.0
    %1118 = vmatprep.subr.mxu0 0.0
    %1119 = vmatpush1.msra.mxu0 0.0
    %1120 = vmatprep.subr.mxu0 0.0
    %1121 = vmatpush1.msra.mxu0 0.0
    %1122 = vmatprep.subr.mxu0 0.0
    %1123 = vmatpush1.msra.mxu0 0.0
    %1124 = vmatprep.subr.mxu0 0.0
    %1125 = vmatpush1.msra.mxu0 0.0
    %1126 = vmatprep.subr.mxu0 0.0
    %1127 = vmatpush1.msra.mxu0 0.0
    %1128 = vmatprep.subr.mxu0 0.0
    %1129 = vmatpush1.msra.mxu0 0.0
    %1130 = vmatprep.subr.mxu0 0.0
    %1131 = vmatpush1.msra.mxu0 0.0
    %1132 = vmatprep.subr.mxu0 0.0
    %1133 = vmatpush1.msra.mxu0 0.0
    %1134 = vmatprep.subr.mxu0 0.0
    %1135 = vmatpush1.msra.mxu0 0.0
    %1136 = vmatprep.subr.mxu0 0.0
    %1137 = vmatpush1.msra.mxu0 0.0
    %1138 = vmatprep.subr.mxu0 0.0
    %1139 = vmatpush1.msra.mxu0 0.0
    %1140 = vmatprep.subr.mxu0 0.0
    %1141 = vmatpush1.msra.mxu0 0.0
    %1142 = vmatprep.subr.mxu0 0.0
    %1143 = vmatpush1.msra.mxu0 0.0
    %1144 = vmatprep.subr.mxu0 0.0
    %1145 = vmatpush1.msra.mxu0 0.0
    %1146 = vmatprep.subr.mxu0 0.0
    %1147 = vmatpush1.msra.mxu0 0.0
    %1148 = vmatprep.mubr.f32.mxu0 0.0
    %1149 = vmatmul.mubr.f32.gmra.mrb[0].mxu0 %v1082
    %v1150 = vpop.f32.mrb[0].mxu0
    %v1151 = vadd.f32 0.0, %v1150
    %v1152 = vpop.f32.mrb[0].mxu0
    %v1153 = vadd.f32 0.0, %v1152
    %1154 = vdwg.mxu0
    %v1157 = vcombine.low %v1151, %v1153
    %v1159 = vunpack.c.l.s4 1966171168
    %v1160 = vunpack.c.0.s8 %v1159
    %v1161 = vlaneseq
    %v1162 = vshrl.u32 %v1161, 7
    %v1163 = vsub.s32 %v1160, %v1162
    %v1164 = vrot.slane %v1157, %v1163
    %v1166 = vunpack.c.l.s4 1966171168
    %v1167 = vunpack.c.0.s8 %v1166
    %v1168 = vlaneseq
    %v1169 = vshrl.u32 %v1168, 7
    %v1170 = vsub.s32 %v1167, %v1169
    %v1171 = vrot.slane %v1164, %v1170
    %v1173 = vadd.f32 %v1064, %v1171
    %v1174 = vxor.u32 %v1173, 2147483648
    %v1175 = vmul.f32 %v1174, 1.442695
    %v1176 = vpow.pop %v1175
    %v1177 = vadd.f32 %v1176, 1.0
    %v1178 = vrcp.pop %v1177
    %v1179 = vmul.f32 1.0, %v1178
    %v1181 = vrot.slane %v1173, 1
    %v1183 = vtanh.pop %v1181
    %v1184 = vmul.f32 %v1179, %v1049
    %v1185 = vmul.f32 %v1179, %v1183
    %1187 = vrot.lane.b32.xlu0 %v1185, 64
    %v1188 = vpop.permute.xlu0 %1187
    %v1190 = vadd.f32 %v1184, %v1188
    %v1191 = vtanh.pop %v1190
    %1193 = vrot.lane.b32.xlu0 %v1179, 64
    %v1194 = vpop.permute.xlu0 %1193
    %v1195 = vrot.slane %v1194, 1
    %1198 = vrot.lane.b32.xlu0 %v1191, 64
    %v1199 = vpop.permute.xlu0 %1198
    %v1201 = vmul.f32 %v1195, %v1199
    %1202 = vst.msk [vmem:[#allocation4 + $0x6] sm:$0x1] %vm355, %v1201
    %1203 = vst.msk [vmem:[#allocation4 + $0x1] sm:$0x1] %vm67, %v1201
    %s1204 = scalar_lea.vmem [#allocation3], 7
    %v1205 = vld [vmem:[%s1204] ss:$8 sm:$0x3]
    %v1206 = vld [vmem:[%s2] sm:$0xff]
    %v1207 = vld [vmem:[%s2 + $0x8] sm:$0xff]
    %v1208 = vld [vmem:[%s2 + $0x10] sm:$0xff]
    %v1209 = vld [vmem:[%s2 + $0x18] sm:$0xff]
    %v1210 = vld [vmem:[%s2 + $0x20] sm:$0xff]
    %v1211 = vld [vmem:[%s2 + $0x28] sm:$0xff]
    %v1212 = vld [vmem:[%s2 + $0x30] sm:$0xff]
    %v1213 = vld [vmem:[%s2 + $0x38] sm:$0xff]
    %v1214 = vld [vmem:[%s2 + $0x40] sm:$0xff]
    %v1215 = vld [vmem:[%s2 + $0x48] sm:$0xff]
    %v1216 = vld [vmem:[%s2 + $0x50] sm:$0xff]
    %v1217 = vld [vmem:[%s2 + $0x58] sm:$0xff]
    %v1218 = vld [vmem:[%s2 + $0x60] sm:$0xff]
    %v1219 = vld [vmem:[%s2 + $0x68] sm:$0xff]
    %v1220 = vld [vmem:[%s2 + $0x70] sm:$0xff]
    %v1221 = vld [vmem:[%s2 + $0x78] sm:$0xff]
    %v1223 = vsel %vm140, %v1201, 0
    %1225 = vmatprep.subr.mxu0 %v1207
    %1226 = vmatpush1.msra.mxu0 %v1206
    %1227 = vmatprep.subr.mxu0 %v1209
    %1228 = vmatpush1.msra.mxu0 %v1208
    %1229 = vmatprep.subr.mxu0 %v1211
    %1230 = vmatpush1.msra.mxu0 %v1210
    %1231 = vmatprep.subr.mxu0 %v1213
    %1232 = vmatpush1.msra.mxu0 %v1212
    %1233 = vmatprep.subr.mxu0 %v1215
    %1234 = vmatpush1.msra.mxu0 %v1214
    %1235 = vmatprep.subr.mxu0 %v1217
    %1236 = vmatpush1.msra.mxu0 %v1216
    %1237 = vmatprep.subr.mxu0 %v1219
    %1238 = vmatpush1.msra.mxu0 %v1218
    %1239 = vmatprep.subr.mxu0 %v1221
    %1240 = vmatpush1.msra.mxu0 %v1220
    %1241 = vmatprep.subr.mxu0 0.0
    %1242 = vmatpush1.msra.mxu0 0.0
    %1243 = vmatprep.subr.mxu0 0.0
    %1244 = vmatpush1.msra.mxu0 0.0
    %1245 = vmatprep.subr.mxu0 0.0
    %1246 = vmatpush1.msra.mxu0 0.0
    %1247 = vmatprep.subr.mxu0 0.0
    %1248 = vmatpush1.msra.mxu0 0.0
    %1249 = vmatprep.subr.mxu0 0.0
    %1250 = vmatpush1.msra.mxu0 0.0
    %1251 = vmatprep.subr.mxu0 0.0
    %1252 = vmatpush1.msra.mxu0 0.0
    %1253 = vmatprep.subr.mxu0 0.0
    %1254 = vmatpush1.msra.mxu0 0.0
    %1255 = vmatprep.subr.mxu0 0.0
    %1256 = vmatpush1.msra.mxu0 0.0
    %1257 = vmatprep.subr.mxu0 0.0
    %1258 = vmatpush1.msra.mxu0 0.0
    %1259 = vmatprep.subr.mxu0 0.0
    %1260 = vmatpush1.msra.mxu0 0.0
    %1261 = vmatprep.subr.mxu0 0.0
    %1262 = vmatpush1.msra.mxu0 0.0
    %1263 = vmatprep.subr.mxu0 0.0
    %1264 = vmatpush1.msra.mxu0 0.0
    %1265 = vmatprep.subr.mxu0 0.0
    %1266 = vmatpush1.msra.mxu0 0.0
    %1267 = vmatprep.subr.mxu0 0.0
    %1268 = vmatpush1.msra.mxu0 0.0
    %1269 = vmatprep.subr.mxu0 0.0
    %1270 = vmatpush1.msra.mxu0 0.0
    %1271 = vmatprep.subr.mxu0 0.0
    %1272 = vmatpush1.msra.mxu0 0.0
    %1273 = vmatprep.subr.mxu0 0.0
    %1274 = vmatpush1.msra.mxu0 0.0
    %1275 = vmatprep.subr.mxu0 0.0
    %1276 = vmatpush1.msra.mxu0 0.0
    %1277 = vmatprep.subr.mxu0 0.0
    %1278 = vmatpush1.msra.mxu0 0.0
    %1279 = vmatprep.subr.mxu0 0.0
    %1280 = vmatpush1.msra.mxu0 0.0
    %1281 = vmatprep.subr.mxu0 0.0
    %1282 = vmatpush1.msra.mxu0 0.0
    %1283 = vmatprep.subr.mxu0 0.0
    %1284 = vmatpush1.msra.mxu0 0.0
    %1285 = vmatprep.subr.mxu0 0.0
    %1286 = vmatpush1.msra.mxu0 0.0
    %1287 = vmatprep.subr.mxu0 0.0
    %1288 = vmatpush1.msra.mxu0 0.0
    %1289 = vmatprep.mubr.f32.mxu0 0.0
    %1290 = vmatmul.mubr.f32.gmra.mrb[0].mxu0 %v1223
    %v1291 = vpop.f32.mrb[0].mxu0
    %v1292 = vadd.f32 0.0, %v1291
    %v1293 = vpop.f32.mrb[0].mxu0
    %v1294 = vadd.f32 0.0, %v1293
    %1295 = vdwg.mxu0
    %v1298 = vcombine.low %v1292, %v1294
    %v1300 = vunpack.c.l.s4 1966171168
    %v1301 = vunpack.c.0.s8 %v1300
    %v1302 = vlaneseq
    %v1303 = vshrl.u32 %v1302, 7
    %v1304 = vsub.s32 %v1301, %v1303
    %v1305 = vrot.slane %v1298, %v1304
    %v1307 = vunpack.c.l.s4 1966171168
    %v1308 = vunpack.c.0.s8 %v1307
    %v1309 = vlaneseq
    %v1310 = vshrl.u32 %v1309, 7
    %v1311 = vsub.s32 %v1308, %v1310
    %v1312 = vrot.slane %v1305, %v1311
    %v1314 = vadd.f32 %v1205, %v1312
    %v1315 = vxor.u32 %v1314, 2147483648
    %v1316 = vmul.f32 %v1315, 1.442695
    %v1317 = vpow.pop %v1316
    %v1318 = vadd.f32 %v1317, 1.0
    %v1319 = vrcp.pop %v1318
    %v1320 = vmul.f32 1.0, %v1319
    %v1322 = vrot.slane %v1314, 1
    %v1324 = vtanh.pop %v1322
    %v1325 = vmul.f32 %v1320, %v1190
    %v1326 = vmul.f32 %v1320, %v1324
    %1328 = vrot.lane.b32.xlu0 %v1326, 64
    %v1329 = vpop.permute.xlu0 %1328
    %v1331 = vadd.f32 %v1325, %v1329
    %v1332 = vtanh.pop %v1331
    %1334 = vrot.lane.b32.xlu0 %v1320, 64
    %v1335 = vpop.permute.xlu0 %1334
    %v1336 = vrot.slane %v1335, 1
    %1339 = vrot.lane.b32.xlu0 %v1332, 64
    %v1340 = vpop.permute.xlu0 %1339
    %v1342 = vmul.f32 %v1336, %v1340
    %1343 = vst.msk [vmem:[#allocation4 + $0x7] sm:$0x1] %vm355, %v1342
    %1344 = vst.msk [vmem:[#allocation4] sm:$0x1] %vm67, %v1342
    %v1345 = vld [vmem:[#allocation4] sm:$0xff]
    %v1346 = vld [vmem:[#allocation6] sm:$0xff]
    %v1347 = vld [vmem:[#allocation6 + $0x8] sm:$0xff]
    %v1348 = vld [vmem:[#allocation6 + $0x10] sm:$0xff]
    %v1349 = vld [vmem:[#allocation6 + $0x18] sm:$0xff]
    %v1350 = vld [vmem:[#allocation6 + $0x20] sm:$0xff]
    %v1351 = vld [vmem:[#allocation6 + $0x28] sm:$0xff]
    %v1352 = vld [vmem:[#allocation6 + $0x30] sm:$0xff]
    %v1353 = vld [vmem:[#allocation6 + $0x38] sm:$0xff]
    %v1354 = vld [vmem:[%s6] sm:$0x1]
    %v1356 = vlaneseq
    %v1357 = vshrl.u32 %v1356, 7
    %v1358 = vsub.s32 0, %v1357
    %v1359 = vrot.slane %v1354, %v1358
    %v1362 = vsel %vm140, %v1345, 0
    %1364 = vmatprep.subr.mxu0 0.0
    %1365 = vmatpush1.msra.mxu0 %v1346
    %1366 = vmatprep.subr.mxu0 0.0
    %1367 = vmatpush1.msra.mxu0 %v1347
    %1368 = vmatprep.subr.mxu0 0.0
    %1369 = vmatpush1.msra.mxu0 %v1348
    %1370 = vmatprep.subr.mxu0 0.0
    %1371 = vmatpush1.msra.mxu0 %v1349
    %1372 = vmatprep.subr.mxu0 0.0
    %1373 = vmatpush1.msra.mxu0 %v1350
    %1374 = vmatprep.subr.mxu0 0.0
    %1375 = vmatpush1.msra.mxu0 %v1351
    %1376 = vmatprep.subr.mxu0 0.0
    %1377 = vmatpush1.msra.mxu0 %v1352
    %1378 = vmatprep.subr.mxu0 0.0
    %1379 = vmatpush1.msra.mxu0 %v1353
    %1380 = vmatprep.subr.mxu0 0.0
    %1381 = vmatpush1.msra.mxu0 0.0
    %1382 = vmatprep.subr.mxu0 0.0
    %1383 = vmatpush1.msra.mxu0 0.0
    %1384 = vmatprep.subr.mxu0 0.0
    %1385 = vmatpush1.msra.mxu0 0.0
    %1386 = vmatprep.subr.mxu0 0.0
    %1387 = vmatpush1.msra.mxu0 0.0
    %1388 = vmatprep.subr.mxu0 0.0
    %1389 = vmatpush1.msra.mxu0 0.0
    %1390 = vmatprep.subr.mxu0 0.0
    %1391 = vmatpush1.msra.mxu0 0.0
    %1392 = vmatprep.subr.mxu0 0.0
    %1393 = vmatpush1.msra.mxu0 0.0
    %1394 = vmatprep.subr.mxu0 0.0
    %1395 = vmatpush1.msra.mxu0 0.0
    %1396 = vmatprep.subr.mxu0 0.0
    %1397 = vmatpush1.msra.mxu0 0.0
    %1398 = vmatprep.subr.mxu0 0.0
    %1399 = vmatpush1.msra.mxu0 0.0
    %1400 = vmatprep.subr.mxu0 0.0
    %1401 = vmatpush1.msra.mxu0 0.0
    %1402 = vmatprep.subr.mxu0 0.0
    %1403 = vmatpush1.msra.mxu0 0.0
    %1404 = vmatprep.subr.mxu0 0.0
    %1405 = vmatpush1.msra.mxu0 0.0
    %1406 = vmatprep.subr.mxu0 0.0
    %1407 = vmatpush1.msra.mxu0 0.0
    %1408 = vmatprep.subr.mxu0 0.0
    %1409 = vmatpush1.msra.mxu0 0.0
    %1410 = vmatprep.subr.mxu0 0.0
    %1411 = vmatpush1.msra.mxu0 0.0
    %1412 = vmatprep.subr.mxu0 0.0
    %1413 = vmatpush1.msra.mxu0 0.0
    %1414 = vmatprep.subr.mxu0 0.0
    %1415 = vmatpush1.msra.mxu0 0.0
    %1416 = vmatprep.subr.mxu0 0.0
    %1417 = vmatpush1.msra.mxu0 0.0
    %1418 = vmatprep.subr.mxu0 0.0
    %1419 = vmatpush1.msra.mxu0 0.0
    %1420 = vmatprep.subr.mxu0 0.0
    %1421 = vmatpush1.msra.mxu0 0.0
    %1422 = vmatprep.subr.mxu0 0.0
    %1423 = vmatpush1.msra.mxu0 0.0
    %1424 = vmatprep.subr.mxu0 0.0
    %1425 = vmatpush1.msra.mxu0 0.0
    %1426 = vmatprep.subr.mxu0 0.0
    %1427 = vmatpush1.msra.mxu0 0.0
    %1428 = vmatprep.mubr.f32.mxu0 0.0
    %1429 = vmatmul.mubr.f32.gmra.mrb[0].mxu0 %v1362
    %v1430 = vpop.f32.mrb[0].mxu0
    %v1431 = vadd.f32 %v1359, %v1430
    %v1432 = vpop.f32.mrb[0].mxu0
    %1433 = vdwg.mxu0
    %1434 = vst [vmem:[#allocation5] sm:$0xff] %v1431
    %v1435 = vld [vmem:[#allocation5] sm:$0x1]
    %v1436 = vld [vmem:[%s5] sm:$0xff]
    %v1437 = vld [vmem:[%s5 + $0x8] sm:$0xff]
    %v1438 = vld [vmem:[%s5 + $0x10] sm:$0xff]
    %v1439 = vld [vmem:[%s5 + $0x18] sm:$0xff]
    %v1440 = vsel %vm60, 0.0, 0
    %1442 = vmatprep.subr.mxu0 0.0
    %1443 = vmatpush1.msra.mxu0 %v1436
    %1444 = vmatprep.subr.mxu0 0.0
    %1445 = vmatpush1.msra.mxu0 %v1437
    %1446 = vmatprep.subr.mxu0 0.0
    %1447 = vmatpush1.msra.mxu0 %v1438
    %1448 = vmatprep.subr.mxu0 0.0
    %1449 = vmatpush1.msra.mxu0 %v1439
    %1450 = vmatprep.subr.mxu0 0.0
    %1451 = vmatpush1.msra.mxu0 0.0
    %1452 = vmatprep.subr.mxu0 0.0
    %1453 = vmatpush1.msra.mxu0 0.0
    %1454 = vmatprep.subr.mxu0 0.0
    %1455 = vmatpush1.msra.mxu0 0.0
    %1456 = vmatprep.subr.mxu0 0.0
    %1457 = vmatpush1.msra.mxu0 0.0
    %1458 = vmatprep.subr.mxu0 0.0
    %1459 = vmatpush1.msra.mxu0 0.0
    %1460 = vmatprep.subr.mxu0 0.0
    %1461 = vmatpush1.msra.mxu0 0.0
    %1462 = vmatprep.subr.mxu0 0.0
    %1463 = vmatpush1.msra.mxu0 0.0
    %1464 = vmatprep.subr.mxu0 0.0
    %1465 = vmatpush1.msra.mxu0 0.0
    %1466 = vmatprep.subr.mxu0 0.0
    %1467 = vmatpush1.msra.mxu0 0.0
    %1468 = vmatprep.subr.mxu0 0.0
    %1469 = vmatpush1.msra.mxu0 0.0
    %1470 = vmatprep.subr.mxu0 0.0
    %1471 = vmatpush1.msra.mxu0 0.0
    %1472 = vmatprep.subr.mxu0 0.0
    %1473 = vmatpush1.msra.mxu0 0.0
    %1474 = vmatprep.subr.mxu0 0.0
    %1475 = vmatpush1.msra.mxu0 0.0
    %1476 = vmatprep.subr.mxu0 0.0
    %1477 = vmatpush1.msra.mxu0 0.0
    %1478 = vmatprep.subr.mxu0 0.0
    %1479 = vmatpush1.msra.mxu0 0.0
    %1480 = vmatprep.subr.mxu0 0.0
    %1481 = vmatpush1.msra.mxu0 0.0
    %1482 = vmatprep.subr.mxu0 0.0
    %1483 = vmatpush1.msra.mxu0 0.0
    %1484 = vmatprep.subr.mxu0 0.0
    %1485 = vmatpush1.msra.mxu0 0.0
    %1486 = vmatprep.subr.mxu0 0.0
    %1487 = vmatpush1.msra.mxu0 0.0
    %1488 = vmatprep.subr.mxu0 0.0
    %1489 = vmatpush1.msra.mxu0 0.0
    %1490 = vmatprep.subr.mxu0 0.0
    %1491 = vmatpush1.msra.mxu0 0.0
    %1492 = vmatprep.subr.mxu0 0.0
    %1493 = vmatpush1.msra.mxu0 0.0
    %1494 = vmatprep.subr.mxu0 0.0
    %1495 = vmatpush1.msra.mxu0 0.0
    %1496 = vmatprep.subr.mxu0 0.0
    %1497 = vmatpush1.msra.mxu0 0.0
    %1498 = vmatprep.subr.mxu0 0.0
    %1499 = vmatpush1.msra.mxu0 0.0
    %1500 = vmatprep.subr.mxu0 0.0
    %1501 = vmatpush1.msra.mxu0 0.0
    %1502 = vmatprep.subr.mxu0 0.0
    %1503 = vmatpush1.msra.mxu0 0.0
    %1504 = vmatprep.subr.mxu0 0.0
    %1505 = vmatpush1.msra.mxu0 0.0
    %1506 = vmatprep.mubr.f32.mxu0 0.0
    %1507 = vmatmul.mubr.f32.gmra.mrb[0].mxu0 %v1440
    %v1508 = vpop.f32.mrb[0].mxu0
    %v1509 = vadd.f32 0.0, %v1508
    %v1510 = vpop.f32.mrb[0].mxu0
    %1511 = vdwg.mxu0
    %v1512 = vadd.f32 %v1435, %v1509
    %v1513 = vxor.u32 %v1512, 2147483648
    %v1514 = vmul.f32 %v1513, 1.442695
    %v1515 = vpow.pop %v1514
    %v1516 = vadd.f32 %v1515, 1.0
    %v1517 = vrcp.pop %v1516
    %v1518 = vmul.f32 1.0, %v1517
    %v1519 = vtanh.pop %v1512
    %v1520 = vmul.f32 %v1518, 0.0
    %1522 = vrot.lane.b32.xlu0 %v1519, 64
    %v1523 = vpop.permute.xlu0 %1522
    %v1525 = vmul.f32 %v1518, %v1523
    %1527 = vrot.lane.b32.xlu0 %v1525, 32
    %v1528 = vpop.permute.xlu0 %1527
    %v1530 = vadd.f32 %v1520, %v1528
    %v1531 = vtanh.pop %v1530
    %1533 = vrot.lane.b32.xlu0 %v1531, 64
    %v1534 = vpop.permute.xlu0 %1533
    %v1536 = vmul.f32 %v1518, %v1534
    %v1537 = vld [vmem:[#allocation5 + $0x1] sm:$0x1]
    %1539 = vrot.lane.b32.xlu0 %v1536, 32
    %v1540 = vpop.permute.xlu0 %1539
    %v1541 = vsel %vm60, %v1540, 0
    %1543 = vmatprep.subr.mxu0 0.0
    %1544 = vmatpush1.msra.mxu0 %v1436
    %1545 = vmatprep.subr.mxu0 0.0
    %1546 = vmatpush1.msra.mxu0 %v1437
    %1547 = vmatprep.subr.mxu0 0.0
    %1548 = vmatpush1.msra.mxu0 %v1438
    %1549 = vmatprep.subr.mxu0 0.0
    %1550 = vmatpush1.msra.mxu0 %v1439
    %1551 = vmatprep.subr.mxu0 0.0
    %1552 = vmatpush1.msra.mxu0 0.0
    %1553 = vmatprep.subr.mxu0 0.0
    %1554 = vmatpush1.msra.mxu0 0.0
    %1555 = vmatprep.subr.mxu0 0.0
    %1556 = vmatpush1.msra.mxu0 0.0
    %1557 = vmatprep.subr.mxu0 0.0
    %1558 = vmatpush1.msra.mxu0 0.0
    %1559 = vmatprep.subr.mxu0 0.0
    %1560 = vmatpush1.msra.mxu0 0.0
    %1561 = vmatprep.subr.mxu0 0.0
    %1562 = vmatpush1.msra.mxu0 0.0
    %1563 = vmatprep.subr.mxu0 0.0
    %1564 = vmatpush1.msra.mxu0 0.0
    %1565 = vmatprep.subr.mxu0 0.0
    %1566 = vmatpush1.msra.mxu0 0.0
    %1567 = vmatprep.subr.mxu0 0.0
    %1568 = vmatpush1.msra.mxu0 0.0
    %1569 = vmatprep.subr.mxu0 0.0
    %1570 = vmatpush1.msra.mxu0 0.0
    %1571 = vmatprep.subr.mxu0 0.0
    %1572 = vmatpush1.msra.mxu0 0.0
    %1573 = vmatprep.subr.mxu0 0.0
    %1574 = vmatpush1.msra.mxu0 0.0
    %1575 = vmatprep.subr.mxu0 0.0
    %1576 = vmatpush1.msra.mxu0 0.0
    %1577 = vmatprep.subr.mxu0 0.0
    %1578 = vmatpush1.msra.mxu0 0.0
    %1579 = vmatprep.subr.mxu0 0.0
    %1580 = vmatpush1.msra.mxu0 0.0
    %1581 = vmatprep.subr.mxu0 0.0
    %1582 = vmatpush1.msra.mxu0 0.0
    %1583 = vmatprep.subr.mxu0 0.0
    %1584 = vmatpush1.msra.mxu0 0.0
    %1585 = vmatprep.subr.mxu0 0.0
    %1586 = vmatpush1.msra.mxu0 0.0
    %1587 = vmatprep.subr.mxu0 0.0
    %1588 = vmatpush1.msra.mxu0 0.0
    %1589 = vmatprep.subr.mxu0 0.0
    %1590 = vmatpush1.msra.mxu0 0.0
    %1591 = vmatprep.subr.mxu0 0.0
    %1592 = vmatpush1.msra.mxu0 0.0
    %1593 = vmatprep.subr.mxu0 0.0
    %1594 = vmatpush1.msra.mxu0 0.0
    %1595 = vmatprep.subr.mxu0 0.0
    %1596 = vmatpush1.msra.mxu0 0.0
    %1597 = vmatprep.subr.mxu0 0.0
    %1598 = vmatpush1.msra.mxu0 0.0
    %1599 = vmatprep.subr.mxu0 0.0
    %1600 = vmatpush1.msra.mxu0 0.0
    %1601 = vmatprep.subr.mxu0 0.0
    %1602 = vmatpush1.msra.mxu0 0.0
    %1603 = vmatprep.subr.mxu0 0.0
    %1604 = vmatpush1.msra.mxu0 0.0
    %1605 = vmatprep.subr.mxu0 0.0
    %1606 = vmatpush1.msra.mxu0 0.0
    %1607 = vmatprep.mubr.f32.mxu0 0.0
    %1608 = vmatmul.mubr.f32.gmra.mrb[0].mxu0 %v1541
    %v1609 = vpop.f32.mrb[0].mxu0
    %v1610 = vadd.f32 0.0, %v1609
    %v1611 = vpop.f32.mrb[0].mxu0
    %1612 = vdwg.mxu0
    %v1613 = vadd.f32 %v1537, %v1610
    %v1614 = vxor.u32 %v1613, 2147483648
    %v1615 = vmul.f32 %v1614, 1.442695
    %v1616 = vpow.pop %v1615
    %v1617 = vadd.f32 %v1616, 1.0
    %v1618 = vrcp.pop %v1617
    %v1619 = vmul.f32 1.0, %v1618
    %v1620 = vtanh.pop %v1613
    %v1621 = vmul.f32 %v1619, %v1530
    %1623 = vrot.lane.b32.xlu0 %v1620, 64
    %v1624 = vpop.permute.xlu0 %1623
    %v1626 = vmul.f32 %v1619, %v1624
    %1628 = vrot.lane.b32.xlu0 %v1626, 32
    %v1629 = vpop.permute.xlu0 %1628
    %v1631 = vadd.f32 %v1621, %v1629
    %v1632 = vtanh.pop %v1631
    %1634 = vrot.lane.b32.xlu0 %v1632, 64
    %v1635 = vpop.permute.xlu0 %1634
    %v1637 = vmul.f32 %v1619, %v1635
    %v1638 = vld [vmem:[#allocation5 + $0x2] sm:$0x1]
    %1640 = vrot.lane.b32.xlu0 %v1637, 32
    %v1641 = vpop.permute.xlu0 %1640
    %v1642 = vsel %vm60, %v1641, 0
    %1644 = vmatprep.subr.mxu0 0.0
    %1645 = vmatpush1.msra.mxu0 %v1436
    %1646 = vmatprep.subr.mxu0 0.0
    %1647 = vmatpush1.msra.mxu0 %v1437
    %1648 = vmatprep.subr.mxu0 0.0
    %1649 = vmatpush1.msra.mxu0 %v1438
    %1650 = vmatprep.subr.mxu0 0.0
    %1651 = vmatpush1.msra.mxu0 %v1439
    %1652 = vmatprep.subr.mxu0 0.0
    %1653 = vmatpush1.msra.mxu0 0.0
    %1654 = vmatprep.subr.mxu0 0.0
    %1655 = vmatpush1.msra.mxu0 0.0
    %1656 = vmatprep.subr.mxu0 0.0
    %1657 = vmatpush1.msra.mxu0 0.0
    %1658 = vmatprep.subr.mxu0 0.0
    %1659 = vmatpush1.msra.mxu0 0.0
    %1660 = vmatprep.subr.mxu0 0.0
    %1661 = vmatpush1.msra.mxu0 0.0
    %1662 = vmatprep.subr.mxu0 0.0
    %1663 = vmatpush1.msra.mxu0 0.0
    %1664 = vmatprep.subr.mxu0 0.0
    %1665 = vmatpush1.msra.mxu0 0.0
    %1666 = vmatprep.subr.mxu0 0.0
    %1667 = vmatpush1.msra.mxu0 0.0
    %1668 = vmatprep.subr.mxu0 0.0
    %1669 = vmatpush1.msra.mxu0 0.0
    %1670 = vmatprep.subr.mxu0 0.0
    %1671 = vmatpush1.msra.mxu0 0.0
    %1672 = vmatprep.subr.mxu0 0.0
    %1673 = vmatpush1.msra.mxu0 0.0
    %1674 = vmatprep.subr.mxu0 0.0
    %1675 = vmatpush1.msra.mxu0 0.0
    %1676 = vmatprep.subr.mxu0 0.0
    %1677 = vmatpush1.msra.mxu0 0.0
    %1678 = vmatprep.subr.mxu0 0.0
    %1679 = vmatpush1.msra.mxu0 0.0
    %1680 = vmatprep.subr.mxu0 0.0
    %1681 = vmatpush1.msra.mxu0 0.0
    %1682 = vmatprep.subr.mxu0 0.0
    %1683 = vmatpush1.msra.mxu0 0.0
    %1684 = vmatprep.subr.mxu0 0.0
    %1685 = vmatpush1.msra.mxu0 0.0
    %1686 = vmatprep.subr.mxu0 0.0
    %1687 = vmatpush1.msra.mxu0 0.0
    %1688 = vmatprep.subr.mxu0 0.0
    %1689 = vmatpush1.msra.mxu0 0.0
    %1690 = vmatprep.subr.mxu0 0.0
    %1691 = vmatpush1.msra.mxu0 0.0
    %1692 = vmatprep.subr.mxu0 0.0
    %1693 = vmatpush1.msra.mxu0 0.0
    %1694 = vmatprep.subr.mxu0 0.0
    %1695 = vmatpush1.msra.mxu0 0.0
    %1696 = vmatprep.subr.mxu0 0.0
    %1697 = vmatpush1.msra.mxu0 0.0
    %1698 = vmatprep.subr.mxu0 0.0
    %1699 = vmatpush1.msra.mxu0 0.0
    %1700 = vmatprep.subr.mxu0 0.0
    %1701 = vmatpush1.msra.mxu0 0.0
    %1702 = vmatprep.subr.mxu0 0.0
    %1703 = vmatpush1.msra.mxu0 0.0
    %1704 = vmatprep.subr.mxu0 0.0
    %1705 = vmatpush1.msra.mxu0 0.0
    %1706 = vmatprep.subr.mxu0 0.0
    %1707 = vmatpush1.msra.mxu0 0.0
    %1708 = vmatprep.mubr.f32.mxu0 0.0
    %1709 = vmatmul.mubr.f32.gmra.mrb[0].mxu0 %v1642
    %v1710 = vpop.f32.mrb[0].mxu0
    %v1711 = vadd.f32 0.0, %v1710
    %v1712 = vpop.f32.mrb[0].mxu0
    %1713 = vdwg.mxu0
    %v1714 = vadd.f32 %v1638, %v1711
    %v1715 = vxor.u32 %v1714, 2147483648
    %v1716 = vmul.f32 %v1715, 1.442695
    %v1717 = vpow.pop %v1716
    %v1718 = vadd.f32 %v1717, 1.0
    %v1719 = vrcp.pop %v1718
    %v1720 = vmul.f32 1.0, %v1719
    %v1721 = vtanh.pop %v1714
    %v1722 = vmul.f32 %v1720, %v1631
    %1724 = vrot.lane.b32.xlu0 %v1721, 64
    %v1725 = vpop.permute.xlu0 %1724
    %v1727 = vmul.f32 %v1720, %v1725
    %1729 = vrot.lane.b32.xlu0 %v1727, 32
    %v1730 = vpop.permute.xlu0 %1729
    %v1732 = vadd.f32 %v1722, %v1730
    %v1733 = vtanh.pop %v1732
    %1735 = vrot.lane.b32.xlu0 %v1733, 64
    %v1736 = vpop.permute.xlu0 %1735
    %v1738 = vmul.f32 %v1720, %v1736
    %v1739 = vld [vmem:[#allocation5 + $0x3] sm:$0x1]
    %1741 = vrot.lane.b32.xlu0 %v1738, 32
    %v1742 = vpop.permute.xlu0 %1741
    %v1743 = vsel %vm60, %v1742, 0
    %1745 = vmatprep.subr.mxu0 0.0
    %1746 = vmatpush1.msra.mxu0 %v1436
    %1747 = vmatprep.subr.mxu0 0.0
    %1748 = vmatpush1.msra.mxu0 %v1437
    %1749 = vmatprep.subr.mxu0 0.0
    %1750 = vmatpush1.msra.mxu0 %v1438
    %1751 = vmatprep.subr.mxu0 0.0
    %1752 = vmatpush1.msra.mxu0 %v1439
    %1753 = vmatprep.subr.mxu0 0.0
    %1754 = vmatpush1.msra.mxu0 0.0
    %1755 = vmatprep.subr.mxu0 0.0
    %1756 = vmatpush1.msra.mxu0 0.0
    %1757 = vmatprep.subr.mxu0 0.0
    %1758 = vmatpush1.msra.mxu0 0.0
    %1759 = vmatprep.subr.mxu0 0.0
    %1760 = vmatpush1.msra.mxu0 0.0
    %1761 = vmatprep.subr.mxu0 0.0
    %1762 = vmatpush1.msra.mxu0 0.0
    %1763 = vmatprep.subr.mxu0 0.0
    %1764 = vmatpush1.msra.mxu0 0.0
    %1765 = vmatprep.subr.mxu0 0.0
    %1766 = vmatpush1.msra.mxu0 0.0
    %1767 = vmatprep.subr.mxu0 0.0
    %1768 = vmatpush1.msra.mxu0 0.0
    %1769 = vmatprep.subr.mxu0 0.0
    %1770 = vmatpush1.msra.mxu0 0.0
    %1771 = vmatprep.subr.mxu0 0.0
    %1772 = vmatpush1.msra.mxu0 0.0
    %1773 = vmatprep.subr.mxu0 0.0
    %1774 = vmatpush1.msra.mxu0 0.0
    %1775 = vmatprep.subr.mxu0 0.0
    %1776 = vmatpush1.msra.mxu0 0.0
    %1777 = vmatprep.subr.mxu0 0.0
    %1778 = vmatpush1.msra.mxu0 0.0
    %1779 = vmatprep.subr.mxu0 0.0
    %1780 = vmatpush1.msra.mxu0 0.0
    %1781 = vmatprep.subr.mxu0 0.0
    %1782 = vmatpush1.msra.mxu0 0.0
    %1783 = vmatprep.subr.mxu0 0.0
    %1784 = vmatpush1.msra.mxu0 0.0
    %1785 = vmatprep.subr.mxu0 0.0
    %1786 = vmatpush1.msra.mxu0 0.0
    %1787 = vmatprep.subr.mxu0 0.0
    %1788 = vmatpush1.msra.mxu0 0.0
    %1789 = vmatprep.subr.mxu0 0.0
    %1790 = vmatpush1.msra.mxu0 0.0
    %1791 = vmatprep.subr.mxu0 0.0
    %1792 = vmatpush1.msra.mxu0 0.0
    %1793 = vmatprep.subr.mxu0 0.0
    %1794 = vmatpush1.msra.mxu0 0.0
    %1795 = vmatprep.subr.mxu0 0.0
    %1796 = vmatpush1.msra.mxu0 0.0
    %1797 = vmatprep.subr.mxu0 0.0
    %1798 = vmatpush1.msra.mxu0 0.0
    %1799 = vmatprep.subr.mxu0 0.0
    %1800 = vmatpush1.msra.mxu0 0.0
    %1801 = vmatprep.subr.mxu0 0.0
    %1802 = vmatpush1.msra.mxu0 0.0
    %1803 = vmatprep.subr.mxu0 0.0
    %1804 = vmatpush1.msra.mxu0 0.0
    %1805 = vmatprep.subr.mxu0 0.0
    %1806 = vmatpush1.msra.mxu0 0.0
    %1807 = vmatprep.subr.mxu0 0.0
    %1808 = vmatpush1.msra.mxu0 0.0
    %1809 = vmatprep.mubr.f32.mxu0 0.0
    %1810 = vmatmul.mubr.f32.gmra.mrb[0].mxu0 %v1743
    %v1811 = vpop.f32.mrb[0].mxu0
    %v1812 = vadd.f32 0.0, %v1811
    %v1813 = vpop.f32.mrb[0].mxu0
    %1814 = vdwg.mxu0
    %v1815 = vadd.f32 %v1739, %v1812
    %v1816 = vxor.u32 %v1815, 2147483648
    %v1817 = vmul.f32 %v1816, 1.442695
    %v1818 = vpow.pop %v1817
    %v1819 = vadd.f32 %v1818, 1.0
    %v1820 = vrcp.pop %v1819
    %v1821 = vmul.f32 1.0, %v1820
    %v1822 = vtanh.pop %v1815
    %v1823 = vmul.f32 %v1821, %v1732
    %1825 = vrot.lane.b32.xlu0 %v1822, 64
    %v1826 = vpop.permute.xlu0 %1825
    %v1828 = vmul.f32 %v1821, %v1826
    %1830 = vrot.lane.b32.xlu0 %v1828, 32
    %v1831 = vpop.permute.xlu0 %1830
    %v1833 = vadd.f32 %v1823, %v1831
    %v1834 = vtanh.pop %v1833
    %1836 = vrot.lane.b32.xlu0 %v1834, 64
    %v1837 = vpop.permute.xlu0 %1836
    %v1839 = vmul.f32 %v1821, %v1837
    %v1840 = vld [vmem:[#allocation5 + $0x4] sm:$0x1]
    %1842 = vrot.lane.b32.xlu0 %v1839, 32
    %v1843 = vpop.permute.xlu0 %1842
    %v1844 = vsel %vm60, %v1843, 0
    %1846 = vmatprep.subr.mxu0 0.0
    %1847 = vmatpush1.msra.mxu0 %v1436
    %1848 = vmatprep.subr.mxu0 0.0
    %1849 = vmatpush1.msra.mxu0 %v1437
    %1850 = vmatprep.subr.mxu0 0.0
    %1851 = vmatpush1.msra.mxu0 %v1438
    %1852 = vmatprep.subr.mxu0 0.0
    %1853 = vmatpush1.msra.mxu0 %v1439
    %1854 = vmatprep.subr.mxu0 0.0
    %1855 = vmatpush1.msra.mxu0 0.0
    %1856 = vmatprep.subr.mxu0 0.0
    %1857 = vmatpush1.msra.mxu0 0.0
    %1858 = vmatprep.subr.mxu0 0.0
    %1859 = vmatpush1.msra.mxu0 0.0
    %1860 = vmatprep.subr.mxu0 0.0
    %1861 = vmatpush1.msra.mxu0 0.0
    %1862 = vmatprep.subr.mxu0 0.0
    %1863 = vmatpush1.msra.mxu0 0.0
    %1864 = vmatprep.subr.mxu0 0.0
    %1865 = vmatpush1.msra.mxu0 0.0
    %1866 = vmatprep.subr.mxu0 0.0
    %1867 = vmatpush1.msra.mxu0 0.0
    %1868 = vmatprep.subr.mxu0 0.0
    %1869 = vmatpush1.msra.mxu0 0.0
    %1870 = vmatprep.subr.mxu0 0.0
    %1871 = vmatpush1.msra.mxu0 0.0
    %1872 = vmatprep.subr.mxu0 0.0
    %1873 = vmatpush1.msra.mxu0 0.0
    %1874 = vmatprep.subr.mxu0 0.0
    %1875 = vmatpush1.msra.mxu0 0.0
    %1876 = vmatprep.subr.mxu0 0.0
    %1877 = vmatpush1.msra.mxu0 0.0
    %1878 = vmatprep.subr.mxu0 0.0
    %1879 = vmatpush1.msra.mxu0 0.0
    %1880 = vmatprep.subr.mxu0 0.0
    %1881 = vmatpush1.msra.mxu0 0.0
    %1882 = vmatprep.subr.mxu0 0.0
    %1883 = vmatpush1.msra.mxu0 0.0
    %1884 = vmatprep.subr.mxu0 0.0
    %1885 = vmatpush1.msra.mxu0 0.0
    %1886 = vmatprep.subr.mxu0 0.0
    %1887 = vmatpush1.msra.mxu0 0.0
    %1888 = vmatprep.subr.mxu0 0.0
    %1889 = vmatpush1.msra.mxu0 0.0
    %1890 = vmatprep.subr.mxu0 0.0
    %1891 = vmatpush1.msra.mxu0 0.0
    %1892 = vmatprep.subr.mxu0 0.0
    %1893 = vmatpush1.msra.mxu0 0.0
    %1894 = vmatprep.subr.mxu0 0.0
    %1895 = vmatpush1.msra.mxu0 0.0
    %1896 = vmatprep.subr.mxu0 0.0
    %1897 = vmatpush1.msra.mxu0 0.0
    %1898 = vmatprep.subr.mxu0 0.0
    %1899 = vmatpush1.msra.mxu0 0.0
    %1900 = vmatprep.subr.mxu0 0.0
    %1901 = vmatpush1.msra.mxu0 0.0
    %1902 = vmatprep.subr.mxu0 0.0
    %1903 = vmatpush1.msra.mxu0 0.0
    %1904 = vmatprep.subr.mxu0 0.0
    %1905 = vmatpush1.msra.mxu0 0.0
    %1906 = vmatprep.subr.mxu0 0.0
    %1907 = vmatpush1.msra.mxu0 0.0
    %1908 = vmatprep.subr.mxu0 0.0
    %1909 = vmatpush1.msra.mxu0 0.0
    %1910 = vmatprep.mubr.f32.mxu0 0.0
    %1911 = vmatmul.mubr.f32.gmra.mrb[0].mxu0 %v1844
    %v1912 = vpop.f32.mrb[0].mxu0
    %v1913 = vadd.f32 0.0, %v1912
    %v1914 = vpop.f32.mrb[0].mxu0
    %1915 = vdwg.mxu0
    %v1916 = vadd.f32 %v1840, %v1913
    %v1917 = vxor.u32 %v1916, 2147483648
    %v1918 = vmul.f32 %v1917, 1.442695
    %v1919 = vpow.pop %v1918
    %v1920 = vadd.f32 %v1919, 1.0
    %v1921 = vrcp.pop %v1920
    %v1922 = vmul.f32 1.0, %v1921
    %v1923 = vtanh.pop %v1916
    %v1924 = vmul.f32 %v1922, %v1833
    %1926 = vrot.lane.b32.xlu0 %v1923, 64
    %v1927 = vpop.permute.xlu0 %1926
    %v1929 = vmul.f32 %v1922, %v1927
    %1931 = vrot.lane.b32.xlu0 %v1929, 32
    %v1932 = vpop.permute.xlu0 %1931
    %v1934 = vadd.f32 %v1924, %v1932
    %v1935 = vtanh.pop %v1934
    %1937 = vrot.lane.b32.xlu0 %v1935, 64
    %v1938 = vpop.permute.xlu0 %1937
    %v1940 = vmul.f32 %v1922, %v1938
    %v1941 = vld [vmem:[#allocation5 + $0x5] sm:$0x1]
    %1943 = vrot.lane.b32.xlu0 %v1940, 32
    %v1944 = vpop.permute.xlu0 %1943
    %v1945 = vsel %vm60, %v1944, 0
    %1947 = vmatprep.subr.mxu0 0.0
    %1948 = vmatpush1.msra.mxu0 %v1436
    %1949 = vmatprep.subr.mxu0 0.0
    %1950 = vmatpush1.msra.mxu0 %v1437
    %1951 = vmatprep.subr.mxu0 0.0
    %1952 = vmatpush1.msra.mxu0 %v1438
    %1953 = vmatprep.subr.mxu0 0.0
    %1954 = vmatpush1.msra.mxu0 %v1439
    %1955 = vmatprep.subr.mxu0 0.0
    %1956 = vmatpush1.msra.mxu0 0.0
    %1957 = vmatprep.subr.mxu0 0.0
    %1958 = vmatpush1.msra.mxu0 0.0
    %1959 = vmatprep.subr.mxu0 0.0
    %1960 = vmatpush1.msra.mxu0 0.0
    %1961 = vmatprep.subr.mxu0 0.0
    %1962 = vmatpush1.msra.mxu0 0.0
    %1963 = vmatprep.subr.mxu0 0.0
    %1964 = vmatpush1.msra.mxu0 0.0
    %1965 = vmatprep.subr.mxu0 0.0
    %1966 = vmatpush1.msra.mxu0 0.0
    %1967 = vmatprep.subr.mxu0 0.0
    %1968 = vmatpush1.msra.mxu0 0.0
    %1969 = vmatprep.subr.mxu0 0.0
    %1970 = vmatpush1.msra.mxu0 0.0
    %1971 = vmatprep.subr.mxu0 0.0
    %1972 = vmatpush1.msra.mxu0 0.0
    %1973 = vmatprep.subr.mxu0 0.0
    %1974 = vmatpush1.msra.mxu0 0.0
    %1975 = vmatprep.subr.mxu0 0.0
    %1976 = vmatpush1.msra.mxu0 0.0
    %1977 = vmatprep.subr.mxu0 0.0
    %1978 = vmatpush1.msra.mxu0 0.0
    %1979 = vmatprep.subr.mxu0 0.0
    %1980 = vmatpush1.msra.mxu0 0.0
    %1981 = vmatprep.subr.mxu0 0.0
    %1982 = vmatpush1.msra.mxu0 0.0
    %1983 = vmatprep.subr.mxu0 0.0
    %1984 = vmatpush1.msra.mxu0 0.0
    %1985 = vmatprep.subr.mxu0 0.0
    %1986 = vmatpush1.msra.mxu0 0.0
    %1987 = vmatprep.subr.mxu0 0.0
    %1988 = vmatpush1.msra.mxu0 0.0
    %1989 = vmatprep.subr.mxu0 0.0
    %1990 = vmatpush1.msra.mxu0 0.0
    %1991 = vmatprep.subr.mxu0 0.0
    %1992 = vmatpush1.msra.mxu0 0.0
    %1993 = vmatprep.subr.mxu0 0.0
    %1994 = vmatpush1.msra.mxu0 0.0
    %1995 = vmatprep.subr.mxu0 0.0
    %1996 = vmatpush1.msra.mxu0 0.0
    %1997 = vmatprep.subr.mxu0 0.0
    %1998 = vmatpush1.msra.mxu0 0.0
    %1999 = vmatprep.subr.mxu0 0.0
    %2000 = vmatpush1.msra.mxu0 0.0
    %2001 = vmatprep.subr.mxu0 0.0
    %2002 = vmatpush1.msra.mxu0 0.0
    %2003 = vmatprep.subr.mxu0 0.0
    %2004 = vmatpush1.msra.mxu0 0.0
    %2005 = vmatprep.subr.mxu0 0.0
    %2006 = vmatpush1.msra.mxu0 0.0
    %2007 = vmatprep.subr.mxu0 0.0
    %2008 = vmatpush1.msra.mxu0 0.0
    %2009 = vmatprep.subr.mxu0 0.0
    %2010 = vmatpush1.msra.mxu0 0.0
    %2011 = vmatprep.mubr.f32.mxu0 0.0
    %2012 = vmatmul.mubr.f32.gmra.mrb[0].mxu0 %v1945
    %v2013 = vpop.f32.mrb[0].mxu0
    %v2014 = vadd.f32 0.0, %v2013
    %v2015 = vpop.f32.mrb[0].mxu0
    %2016 = vdwg.mxu0
    %v2017 = vadd.f32 %v1941, %v2014
    %v2018 = vxor.u32 %v2017, 2147483648
    %v2019 = vmul.f32 %v2018, 1.442695
    %v2020 = vpow.pop %v2019
    %v2021 = vadd.f32 %v2020, 1.0
    %v2022 = vrcp.pop %v2021
    %v2023 = vmul.f32 1.0, %v2022
    %v2024 = vtanh.pop %v2017
    %v2025 = vmul.f32 %v2023, %v1934
    %2027 = vrot.lane.b32.xlu0 %v2024, 64
    %v2028 = vpop.permute.xlu0 %2027
    %v2030 = vmul.f32 %v2023, %v2028
    %2032 = vrot.lane.b32.xlu0 %v2030, 32
    %v2033 = vpop.permute.xlu0 %2032
    %v2035 = vadd.f32 %v2025, %v2033
    %v2036 = vtanh.pop %v2035
    %2038 = vrot.lane.b32.xlu0 %v2036, 64
    %v2039 = vpop.permute.xlu0 %2038
    %v2041 = vmul.f32 %v2023, %v2039
    %v2042 = vld [vmem:[#allocation5 + $0x6] sm:$0x1]
    %2044 = vrot.lane.b32.xlu0 %v2041, 32
    %v2045 = vpop.permute.xlu0 %2044
    %v2046 = vsel %vm60, %v2045, 0
    %2048 = vmatprep.subr.mxu0 0.0
    %2049 = vmatpush1.msra.mxu0 %v1436
    %2050 = vmatprep.subr.mxu0 0.0
    %2051 = vmatpush1.msra.mxu0 %v1437
    %2052 = vmatprep.subr.mxu0 0.0
    %2053 = vmatpush1.msra.mxu0 %v1438
    %2054 = vmatprep.subr.mxu0 0.0
    %2055 = vmatpush1.msra.mxu0 %v1439
    %2056 = vmatprep.subr.mxu0 0.0
    %2057 = vmatpush1.msra.mxu0 0.0
    %2058 = vmatprep.subr.mxu0 0.0
    %2059 = vmatpush1.msra.mxu0 0.0
    %2060 = vmatprep.subr.mxu0 0.0
    %2061 = vmatpush1.msra.mxu0 0.0
    %2062 = vmatprep.subr.mxu0 0.0
    %2063 = vmatpush1.msra.mxu0 0.0
    %2064 = vmatprep.subr.mxu0 0.0
    %2065 = vmatpush1.msra.mxu0 0.0
    %2066 = vmatprep.subr.mxu0 0.0
    %2067 = vmatpush1.msra.mxu0 0.0
    %2068 = vmatprep.subr.mxu0 0.0
    %2069 = vmatpush1.msra.mxu0 0.0
    %2070 = vmatprep.subr.mxu0 0.0
    %2071 = vmatpush1.msra.mxu0 0.0
    %2072 = vmatprep.subr.mxu0 0.0
    %2073 = vmatpush1.msra.mxu0 0.0
    %2074 = vmatprep.subr.mxu0 0.0
    %2075 = vmatpush1.msra.mxu0 0.0
    %2076 = vmatprep.subr.mxu0 0.0
    %2077 = vmatpush1.msra.mxu0 0.0
    %2078 = vmatprep.subr.mxu0 0.0
    %2079 = vmatpush1.msra.mxu0 0.0
    %2080 = vmatprep.subr.mxu0 0.0
    %2081 = vmatpush1.msra.mxu0 0.0
    %2082 = vmatprep.subr.mxu0 0.0
    %2083 = vmatpush1.msra.mxu0 0.0
    %2084 = vmatprep.subr.mxu0 0.0
    %2085 = vmatpush1.msra.mxu0 0.0
    %2086 = vmatprep.subr.mxu0 0.0
    %2087 = vmatpush1.msra.mxu0 0.0
    %2088 = vmatprep.subr.mxu0 0.0
    %2089 = vmatpush1.msra.mxu0 0.0
    %2090 = vmatprep.subr.mxu0 0.0
    %2091 = vmatpush1.msra.mxu0 0.0
    %2092 = vmatprep.subr.mxu0 0.0
    %2093 = vmatpush1.msra.mxu0 0.0
    %2094 = vmatprep.subr.mxu0 0.0
    %2095 = vmatpush1.msra.mxu0 0.0
    %2096 = vmatprep.subr.mxu0 0.0
    %2097 = vmatpush1.msra.mxu0 0.0
    %2098 = vmatprep.subr.mxu0 0.0
    %2099 = vmatpush1.msra.mxu0 0.0
    %2100 = vmatprep.subr.mxu0 0.0
    %2101 = vmatpush1.msra.mxu0 0.0
    %2102 = vmatprep.subr.mxu0 0.0
    %2103 = vmatpush1.msra.mxu0 0.0
    %2104 = vmatprep.subr.mxu0 0.0
    %2105 = vmatpush1.msra.mxu0 0.0
    %2106 = vmatprep.subr.mxu0 0.0
    %2107 = vmatpush1.msra.mxu0 0.0
    %2108 = vmatprep.subr.mxu0 0.0
    %2109 = vmatpush1.msra.mxu0 0.0
    %2110 = vmatprep.subr.mxu0 0.0
    %2111 = vmatpush1.msra.mxu0 0.0
    %2112 = vmatprep.mubr.f32.mxu0 0.0
    %2113 = vmatmul.mubr.f32.gmra.mrb[0].mxu0 %v2046
    %v2114 = vpop.f32.mrb[0].mxu0
    %v2115 = vadd.f32 0.0, %v2114
    %v2116 = vpop.f32.mrb[0].mxu0
    %2117 = vdwg.mxu0
    %v2118 = vadd.f32 %v2042, %v2115
    %v2119 = vxor.u32 %v2118, 2147483648
    %v2120 = vmul.f32 %v2119, 1.442695
    %v2121 = vpow.pop %v2120
    %v2122 = vadd.f32 %v2121, 1.0
    %v2123 = vrcp.pop %v2122
    %v2124 = vmul.f32 1.0, %v2123
    %v2125 = vtanh.pop %v2118
    %v2126 = vmul.f32 %v2124, %v2035
    %2128 = vrot.lane.b32.xlu0 %v2125, 64
    %v2129 = vpop.permute.xlu0 %2128
    %v2131 = vmul.f32 %v2124, %v2129
    %2133 = vrot.lane.b32.xlu0 %v2131, 32
    %v2134 = vpop.permute.xlu0 %2133
    %v2136 = vadd.f32 %v2126, %v2134
    %v2137 = vtanh.pop %v2136
    %2139 = vrot.lane.b32.xlu0 %v2137, 64
    %v2140 = vpop.permute.xlu0 %2139
    %v2142 = vmul.f32 %v2124, %v2140
    %v2143 = vld [vmem:[#allocation5 + $0x7] sm:$0x1]
    %2145 = vrot.lane.b32.xlu0 %v2142, 32
    %v2146 = vpop.permute.xlu0 %2145
    %v2147 = vsel %vm60, %v2146, 0
    %2149 = vmatprep.subr.mxu0 0.0
    %2150 = vmatpush1.msra.mxu0 %v1436
    %2151 = vmatprep.subr.mxu0 0.0
    %2152 = vmatpush1.msra.mxu0 %v1437
    %2153 = vmatprep.subr.mxu0 0.0
    %2154 = vmatpush1.msra.mxu0 %v1438
    %2155 = vmatprep.subr.mxu0 0.0
    %2156 = vmatpush1.msra.mxu0 %v1439
    %2157 = vmatprep.subr.mxu0 0.0
    %2158 = vmatpush1.msra.mxu0 0.0
    %2159 = vmatprep.subr.mxu0 0.0
    %2160 = vmatpush1.msra.mxu0 0.0
    %2161 = vmatprep.subr.mxu0 0.0
    %2162 = vmatpush1.msra.mxu0 0.0
    %2163 = vmatprep.subr.mxu0 0.0
    %2164 = vmatpush1.msra.mxu0 0.0
    %2165 = vmatprep.subr.mxu0 0.0
    %2166 = vmatpush1.msra.mxu0 0.0
    %2167 = vmatprep.subr.mxu0 0.0
    %2168 = vmatpush1.msra.mxu0 0.0
    %2169 = vmatprep.subr.mxu0 0.0
    %2170 = vmatpush1.msra.mxu0 0.0
    %2171 = vmatprep.subr.mxu0 0.0
    %2172 = vmatpush1.msra.mxu0 0.0
    %2173 = vmatprep.subr.mxu0 0.0
    %2174 = vmatpush1.msra.mxu0 0.0
    %2175 = vmatprep.subr.mxu0 0.0
    %2176 = vmatpush1.msra.mxu0 0.0
    %2177 = vmatprep.subr.mxu0 0.0
    %2178 = vmatpush1.msra.mxu0 0.0
    %2179 = vmatprep.subr.mxu0 0.0
    %2180 = vmatpush1.msra.mxu0 0.0
    %2181 = vmatprep.subr.mxu0 0.0
    %2182 = vmatpush1.msra.mxu0 0.0
    %2183 = vmatprep.subr.mxu0 0.0
    %2184 = vmatpush1.msra.mxu0 0.0
    %2185 = vmatprep.subr.mxu0 0.0
    %2186 = vmatpush1.msra.mxu0 0.0
    %2187 = vmatprep.subr.mxu0 0.0
    %2188 = vmatpush1.msra.mxu0 0.0
    %2189 = vmatprep.subr.mxu0 0.0
    %2190 = vmatpush1.msra.mxu0 0.0
    %2191 = vmatprep.subr.mxu0 0.0
    %2192 = vmatpush1.msra.mxu0 0.0
    %2193 = vmatprep.subr.mxu0 0.0
    %2194 = vmatpush1.msra.mxu0 0.0
    %2195 = vmatprep.subr.mxu0 0.0
    %2196 = vmatpush1.msra.mxu0 0.0
    %2197 = vmatprep.subr.mxu0 0.0
    %2198 = vmatpush1.msra.mxu0 0.0
    %2199 = vmatprep.subr.mxu0 0.0
    %2200 = vmatpush1.msra.mxu0 0.0
    %2201 = vmatprep.subr.mxu0 0.0
    %2202 = vmatpush1.msra.mxu0 0.0
    %2203 = vmatprep.subr.mxu0 0.0
    %2204 = vmatpush1.msra.mxu0 0.0
    %2205 = vmatprep.subr.mxu0 0.0
    %2206 = vmatpush1.msra.mxu0 0.0
    %2207 = vmatprep.subr.mxu0 0.0
    %2208 = vmatpush1.msra.mxu0 0.0
    %2209 = vmatprep.subr.mxu0 0.0
    %2210 = vmatpush1.msra.mxu0 0.0
    %2211 = vmatprep.subr.mxu0 0.0
    %2212 = vmatpush1.msra.mxu0 0.0
    %2213 = vmatprep.mubr.f32.mxu0 0.0
    %2214 = vmatmul.mubr.f32.gmra.mrb[0].mxu0 %v2147
    %v2215 = vpop.f32.mrb[0].mxu0
    %v2216 = vadd.f32 0.0, %v2215
    %v2217 = vpop.f32.mrb[0].mxu0
    %2218 = vdwg.mxu0
    %v2219 = vadd.f32 %v2143, %v2216
    %v2220 = vxor.u32 %v2219, 2147483648
    %v2221 = vmul.f32 %v2220, 1.442695
    %v2222 = vpow.pop %v2221
    %v2223 = vadd.f32 %v2222, 1.0
    %v2224 = vrcp.pop %v2223
    %v2225 = vmul.f32 1.0, %v2224
    %v2226 = vtanh.pop %v2219
    %v2227 = vmul.f32 %v2225, %v2136
    %2229 = vrot.lane.b32.xlu0 %v2226, 64
    %v2230 = vpop.permute.xlu0 %2229
    %v2232 = vmul.f32 %v2225, %v2230
    %2234 = vrot.lane.b32.xlu0 %v2232, 32
    %v2235 = vpop.permute.xlu0 %2234
    %v2237 = vadd.f32 %v2227, %v2235
    %v2238 = vtanh.pop %v2237
    %2240 = vrot.lane.b32.xlu0 %v2238, 64
    %v2241 = vpop.permute.xlu0 %2240
    %v2243 = vmul.f32 %v2225, %v2241
    %v2244 = vld [vmem:[%s7] sm:$0xff]
    %v2245 = vld [vmem:[%s7 + $0x8] sm:$0xff]
    %v2246 = vld [vmem:[%s7 + $0x10] sm:$0xff]
    %v2247 = vld [vmem:[%s7 + $0x18] sm:$0xff]
    %v2248 = vld [vmem:[%s7 + $0x20] sm:$0xff]
    %v2249 = vld [vmem:[%s7 + $0x28] sm:$0xff]
    %v2250 = vld [vmem:[%s7 + $0x30] sm:$0xff]
    %v2251 = vld [vmem:[%s7 + $0x38] sm:$0xff]
    %2253 = vrot.lane.b32.xlu0 %v2243, 32
    %v2254 = vpop.permute.xlu0 %2253
    %v2255 = vsel %vm60, %v2254, 0
    %2257 = vmatprep.subr.mxu0 0.0
    %2258 = vmatpush1.msra.mxu0 %v2248
    %2259 = vmatprep.subr.mxu0 0.0
    %2260 = vmatpush1.msra.mxu0 %v2249
    %2261 = vmatprep.subr.mxu0 0.0
    %2262 = vmatpush1.msra.mxu0 %v2250
    %2263 = vmatprep.subr.mxu0 0.0
    %2264 = vmatpush1.msra.mxu0 %v2251
    %2265 = vmatprep.subr.mxu0 0.0
    %2266 = vmatpush1.msra.mxu0 0.0
    %2267 = vmatprep.subr.mxu0 0.0
    %2268 = vmatpush1.msra.mxu0 0.0
    %2269 = vmatprep.subr.mxu0 0.0
    %2270 = vmatpush1.msra.mxu0 0.0
    %2271 = vmatprep.subr.mxu0 0.0
    %2272 = vmatpush1.msra.mxu0 0.0
    %2273 = vmatprep.subr.mxu0 0.0
    %2274 = vmatpush1.msra.mxu0 0.0
    %2275 = vmatprep.subr.mxu0 0.0
    %2276 = vmatpush1.msra.mxu0 0.0
    %2277 = vmatprep.subr.mxu0 0.0
    %2278 = vmatpush1.msra.mxu0 0.0
    %2279 = vmatprep.subr.mxu0 0.0
    %2280 = vmatpush1.msra.mxu0 0.0
    %2281 = vmatprep.subr.mxu0 0.0
    %2282 = vmatpush1.msra.mxu0 0.0
    %2283 = vmatprep.subr.mxu0 0.0
    %2284 = vmatpush1.msra.mxu0 0.0
    %2285 = vmatprep.subr.mxu0 0.0
    %2286 = vmatpush1.msra.mxu0 0.0
    %2287 = vmatprep.subr.mxu0 0.0
    %2288 = vmatpush1.msra.mxu0 0.0
    %2289 = vmatprep.subr.mxu0 0.0
    %2290 = vmatpush1.msra.mxu0 0.0
    %2291 = vmatprep.subr.mxu0 0.0
    %2292 = vmatpush1.msra.mxu0 0.0
    %2293 = vmatprep.subr.mxu0 0.0
    %2294 = vmatpush1.msra.mxu0 0.0
    %2295 = vmatprep.subr.mxu0 0.0
    %2296 = vmatpush1.msra.mxu0 0.0
    %2297 = vmatprep.subr.mxu0 0.0
    %2298 = vmatpush1.msra.mxu0 0.0
    %2299 = vmatprep.subr.mxu0 0.0
    %2300 = vmatpush1.msra.mxu0 0.0
    %2301 = vmatprep.subr.mxu0 0.0
    %2302 = vmatpush1.msra.mxu0 0.0
    %2303 = vmatprep.subr.mxu0 0.0
    %2304 = vmatpush1.msra.mxu0 0.0
    %2305 = vmatprep.subr.mxu0 0.0
    %2306 = vmatpush1.msra.mxu0 0.0
    %2307 = vmatprep.subr.mxu0 0.0
    %2308 = vmatpush1.msra.mxu0 0.0
    %2309 = vmatprep.subr.mxu0 0.0
    %2310 = vmatpush1.msra.mxu0 0.0
    %2311 = vmatprep.subr.mxu0 0.0
    %2312 = vmatpush1.msra.mxu0 0.0
    %2313 = vmatprep.subr.mxu0 0.0
    %2314 = vmatpush1.msra.mxu0 0.0
    %2315 = vmatprep.subr.mxu0 0.0
    %2316 = vmatpush1.msra.mxu0 0.0
    %2317 = vmatprep.subr.mxu0 0.0
    %2318 = vmatpush1.msra.mxu0 0.0
    %2319 = vmatprep.subr.mxu0 0.0
    %2320 = vmatpush1.msra.mxu0 0.0
    %2321 = vmatprep.mubr.f32.mxu0 0.0
    %2322 = vmatmul.mubr.f32.gmra.mrb[0].mxu0 %v2255
    %v2323 = vpop.f32.mrb[0].mxu0
    %v2324 = vadd.f32 0.0, %v2323
    %v2325 = vpop.f32.mrb[0].mxu0
    %2326 = vdwg.mxu0
    %v2328 = vlaneseq
    %v2329 = vshrl.u32 %v2328, 7
    %v2330 = vsub.s32 0, %v2329
    %v2331 = vrot.slane %v1342, %v2330
    %2332 = vrot.lane.b32.xlu0 %v2331, 96
    %v2333 = vpop.permute.xlu0 %2332
    %v2334 = vsel %vm60, %v2333, 0
    %2336 = vmatprep.subr.mxu0 0.0
    %2337 = vmatpush1.msra.mxu0 %v2244
    %2338 = vmatprep.subr.mxu0 0.0
    %2339 = vmatpush1.msra.mxu0 %v2245
    %2340 = vmatprep.subr.mxu0 0.0
    %2341 = vmatpush1.msra.mxu0 %v2246
    %2342 = vmatprep.subr.mxu0 0.0
    %2343 = vmatpush1.msra.mxu0 %v2247
    %2344 = vmatprep.subr.mxu0 0.0
    %2345 = vmatpush1.msra.mxu0 0.0
    %2346 = vmatprep.subr.mxu0 0.0
    %2347 = vmatpush1.msra.mxu0 0.0
    %2348 = vmatprep.subr.mxu0 0.0
    %2349 = vmatpush1.msra.mxu0 0.0
    %2350 = vmatprep.subr.mxu0 0.0
    %2351 = vmatpush1.msra.mxu0 0.0
    %2352 = vmatprep.subr.mxu0 0.0
    %2353 = vmatpush1.msra.mxu0 0.0
    %2354 = vmatprep.subr.mxu0 0.0
    %2355 = vmatpush1.msra.mxu0 0.0
    %2356 = vmatprep.subr.mxu0 0.0
    %2357 = vmatpush1.msra.mxu0 0.0
    %2358 = vmatprep.subr.mxu0 0.0
    %2359 = vmatpush1.msra.mxu0 0.0
    %2360 = vmatprep.subr.mxu0 0.0
    %2361 = vmatpush1.msra.mxu0 0.0
    %2362 = vmatprep.subr.mxu0 0.0
    %2363 = vmatpush1.msra.mxu0 0.0
    %2364 = vmatprep.subr.mxu0 0.0
    %2365 = vmatpush1.msra.mxu0 0.0
    %2366 = vmatprep.subr.mxu0 0.0
    %2367 = vmatpush1.msra.mxu0 0.0
    %2368 = vmatprep.subr.mxu0 0.0
    %2369 = vmatpush1.msra.mxu0 0.0
    %2370 = vmatprep.subr.mxu0 0.0
    %2371 = vmatpush1.msra.mxu0 0.0
    %2372 = vmatprep.subr.mxu0 0.0
    %2373 = vmatpush1.msra.mxu0 0.0
    %2374 = vmatprep.subr.mxu0 0.0
    %2375 = vmatpush1.msra.mxu0 0.0
    %2376 = vmatprep.subr.mxu0 0.0
    %2377 = vmatpush1.msra.mxu0 0.0
    %2378 = vmatprep.subr.mxu0 0.0
    %2379 = vmatpush1.msra.mxu0 0.0
    %2380 = vmatprep.subr.mxu0 0.0
    %2381 = vmatpush1.msra.mxu0 0.0
    %2382 = vmatprep.subr.mxu0 0.0
    %2383 = vmatpush1.msra.mxu0 0.0
    %2384 = vmatprep.subr.mxu0 0.0
    %2385 = vmatpush1.msra.mxu0 0.0
    %2386 = vmatprep.subr.mxu0 0.0
    %2387 = vmatpush1.msra.mxu0 0.0
    %2388 = vmatprep.subr.mxu0 0.0
    %2389 = vmatpush1.msra.mxu0 0.0
    %2390 = vmatprep.subr.mxu0 0.0
    %2391 = vmatpush1.msra.mxu0 0.0
    %2392 = vmatprep.subr.mxu0 0.0
    %2393 = vmatpush1.msra.mxu0 0.0
    %2394 = vmatprep.subr.mxu0 0.0
    %2395 = vmatpush1.msra.mxu0 0.0
    %2396 = vmatprep.subr.mxu0 0.0
    %2397 = vmatpush1.msra.mxu0 0.0
    %2398 = vmatprep.subr.mxu0 0.0
    %2399 = vmatpush1.msra.mxu0 0.0
    %2400 = vmatprep.mubr.f32.mxu0 0.0
    %2401 = vmatmul.mubr.f32.gmra.mrb[0].mxu0 %v2334
    %v2402 = vpop.f32.mrb[0].mxu0
    %v2403 = vadd.f32 %v2324, %v2402
    %v2404 = vpop.f32.mrb[0].mxu0
    %2405 = vdwg.mxu0
    %v2406 = vld [vmem:[#allocation9] sm:$0x1]
    %v2407 = vadd.f32 %v2403, %v2406
    %vm2408 = vcmask 24576
    %2409 = vst.msk [vmem:[#allocation11] sm:$0x1] %vm2408, %v2407
    // Predicated region
    $region46: #{rnn_model_forward.1} parent=1 // pred_check
      _
    $region47: #{rnn_model_forward.1} parent=1 // pred_check_branch
      %2411 = sbr.rel (0) target = $region49
    $region48: #{rnn_model_forward.1} parent=1 // pred_region
      %s2413 = ssub.s32 16, 16
      %2414 = vsyncadd [#allocation8], %s2413
      %s2416 = sshll.u32 [#allocation11], 4
      %s2417 = int_to_ptr.vmem [resolvable:$true] %s2416
      %2419 = dma.vmem_to_hbm [thread:$0]  %s2417, 16, %s9, [#allocation8]
    $region49: #{rnn_model_forward.1} parent=1 // pred_fallthru
      _
    // Predicated region
    $region50: #{rnn_model_forward.1} parent=1 // pred_check
      _
    $region51: #{rnn_model_forward.1} parent=1 // pred_check_branch
      %2421 = sbr.rel (0) target = $region53
    $region52: #{rnn_model_forward.1} parent=1 // pred_region
      %2422 = dma.done [#allocation8], 16
    $region53: #{rnn_model_forward.1} parent=1 // pred_fallthru
      _
    %2423 = vsyncpa [#allocation7], 1
    %2424 = vsyncpa [#allocation10], 1
    %2425 = vsyncpa [#allocation8], 1

</llo_original>
